<compile_context>
chip_gen: v5e
topology: v5e:2x2
jax: 0.10.0
libtpu: 0.0.40
codegen_flags: <defaults>
</compile_context>

<pallas_src>
import functools

import jax
import jax.numpy as jnp
from jax.experimental import pallas as pl
from jax.experimental.pallas import tpu as pltpu


def _round_up(x, m):
    return (x + m - 1) // m * m


# ---------------------------------------------------------------------------
# The single fused kernel: conv1 GEMM -> dense conv operators 2-4 -> adv head.
# ---------------------------------------------------------------------------
def _fused_discriminator_kernel(
        p1_ref, w1_ref, s1_ref, t1_ref,          # layer 1 (im2col GEMM)
        w2_ref, s2_ref, t2_ref,                  # layer 2 (dense conv operator)
        w3_ref, s3_ref, t3_ref,                  # layer 3
        w4_ref, s4_ref, t4_ref,                  # layer 4
        a1_ref, ab1_ref, a2_ref, ab2_ref, a3_ref, ab3_ref,   # adv head
        o_ref,
        *, batch, n_c1, m1):
    slope = jnp.float32(0.03)

    def bn_lrelu(y, scale, shift):
        y = y * scale + shift                    # folded BatchNorm affine (f32)
        return jnp.where(y > 0, y, slope * y)    # LeakyReLU(0.03)

    # ---- layer 1: conv as im2col GEMM, channel-major, lane-dense ----------
    h1 = jnp.dot(w1_ref[...], p1_ref[...], preferred_element_type=jnp.float32)
    h1 = bn_lrelu(h1, s1_ref[...], t1_ref[...]).astype(jnp.bfloat16)  # (C1p, B*M1)

    # ---- layer 2: dense conv operator, contraction split per in-channel ---
    # x2[b] is (c1, d, h, w)-flattened; h1 holds it as [c1, b*M1 + m], so the
    # K = C1*M1 contraction is decomposed into C1 aligned (1,M1)x(M1,N) matmuls.
    n2 = w2_ref.shape[1]
    rows = []
    for b in range(batch):
        acc = jnp.zeros((1, n2), jnp.float32)
        for c in range(n_c1):
            xb = h1[c:c + 1, b * m1:(b + 1) * m1]                    # (1, M1) bf16
            acc = acc + jnp.dot(xb, w2_ref[c * m1:(c + 1) * m1, :],
                                preferred_element_type=jnp.float32)
        rows.append(acc)
    h2 = jnp.concatenate(rows, axis=0)                               # (B, C2*M2)
    h2 = bn_lrelu(h2, s2_ref[...], t2_ref[...]).astype(jnp.bfloat16)

    # ---- layers 3 & 4: dense conv operators, batched over B ---------------
    h3 = jnp.dot(h2, w3_ref[...], preferred_element_type=jnp.float32)
    h3 = bn_lrelu(h3, s3_ref[...], t3_ref[...]).astype(jnp.bfloat16)  # (B, C3*M3)
    h4 = jnp.dot(h3, w4_ref[...], preferred_element_type=jnp.float32)
    h4 = bn_lrelu(h4, s4_ref[...], t4_ref[...]).astype(jnp.bfloat16)  # (B, flat)

    # ---- adv head: Linear -> Linear -> Linear -> Softmax ------------------
    z = jnp.dot(h4, a1_ref[...], preferred_element_type=jnp.float32) + ab1_ref[...]
    z = jnp.dot(z.astype(jnp.bfloat16), a2_ref[...],
                preferred_element_type=jnp.float32) + ab2_ref[...]
    z = jnp.dot(z.astype(jnp.bfloat16), a3_ref[...],
                preferred_element_type=jnp.float32) + ab3_ref[...]    # (B, 1)
    zmax = jnp.max(z, axis=1, keepdims=True)
    e = jnp.exp(z - zmax)
    o_ref[...] = e / jnp.sum(e, axis=1, keepdims=True)


# ---------------------------------------------------------------------------
# XLA-side prep: im2col of the raw network input for layer 1 only.
#   (B, C, D, H, W) -> (C*4^3, B*Do*Ho*Wo), K order (ci,kd,kh,kw),
#   lane order (b, do, ho, wo).  Lanes padded to a multiple of 128.
# ---------------------------------------------------------------------------
def _im2col_input(x, k=4, stride=2, pad=1):
    B, C, D, H, W = x.shape
    Do = (D + 2 * pad - k) // stride + 1
    Ho = (H + 2 * pad - k) // stride + 1
    Wo = (W + 2 * pad - k) // stride + 1
    xc = jnp.transpose(x, (1, 0, 2, 3, 4))
    xp = jnp.pad(xc, ((0, 0), (0, 0), (pad, pad), (pad, pad), (pad, pad)))
    cols = []
    for kd in range(k):
        for kh in range(k):
            for kw in range(k):
                cols.append(xp[:, :,
                               kd:kd + stride * Do:stride,
                               kh:kh + stride * Ho:stride,
                               kw:kw + stride * Wo:stride])
    patches = jnp.stack(cols, axis=1)                      # (C, k^3, B, Do, Ho, Wo)
    patches = patches.reshape(C * k ** 3, B * Do * Ho * Wo).astype(jnp.bfloat16)
    m = patches.shape[1]
    mp = _round_up(m, 128)
    if mp != m:
        patches = jnp.pad(patches, ((0, 0), (0, mp - m)))
    return patches, (Do, Ho, Wo)


# ---------------------------------------------------------------------------
# Parameter init (deterministic, PyTorch shapes) and one-time kernel prep.
# ---------------------------------------------------------------------------
def init_params(key, in_channels=1, out_conv_channels=32, in_dim=(16, 16, 16)):
    c1 = out_conv_channels // 8
    c2 = out_conv_channels // 4
    c3 = out_conv_channels // 2
    chans = [in_channels, c1, c2, c3, out_conv_channels]
    out_dim = tuple(d // 16 for d in in_dim)
    flat = out_conv_channels * out_dim[0] * out_dim[1] * out_dim[2]

    params = {"convs": [], "adv": []}
    for i in range(4):
        key, kw, kg, kb = jax.random.split(key, 4)
        cin, cout = chans[i], chans[i + 1]
        params["convs"].append(dict(
            w=0.05 * jax.random.normal(kw, (cout, cin, 4, 4, 4), jnp.float32),
            gamma=1.0 + 0.1 * jax.random.normal(kg, (cout,), jnp.float32),
            beta=0.01 * jax.random.normal(kb, (cout,), jnp.float32),
            mean=jnp.zeros((cout,), jnp.float32),   # BN running_mean (eval default)
            var=jnp.ones((cout,), jnp.float32),     # BN running_var  (eval default)
        ))

    # adv head: Linear(flat,256) -> Linear(256,128) -> Linear(128,1) -> Softmax
    dims = [flat, 256, 128, 1]
    for i in range(3):
        key, kw, kb = jax.random.split(key, 3)
        w = 0.05 * jax.random.normal(kw, (dims[i], dims[i + 1]), jnp.float32)
        b = 0.01 * jax.random.normal(kb, (dims[i + 1],), jnp.float32)
        params["adv"].append((w, b))
    return params


def _dense_conv_operator(w, spatial):
    """Unrolled Conv3d(k=4, s=2, p=1, no bias) as a (Cin*D*H*W, Cout*Do*Ho*Wo)
    matrix (NCDHW flatten on both sides, matching torch's .view order), built
    by running the conv once on identity basis inputs."""
    cout, cin = w.shape[0], w.shape[1]
    D, H, W = spatial
    K = cin * D * H * W
    eye = jnp.eye(K, dtype=jnp.float32).reshape(K, cin, D, H, W)
    out = jax.lax.conv_general_dilated(
        eye, w, window_strides=(2, 2, 2),
        padding=((1, 1), (1, 1), (1, 1)),
        dimension_numbers=("NCDHW", "OIDHW", "NCDHW"),
        precision=jax.lax.Precision.HIGHEST)
    return out.reshape(K, -1)


def prepare_params(params, in_dim=(16, 16, 16), eps=1e-5):
    """Fold BN, build kernel-ready weight layouts ONCE (not per forward call)."""
    convs = params["convs"]

    def bn_fold(p):
        inv = p["gamma"] / jnp.sqrt(p["var"] + eps)
        return inv, p["beta"] - p["mean"] * inv

    arrays = {}
    # Layer 1: im2col GEMM weight (Cout padded to 8 sublanes, K = Cin*64 unpadded).
    p0 = convs[0]
    c1, cin = p0["w"].shape[0], p0["w"].shape[1]
    c1p = _round_up(c1, 8)
    w1 = p0["w"].reshape(c1, cin * 64)
    arrays["w1"] = jnp.pad(w1, ((0, c1p - c1), (0, 0))).astype(jnp.bfloat16)
    s, t = bn_fold(p0)
    arrays["s1"] = jnp.pad(s, (0, c1p - c1),
                           constant_values=1.0).reshape(c1p, 1).astype(jnp.float32)
    arrays["t1"] = jnp.pad(t, (0, c1p - c1)).reshape(c1p, 1).astype(jnp.float32)

    # Layers 2-4: dense conv operators + per-output-column folded BN.
    spatial = tuple(d // 2 for d in in_dim)           # layer-2 input spatial dims
    for li in range(1, 4):
        p = convs[li]
        wb = _dense_conv_operator(p["w"], spatial)
        out_spatial = tuple(d // 2 for d in spatial)
        msp = out_spatial[0] * out_spatial[1] * out_spatial[2]
        s, t = bn_fold(p)
        arrays[f"w{li + 1}"] = wb.astype(jnp.bfloat16)
        arrays[f"s{li + 1}"] = jnp.repeat(s, msp).reshape(1, -1).astype(jnp.float32)
        arrays[f"t{li + 1}"] = jnp.repeat(t, msp).reshape(1, -1).astype(jnp.float32)
        spatial = out_spatial

    # adv head: Linear(flat,256) -> Linear(256,128) -> Linear(128,1)
    for i, (w, b) in enumerate(params["adv"], start=1):
        arrays[f"a{i}"] = w.astype(jnp.bfloat16)
        arrays[f"ab{i}"] = b.reshape(1, -1).astype(jnp.float32)

    m1 = (in_dim[0] // 2) * (in_dim[1] // 2) * (in_dim[2] // 2)
    meta = {"n_c1": c1, "m1": m1}
    return arrays, meta


# ---------------------------------------------------------------------------
# Forward: one XLA im2col on the input + ONE fused pallas_call.
# ---------------------------------------------------------------------------
_ARG_ORDER = ("w1", "s1", "t1", "w2", "s2", "t2", "w3", "s3", "t3",
              "w4", "s4", "t4", "a1", "ab1", "a2", "ab2", "a3", "ab3")


def discriminator_forward(x, arrays, meta):
    """x: (B, C, D, H, W) NCDHW -> x_adv (B, 1)."""
    B = x.shape[0]
    patches, _ = _im2col_input(x)             # only XLA-side prep (on raw input)
    ops = (patches,) + tuple(arrays[k] for k in _ARG_ORDER)
    kernel = functools.partial(_fused_discriminator_kernel,
                               batch=B, n_c1=meta["n_c1"], m1=meta["m1"])
    x_adv = pl.pallas_call(
        kernel,
        out_shape=jax.ShapeDtypeStruct((B, 1), jnp.float32),
        # grid = () (single invocation); every operand whole-array VMEM-resident.
        in_specs=[pl.BlockSpec(memory_space=pltpu.MemorySpace.VMEM)] * len(ops),
        out_specs=pl.BlockSpec(memory_space=pltpu.MemorySpace.VMEM),
    )(*ops)
    # TODO(synk): self.aux is used in the reference forward but never defined in
    # __init__ (AttributeError in PyTorch); no aux output is produced.
    return x_adv


if __name__ == "__main__":
    key = jax.random.PRNGKey(0)
    kx, kp = jax.random.split(key)

    # Small shapes: batch=2, in_channels=1, in_dim=(16,16,16), out_conv_channels=32.
    x = jax.random.normal(kx, (2, 1, 16, 16, 16), jnp.float32)
    raw_params = init_params(kp, in_channels=1, out_conv_channels=32,
                             in_dim=(16, 16, 16))
    arrays, meta = prepare_params(raw_params, in_dim=(16, 16, 16))

    fwd = jax.jit(functools.partial(discriminator_forward, meta=meta))
    x_adv = jax.block_until_ready(fwd(x, arrays))

    assert x_adv.shape == (2, 1), x_adv.shape
    assert bool(jnp.all(jnp.isfinite(x_adv)))
    # Softmax over a single class column is identically 1 (faithful to reference).
    assert bool(jnp.allclose(x_adv, 1.0))
    print("KERNEL_OK")
</pallas_src>

<mosaic_0001>
module attributes {stable_mosaic.version = 11 : i64} {
  func.func @_fused_discriminator_kernel(%arg0: memref<64x1024xbf16, #tpu.memory_space<vmem>>, %arg1: memref<8x64xbf16, #tpu.memory_space<vmem>>, %arg2: memref<8x1xf32, #tpu.memory_space<vmem>>, %arg3: memref<8x1xf32, #tpu.memory_space<vmem>>, %arg4: memref<2048x512xbf16, #tpu.memory_space<vmem>>, %arg5: memref<1x512xf32, #tpu.memory_space<vmem>>, %arg6: memref<1x512xf32, #tpu.memory_space<vmem>>, %arg7: memref<512x128xbf16, #tpu.memory_space<vmem>>, %arg8: memref<1x128xf32, #tpu.memory_space<vmem>>, %arg9: memref<1x128xf32, #tpu.memory_space<vmem>>, %arg10: memref<128x32xbf16, #tpu.memory_space<vmem>>, %arg11: memref<1x32xf32, #tpu.memory_space<vmem>>, %arg12: memref<1x32xf32, #tpu.memory_space<vmem>>, %arg13: memref<32x256xbf16, #tpu.memory_space<vmem>>, %arg14: memref<1x256xf32, #tpu.memory_space<vmem>>, %arg15: memref<256x128xbf16, #tpu.memory_space<vmem>>, %arg16: memref<1x128xf32, #tpu.memory_space<vmem>>, %arg17: memref<128x1xbf16, #tpu.memory_space<vmem>>, %arg18: memref<1x1xf32, #tpu.memory_space<vmem>>, %arg19: memref<2x1xf32, #tpu.memory_space<vmem>>) attributes {dimension_semantics = [], scalar_prefetch = 0 : i64, scratch_operands = 0 : i64, tpu.core_type = #tpu.core_type<tc>} {
    %c0 = arith.constant 0 : index
    %c0_0 = arith.constant 0 : index
    %0 = vector.load %arg1[%c0, %c0_0] : memref<8x64xbf16, #tpu.memory_space<vmem>>, vector<8x64xbf16>
    %c0_1 = arith.constant 0 : index
    %c0_2 = arith.constant 0 : index
    %1 = vector.load %arg0[%c0_1, %c0_2] : memref<64x1024xbf16, #tpu.memory_space<vmem>>, vector<64x1024xbf16>
    %cst = arith.constant dense<0.000000e+00> : vector<8x1024xf32>
    %2 = tpu.matmul %0, %1, %cst {dimension_numbers = #tpu.dot_dimension_numbers<[1], [0], [0], [1], [0, 0, 1, 1], [], []>} : vector<8x64xbf16>, vector<64x1024xbf16>, vector<8x1024xf32> -> vector<8x1024xf32>
    %c0_3 = arith.constant 0 : index
    %c0_4 = arith.constant 0 : index
    %3 = vector.load %arg2[%c0_3, %c0_4] : memref<8x1xf32, #tpu.memory_space<vmem>>, vector<8x1xf32>
    %c0_5 = arith.constant 0 : index
    %c0_6 = arith.constant 0 : index
    %4 = vector.load %arg3[%c0_5, %c0_6] : memref<8x1xf32, #tpu.memory_space<vmem>>, vector<8x1xf32>
    %5 = vector.broadcast %3 : vector<8x1xf32> to vector<8x1024xf32>
    %6 = arith.mulf %2, %5 : vector<8x1024xf32>
    %7 = vector.broadcast %4 : vector<8x1xf32> to vector<8x1024xf32>
    %8 = arith.addf %6, %7 : vector<8x1024xf32>
    %cst_7 = arith.constant 0.000000e+00 : f32
    %9 = vector.broadcast %cst_7 : f32 to vector<8x1024xf32>
    %10 = arith.cmpf ogt, %8, %9 : vector<8x1024xf32>
    %cst_8 = arith.constant 3.000000e-02 : f32
    %11 = vector.broadcast %cst_8 : f32 to vector<8x1024xf32>
    %12 = arith.mulf %11, %8 : vector<8x1024xf32>
    %13 = arith.select %10, %8, %12 : vector<8x1024xi1>, vector<8x1024xf32>
    %14 = arith.truncf %13 : vector<8x1024xf32> to vector<8x1024xbf16>
    %cst_9 = arith.constant 0.000000e+00 : f32
    %15 = vector.broadcast %cst_9 : f32 to vector<1x512xf32>
    %16 = vector.extract_strided_slice %14 {offsets = [0, 0], sizes = [1, 512], strides = [1, 1]} : vector<8x1024xbf16> to vector<1x512xbf16>
    %c0_10 = arith.constant 0 : index
    %c0_11 = arith.constant 0 : index
    %17 = vector.load %arg4[%c0_10, %c0_11] : memref<2048x512xbf16, #tpu.memory_space<vmem>>, vector<512x512xbf16>
    %cst_12 = arith.constant dense<0.000000e+00> : vector<1x512xf32>
    %18 = tpu.matmul %16, %17, %cst_12 {dimension_numbers = #tpu.dot_dimension_numbers<[1], [0], [0], [1], [0, 0, 1, 1], [], []>} : vector<1x512xbf16>, vector<512x512xbf16>, vector<1x512xf32> -> vector<1x512xf32>
    %19 = arith.addf %15, %18 : vector<1x512xf32>
    %20 = vector.extract_strided_slice %14 {offsets = [1, 0], sizes = [1, 512], strides = [1, 1]} : vector<8x1024xbf16> to vector<1x512xbf16>
    %c512 = arith.constant 512 : index
    %c0_13 = arith.constant 0 : index
    %21 = vector.load %arg4[%c512, %c0_13] : memref<2048x512xbf16, #tpu.memory_space<vmem>>, vector<512x512xbf16>
    %cst_14 = arith.constant dense<0.000000e+00> : vector<1x512xf32>
    %22 = tpu.matmul %20, %21, %cst_14 {dimension_numbers = #tpu.dot_dimension_numbers<[1], [0], [0], [1], [0, 0, 1, 1], [], []>} : vector<1x512xbf16>, vector<512x512xbf16>, vector<1x512xf32> -> vector<1x512xf32>
    %23 = arith.addf %19, %22 : vector<1x512xf32>
    %24 = vector.extract_strided_slice %14 {offsets = [2, 0], sizes = [1, 512], strides = [1, 1]} : vector<8x1024xbf16> to vector<1x512xbf16>
    %c1024 = arith.constant 1024 : index
    %c0_15 = arith.constant 0 : index
    %25 = vector.load %arg4[%c1024, %c0_15] : memref<2048x512xbf16, #tpu.memory_space<vmem>>, vector<512x512xbf16>
    %cst_16 = arith.constant dense<0.000000e+00> : vector<1x512xf32>
    %26 = tpu.matmul %24, %25, %cst_16 {dimension_numbers = #tpu.dot_dimension_numbers<[1], [0], [0], [1], [0, 0, 1, 1], [], []>} : vector<1x512xbf16>, vector<512x512xbf16>, vector<1x512xf32> -> vector<1x512xf32>
    %27 = arith.addf %23, %26 : vector<1x512xf32>
    %28 = vector.extract_strided_slice %14 {offsets = [3, 0], sizes = [1, 512], strides = [1, 1]} : vector<8x1024xbf16> to vector<1x512xbf16>
    %c1536 = arith.constant 1536 : index
    %c0_17 = arith.constant 0 : index
    %29 = vector.load %arg4[%c1536, %c0_17] : memref<2048x512xbf16, #tpu.memory_space<vmem>>, vector<512x512xbf16>
    %cst_18 = arith.constant dense<0.000000e+00> : vector<1x512xf32>
    %30 = tpu.matmul %28, %29, %cst_18 {dimension_numbers = #tpu.dot_dimension_numbers<[1], [0], [0], [1], [0, 0, 1, 1], [], []>} : vector<1x512xbf16>, vector<512x512xbf16>, vector<1x512xf32> -> vector<1x512xf32>
    %31 = arith.addf %27, %30 : vector<1x512xf32>
    %cst_19 = arith.constant 0.000000e+00 : f32
    %32 = vector.broadcast %cst_19 : f32 to vector<1x512xf32>
    %33 = vector.extract_strided_slice %14 {offsets = [0, 512], sizes = [1, 512], strides = [1, 1]} : vector<8x1024xbf16> to vector<1x512xbf16>
    %c0_20 = arith.constant 0 : index
    %c0_21 = arith.constant 0 : index
    %34 = vector.load %arg4[%c0_20, %c0_21] : memref<2048x512xbf16, #tpu.memory_space<vmem>>, vector<512x512xbf16>
    %cst_22 = arith.constant dense<0.000000e+00> : vector<1x512xf32>
    %35 = tpu.matmul %33, %34, %cst_22 {dimension_numbers = #tpu.dot_dimension_numbers<[1], [0], [0], [1], [0, 0, 1, 1], [], []>} : vector<1x512xbf16>, vector<512x512xbf16>, vector<1x512xf32> -> vector<1x512xf32>
    %36 = arith.addf %32, %35 : vector<1x512xf32>
    %37 = vector.extract_strided_slice %14 {offsets = [1, 512], sizes = [1, 512], strides = [1, 1]} : vector<8x1024xbf16> to vector<1x512xbf16>
    %c512_23 = arith.constant 512 : index
    %c0_24 = arith.constant 0 : index
    %38 = vector.load %arg4[%c512_23, %c0_24] : memref<2048x512xbf16, #tpu.memory_space<vmem>>, vector<512x512xbf16>
    %cst_25 = arith.constant dense<0.000000e+00> : vector<1x512xf32>
    %39 = tpu.matmul %37, %38, %cst_25 {dimension_numbers = #tpu.dot_dimension_numbers<[1], [0], [0], [1], [0, 0, 1, 1], [], []>} : vector<1x512xbf16>, vector<512x512xbf16>, vector<1x512xf32> -> vector<1x512xf32>
    %40 = arith.addf %36, %39 : vector<1x512xf32>
    %41 = vector.extract_strided_slice %14 {offsets = [2, 512], sizes = [1, 512], strides = [1, 1]} : vector<8x1024xbf16> to vector<1x512xbf16>
    %c1024_26 = arith.constant 1024 : index
    %c0_27 = arith.constant 0 : index
    %42 = vector.load %arg4[%c1024_26, %c0_27] : memref<2048x512xbf16, #tpu.memory_space<vmem>>, vector<512x512xbf16>
    %cst_28 = arith.constant dense<0.000000e+00> : vector<1x512xf32>
    %43 = tpu.matmul %41, %42, %cst_28 {dimension_numbers = #tpu.dot_dimension_numbers<[1], [0], [0], [1], [0, 0, 1, 1], [], []>} : vector<1x512xbf16>, vector<512x512xbf16>, vector<1x512xf32> -> vector<1x512xf32>
    %44 = arith.addf %40, %43 : vector<1x512xf32>
    %45 = vector.extract_strided_slice %14 {offsets = [3, 512], sizes = [1, 512], strides = [1, 1]} : vector<8x1024xbf16> to vector<1x512xbf16>
    %c1536_29 = arith.constant 1536 : index
    %c0_30 = arith.constant 0 : index
    %46 = vector.load %arg4[%c1536_29, %c0_30] : memref<2048x512xbf16, #tpu.memory_space<vmem>>, vector<512x512xbf16>
    %cst_31 = arith.constant dense<0.000000e+00> : vector<1x512xf32>
    %47 = tpu.matmul %45, %46, %cst_31 {dimension_numbers = #tpu.dot_dimension_numbers<[1], [0], [0], [1], [0, 0, 1, 1], [], []>} : vector<1x512xbf16>, vector<512x512xbf16>, vector<1x512xf32> -> vector<1x512xf32>
    %48 = arith.addf %44, %47 : vector<1x512xf32>
    %49 = tpu.concatenate %31, %48 in 0 : vector<1x512xf32>, vector<1x512xf32> -> vector<2x512xf32>
    %c0_32 = arith.constant 0 : index
    %c0_33 = arith.constant 0 : index
    %50 = vector.load %arg5[%c0_32, %c0_33] : memref<1x512xf32, #tpu.memory_space<vmem>>, vector<1x512xf32>
    %c0_34 = arith.constant 0 : index
    %c0_35 = arith.constant 0 : index
    %51 = vector.load %arg6[%c0_34, %c0_35] : memref<1x512xf32, #tpu.memory_space<vmem>>, vector<1x512xf32>
    %52 = vector.broadcast %50 : vector<1x512xf32> to vector<2x512xf32>
    %53 = arith.mulf %49, %52 : vector<2x512xf32>
    %54 = vector.broadcast %51 : vector<1x512xf32> to vector<2x512xf32>
    %55 = arith.addf %53, %54 : vector<2x512xf32>
    %cst_36 = arith.constant 0.000000e+00 : f32
    %56 = vector.broadcast %cst_36 : f32 to vector<2x512xf32>
    %57 = arith.cmpf ogt, %55, %56 : vector<2x512xf32>
    %cst_37 = arith.constant 3.000000e-02 : f32
    %58 = vector.broadcast %cst_37 : f32 to vector<2x512xf32>
    %59 = arith.mulf %58, %55 : vector<2x512xf32>
    %60 = arith.select %57, %55, %59 : vector<2x512xi1>, vector<2x512xf32>
    %61 = arith.truncf %60 : vector<2x512xf32> to vector<2x512xbf16>
    %c0_38 = arith.constant 0 : index
    %c0_39 = arith.constant 0 : index
    %62 = vector.load %arg7[%c0_38, %c0_39] : memref<512x128xbf16, #tpu.memory_space<vmem>>, vector<512x128xbf16>
    %cst_40 = arith.constant dense<0.000000e+00> : vector<2x128xf32>
    %63 = tpu.matmul %61, %62, %cst_40 {dimension_numbers = #tpu.dot_dimension_numbers<[1], [0], [0], [1], [0, 0, 1, 1], [], []>} : vector<2x512xbf16>, vector<512x128xbf16>, vector<2x128xf32> -> vector<2x128xf32>
    %c0_41 = arith.constant 0 : index
    %c0_42 = arith.constant 0 : index
    %64 = vector.load %arg8[%c0_41, %c0_42] : memref<1x128xf32, #tpu.memory_space<vmem>>, vector<1x128xf32>
    %c0_43 = arith.constant 0 : index
    %c0_44 = arith.constant 0 : index
    %65 = vector.load %arg9[%c0_43, %c0_44] : memref<1x128xf32, #tpu.memory_space<vmem>>, vector<1x128xf32>
    %66 = vector.broadcast %64 : vector<1x128xf32> to vector<2x128xf32>
    %67 = arith.mulf %63, %66 : vector<2x128xf32>
    %68 = vector.broadcast %65 : vector<1x128xf32> to vector<2x128xf32>
    %69 = arith.addf %67, %68 : vector<2x128xf32>
    %cst_45 = arith.constant 0.000000e+00 : f32
    %70 = vector.broadcast %cst_45 : f32 to vector<2x128xf32>
    %71 = arith.cmpf ogt, %69, %70 : vector<2x128xf32>
    %cst_46 = arith.constant 3.000000e-02 : f32
    %72 = vector.broadcast %cst_46 : f32 to vector<2x128xf32>
    %73 = arith.mulf %72, %69 : vector<2x128xf32>
    %74 = arith.select %71, %69, %73 : vector<2x128xi1>, vector<2x128xf32>
    %75 = arith.truncf %74 : vector<2x128xf32> to vector<2x128xbf16>
    %c0_47 = arith.constant 0 : index
    %c0_48 = arith.constant 0 : index
    %76 = vector.load %arg10[%c0_47, %c0_48] : memref<128x32xbf16, #tpu.memory_space<vmem>>, vector<128x32xbf16>
    %cst_49 = arith.constant dense<0.000000e+00> : vector<2x32xf32>
    %77 = tpu.matmul %75, %76, %cst_49 {dimension_numbers = #tpu.dot_dimension_numbers<[1], [0], [0], [1], [0, 0, 1, 1], [], []>} : vector<2x128xbf16>, vector<128x32xbf16>, vector<2x32xf32> -> vector<2x32xf32>
    %c0_50 = arith.constant 0 : index
    %c0_51 = arith.constant 0 : index
    %78 = vector.load %arg11[%c0_50, %c0_51] : memref<1x32xf32, #tpu.memory_space<vmem>>, vector<1x32xf32>
    %c0_52 = arith.constant 0 : index
    %c0_53 = arith.constant 0 : index
    %79 = vector.load %arg12[%c0_52, %c0_53] : memref<1x32xf32, #tpu.memory_space<vmem>>, vector<1x32xf32>
    %80 = vector.broadcast %78 : vector<1x32xf32> to vector<2x32xf32>
    %81 = arith.mulf %77, %80 : vector<2x32xf32>
    %82 = vector.broadcast %79 : vector<1x32xf32> to vector<2x32xf32>
    %83 = arith.addf %81, %82 : vector<2x32xf32>
    %cst_54 = arith.constant 0.000000e+00 : f32
    %84 = vector.broadcast %cst_54 : f32 to vector<2x32xf32>
    %85 = arith.cmpf ogt, %83, %84 : vector<2x32xf32>
    %cst_55 = arith.constant 3.000000e-02 : f32
    %86 = vector.broadcast %cst_55 : f32 to vector<2x32xf32>
    %87 = arith.mulf %86, %83 : vector<2x32xf32>
    %88 = arith.select %85, %83, %87 : vector<2x32xi1>, vector<2x32xf32>
    %89 = arith.truncf %88 : vector<2x32xf32> to vector<2x32xbf16>
    %c0_56 = arith.constant 0 : index
    %c0_57 = arith.constant 0 : index
    %90 = vector.load %arg13[%c0_56, %c0_57] : memref<32x256xbf16, #tpu.memory_space<vmem>>, vector<32x256xbf16>
    %cst_58 = arith.constant dense<0.000000e+00> : vector<2x256xf32>
    %91 = tpu.matmul %89, %90, %cst_58 {dimension_numbers = #tpu.dot_dimension_numbers<[1], [0], [0], [1], [0, 0, 1, 1], [], []>} : vector<2x32xbf16>, vector<32x256xbf16>, vector<2x256xf32> -> vector<2x256xf32>
    %c0_59 = arith.constant 0 : index
    %c0_60 = arith.constant 0 : index
    %92 = vector.load %arg14[%c0_59, %c0_60] : memref<1x256xf32, #tpu.memory_space<vmem>>, vector<1x256xf32>
    %93 = vector.broadcast %92 : vector<1x256xf32> to vector<2x256xf32>
    %94 = arith.addf %91, %93 : vector<2x256xf32>
    %95 = arith.truncf %94 : vector<2x256xf32> to vector<2x256xbf16>
    %c0_61 = arith.constant 0 : index
    %c0_62 = arith.constant 0 : index
    %96 = vector.load %arg15[%c0_61, %c0_62] : memref<256x128xbf16, #tpu.memory_space<vmem>>, vector<256x128xbf16>
    %cst_63 = arith.constant dense<0.000000e+00> : vector<2x128xf32>
    %97 = tpu.matmul %95, %96, %cst_63 {dimension_numbers = #tpu.dot_dimension_numbers<[1], [0], [0], [1], [0, 0, 1, 1], [], []>} : vector<2x256xbf16>, vector<256x128xbf16>, vector<2x128xf32> -> vector<2x128xf32>
    %c0_64 = arith.constant 0 : index
    %c0_65 = arith.constant 0 : index
    %98 = vector.load %arg16[%c0_64, %c0_65] : memref<1x128xf32, #tpu.memory_space<vmem>>, vector<1x128xf32>
    %99 = vector.broadcast %98 : vector<1x128xf32> to vector<2x128xf32>
    %100 = arith.addf %97, %99 : vector<2x128xf32>
    %101 = arith.truncf %100 : vector<2x128xf32> to vector<2x128xbf16>
    %c0_66 = arith.constant 0 : index
    %c0_67 = arith.constant 0 : index
    %102 = vector.load %arg17[%c0_66, %c0_67] : memref<128x1xbf16, #tpu.memory_space<vmem>>, vector<128x1xbf16>
    %cst_68 = arith.constant dense<0.000000e+00> : vector<2x1xf32>
    %103 = tpu.matmul %101, %102, %cst_68 {dimension_numbers = #tpu.dot_dimension_numbers<[1], [0], [0], [1], [0, 0, 1, 1], [], []>} : vector<2x128xbf16>, vector<128x1xbf16>, vector<2x1xf32> -> vector<2x1xf32>
    %c0_69 = arith.constant 0 : index
    %c0_70 = arith.constant 0 : index
    %104 = vector.load %arg18[%c0_69, %c0_70] : memref<1x1xf32, #tpu.memory_space<vmem>>, vector<1x1xf32>
    %105 = vector.broadcast %104 : vector<1x1xf32> to vector<2x1xf32>
    %106 = arith.addf %103, %105 : vector<2x1xf32>
    %cst_71 = arith.constant dense<0xFF800000> : vector<2xf32>
    %107 = vector.multi_reduction <maximumf>, %106, %cst_71 [1] : vector<2x1xf32> to vector<2xf32>
    %108 = vector.shape_cast %107 : vector<2xf32> to vector<2x1xf32>
    %109 = arith.subf %106, %108 : vector<2x1xf32>
    %110 = math.exp %109 : vector<2x1xf32>
    %cst_72 = arith.constant dense<0.000000e+00> : vector<2xf32>
    %111 = vector.multi_reduction <add>, %110, %cst_72 [1] : vector<2x1xf32> to vector<2xf32>
    %112 = vector.shape_cast %111 : vector<2xf32> to vector<2x1xf32>
    %113 = arith.divf %110, %112 : vector<2x1xf32>
    %c0_73 = arith.constant 0 : index
    %c0_74 = arith.constant 0 : index
    %114 = vector.load %arg19[%c0_73, %c0_74] : memref<2x1xf32, #tpu.memory_space<vmem>>, vector<2x1xf32>
    tpu.vector_store %arg19[%c0_73, %c0_74], %113 {strides = array<i32>} : memref<2x1xf32, #tpu.memory_space<vmem>>, vector<2x1xf32>,
    return
  }
}

</mosaic_0001>

<llo_original>
// kernel: discriminator_forward.1
$region0: #{discriminator_forward.1}
  #allocation0 [shape = 'u32[]', space=smem, size = 0x4, offset = 0x4, fixed_abs, tag = 'smem constant byte address 0x4 - core index']
  #allocation1 [shape = 'u32[72,128]{1,0:T(1,128)}', space=vmem, size = 0x9000, scoped, tag = 'internal scratch']
  #allocation2 [shape = 'f32[1,1]{1,0:T(1,128)S(1)}', space=vmem, size = 0x200, scoped, tag = 'scoped memory for discriminator_forward.1']
  %s0 = inlined_call_operand.vmem [shape: bf16[64,1024], index: 0, kind: input, shape index: {}]
  %s1 = inlined_call_operand.vmem [shape: bf16[8,64], index: 1, kind: input, shape index: {}]
  %s2 = inlined_call_operand.vmem [shape: f32[8,1], index: 2, kind: input, shape index: {}]
  %s3 = inlined_call_operand.vmem [shape: f32[8,1], index: 3, kind: input, shape index: {}]
  %s4 = inlined_call_operand.vmem [shape: bf16[2048,512], index: 4, kind: input, shape index: {}]
  %s5 = inlined_call_operand.vmem [shape: f32[1,512], index: 5, kind: input, shape index: {}]
  %s6 = inlined_call_operand.vmem [shape: f32[1,512], index: 6, kind: input, shape index: {}]
  %s7 = inlined_call_operand.vmem [shape: bf16[512,128], index: 7, kind: input, shape index: {}]
  %s8 = inlined_call_operand.vmem [shape: f32[1,128], index: 8, kind: input, shape index: {}]
  %s9 = inlined_call_operand.vmem [shape: f32[1,128], index: 9, kind: input, shape index: {}]
  %s10 = inlined_call_operand.vmem [shape: bf16[128,32], index: 10, kind: input, shape index: {}]
  %s11 = inlined_call_operand.vmem [shape: f32[1,32], index: 11, kind: input, shape index: {}]
  %s12 = inlined_call_operand.vmem [shape: f32[1,32], index: 12, kind: input, shape index: {}]
  %s13 = inlined_call_operand.vmem [shape: bf16[32,256], index: 13, kind: input, shape index: {}]
  %s14 = inlined_call_operand.vmem [shape: f32[1,256], index: 14, kind: input, shape index: {}]
  %s15 = inlined_call_operand.vmem [shape: bf16[256,128], index: 15, kind: input, shape index: {}]
  %s16 = inlined_call_operand.vmem [shape: f32[1,128], index: 16, kind: input, shape index: {}]
  %s17 = inlined_call_operand.vmem [shape: bf16[128,1], index: 17, kind: input, shape index: {}]
  %s18 = inlined_call_operand.<no memory space> [shape: f32[1,1], index: 18, kind: input, shape index: {}]
  %s19 = inlined_call_operand.vmem [shape: f32[2,1], index: 19, kind: output, shape index: {}]
  %s20 = sld [smem:[#allocation0]]
  $region86: #{discriminator_forward.1} parent=0
    _
  %s22 = ssub.s32 1, %s20
  %s23 = scalar_select 0, %s22, %s20
  %v24 = vstv %s18
  %25 = vst [vmem:[#allocation2] sm:$0x1] %v24
  // Predicated region
  $region2: #{discriminator_forward.1} parent=0 // pred_check
    _
  $region3: #{discriminator_forward.1} parent=0 // pred_check_branch
    %27 = sbr.rel (0) target = $region5
  $region4: #{discriminator_forward.1} parent=0 // pred_region
    _
  $region5: #{discriminator_forward.1} parent=0 // pred_fallthru
    _
  // Predicated region
  $region6: #{discriminator_forward.1} parent=0 // pred_check
    _
  $region7: #{discriminator_forward.1} parent=0 // pred_check_branch
    %29 = sbr.rel (0) target = $region9
  $region8: #{discriminator_forward.1} parent=0 // pred_region
    _
  $region9: #{discriminator_forward.1} parent=0 // pred_fallthru
    _
  // Predicated region
  $region10: #{discriminator_forward.1} parent=0 // pred_check
    _
  $region11: #{discriminator_forward.1} parent=0 // pred_check_branch
    %31 = sbr.rel (0) target = $region13
  $region12: #{discriminator_forward.1} parent=0 // pred_region
    _
  $region13: #{discriminator_forward.1} parent=0 // pred_fallthru
    _
  // Predicated region
  $region14: #{discriminator_forward.1} parent=0 // pred_check
    _
  $region15: #{discriminator_forward.1} parent=0 // pred_check_branch
    %33 = sbr.rel (0) target = $region17
  $region16: #{discriminator_forward.1} parent=0 // pred_region
    _
  $region17: #{discriminator_forward.1} parent=0 // pred_fallthru
    _
  // Predicated region
  $region18: #{discriminator_forward.1} parent=0 // pred_check
    _
  $region19: #{discriminator_forward.1} parent=0 // pred_check_branch
    %35 = sbr.rel (0) target = $region21
  $region20: #{discriminator_forward.1} parent=0 // pred_region
    _
  $region21: #{discriminator_forward.1} parent=0 // pred_fallthru
    _
  // Predicated region
  $region22: #{discriminator_forward.1} parent=0 // pred_check
    _
  $region23: #{discriminator_forward.1} parent=0 // pred_check_branch
    %37 = sbr.rel (0) target = $region25
  $region24: #{discriminator_forward.1} parent=0 // pred_region
    _
  $region25: #{discriminator_forward.1} parent=0 // pred_fallthru
    _
  // Predicated region
  $region26: #{discriminator_forward.1} parent=0 // pred_check
    _
  $region27: #{discriminator_forward.1} parent=0 // pred_check_branch
    %39 = sbr.rel (0) target = $region29
  $region28: #{discriminator_forward.1} parent=0 // pred_region
    _
  $region29: #{discriminator_forward.1} parent=0 // pred_fallthru
    _
  // Predicated region
  $region30: #{discriminator_forward.1} parent=0 // pred_check
    _
  $region31: #{discriminator_forward.1} parent=0 // pred_check_branch
    %41 = sbr.rel (0) target = $region33
  $region32: #{discriminator_forward.1} parent=0 // pred_region
    _
  $region33: #{discriminator_forward.1} parent=0 // pred_fallthru
    _
  // Predicated region
  $region34: #{discriminator_forward.1} parent=0 // pred_check
    _
  $region35: #{discriminator_forward.1} parent=0 // pred_check_branch
    %43 = sbr.rel (0) target = $region37
  $region36: #{discriminator_forward.1} parent=0 // pred_region
    _
  $region37: #{discriminator_forward.1} parent=0 // pred_fallthru
    _
  // Predicated region
  $region38: #{discriminator_forward.1} parent=0 // pred_check
    _
  $region39: #{discriminator_forward.1} parent=0 // pred_check_branch
    %45 = sbr.rel (0) target = $region41
  $region40: #{discriminator_forward.1} parent=0 // pred_region
    _
  $region41: #{discriminator_forward.1} parent=0 // pred_fallthru
    _
  // Predicated region
  $region42: #{discriminator_forward.1} parent=0 // pred_check
    _
  $region43: #{discriminator_forward.1} parent=0 // pred_check_branch
    %47 = sbr.rel (0) target = $region45
  $region44: #{discriminator_forward.1} parent=0 // pred_region
    _
  $region45: #{discriminator_forward.1} parent=0 // pred_fallthru
    _
  // Predicated region
  $region46: #{discriminator_forward.1} parent=0 // pred_check
    _
  $region47: #{discriminator_forward.1} parent=0 // pred_check_branch
    %49 = sbr.rel (0) target = $region49
  $region48: #{discriminator_forward.1} parent=0 // pred_region
    _
  $region49: #{discriminator_forward.1} parent=0 // pred_fallthru
    _
  // Predicated region
  $region50: #{discriminator_forward.1} parent=0 // pred_check
    _
  $region51: #{discriminator_forward.1} parent=0 // pred_check_branch
    %51 = sbr.rel (0) target = $region53
  $region52: #{discriminator_forward.1} parent=0 // pred_region
    _
  $region53: #{discriminator_forward.1} parent=0 // pred_fallthru
    _
  // Predicated region
  $region54: #{discriminator_forward.1} parent=0 // pred_check
    _
  $region55: #{discriminator_forward.1} parent=0 // pred_check_branch
    %53 = sbr.rel (0) target = $region57
  $region56: #{discriminator_forward.1} parent=0 // pred_region
    _
  $region57: #{discriminator_forward.1} parent=0 // pred_fallthru
    _
  // Predicated region
  $region58: #{discriminator_forward.1} parent=0 // pred_check
    _
  $region59: #{discriminator_forward.1} parent=0 // pred_check_branch
    %55 = sbr.rel (0) target = $region61
  $region60: #{discriminator_forward.1} parent=0 // pred_region
    _
  $region61: #{discriminator_forward.1} parent=0 // pred_fallthru
    _
  // Predicated region
  $region62: #{discriminator_forward.1} parent=0 // pred_check
    _
  $region63: #{discriminator_forward.1} parent=0 // pred_check_branch
    %57 = sbr.rel (0) target = $region65
  $region64: #{discriminator_forward.1} parent=0 // pred_region
    _
  $region65: #{discriminator_forward.1} parent=0 // pred_fallthru
    _
  // Predicated region
  $region66: #{discriminator_forward.1} parent=0 // pred_check
    _
  $region67: #{discriminator_forward.1} parent=0 // pred_check_branch
    %59 = sbr.rel (0) target = $region69
  $region68: #{discriminator_forward.1} parent=0 // pred_region
    _
  $region69: #{discriminator_forward.1} parent=0 // pred_fallthru
    _
  // Predicated region
  $region70: #{discriminator_forward.1} parent=0 // pred_check
    _
  $region71: #{discriminator_forward.1} parent=0 // pred_check_branch
    %61 = sbr.rel (0) target = $region73
  $region72: #{discriminator_forward.1} parent=0 // pred_region
    _
  $region73: #{discriminator_forward.1} parent=0 // pred_fallthru
    _
  // Predicated region
  $region74: #{discriminator_forward.1} parent=0 // pred_check
    _
  $region75: #{discriminator_forward.1} parent=0 // pred_check_branch
    %63 = sbr.rel (0) target = $region77
  $region76: #{discriminator_forward.1} parent=0 // pred_region
    _
  $region77: #{discriminator_forward.1} parent=0 // pred_fallthru
    _
  %v65 = vld [vmem:[%s1] sm:$0xf]
  %v66 = vld [vmem:[%s0] sm:$0xff]
  %v67 = vld [vmem:[%s0 + $0x8] sm:$0xff]
  %v68 = vld [vmem:[%s0 + $0x10] sm:$0xff]
  %v69 = vld [vmem:[%s0 + $0x18] sm:$0xff]
  %v70 = vld [vmem:[%s0 + $0x20] sm:$0xff]
  %v71 = vld [vmem:[%s0 + $0x28] sm:$0xff]
  %v72 = vld [vmem:[%s0 + $0x30] sm:$0xff]
  %v73 = vld [vmem:[%s0 + $0x38] sm:$0xff]
  %v74 = vld [vmem:[%s0 + $0x40] sm:$0xff]
  %v75 = vld [vmem:[%s0 + $0x48] sm:$0xff]
  %v76 = vld [vmem:[%s0 + $0x50] sm:$0xff]
  %v77 = vld [vmem:[%s0 + $0x58] sm:$0xff]
  %v78 = vld [vmem:[%s0 + $0x60] sm:$0xff]
  %v79 = vld [vmem:[%s0 + $0x68] sm:$0xff]
  %v80 = vld [vmem:[%s0 + $0x70] sm:$0xff]
  %v81 = vld [vmem:[%s0 + $0x78] sm:$0xff]
  %v82 = vld [vmem:[%s0 + $0x80] sm:$0xff]
  %v83 = vld [vmem:[%s0 + $0x88] sm:$0xff]
  %v84 = vld [vmem:[%s0 + $0x90] sm:$0xff]
  %v85 = vld [vmem:[%s0 + $0x98] sm:$0xff]
  %v86 = vld [vmem:[%s0 + $0xa0] sm:$0xff]
  %v87 = vld [vmem:[%s0 + $0xa8] sm:$0xff]
  %v88 = vld [vmem:[%s0 + $0xb0] sm:$0xff]
  %v89 = vld [vmem:[%s0 + $0xb8] sm:$0xff]
  %v90 = vld [vmem:[%s0 + $0xc0] sm:$0xff]
  %v91 = vld [vmem:[%s0 + $0xc8] sm:$0xff]
  %v92 = vld [vmem:[%s0 + $0xd0] sm:$0xff]
  %v93 = vld [vmem:[%s0 + $0xd8] sm:$0xff]
  %v94 = vld [vmem:[%s0 + $0xe0] sm:$0xff]
  %v95 = vld [vmem:[%s0 + $0xe8] sm:$0xff]
  %v96 = vld [vmem:[%s0 + $0xf0] sm:$0xff]
  %v97 = vld [vmem:[%s0 + $0xf8] sm:$0xff]
  %v130 = vunpack.c.l.b16 %v66
  %v131 = vunpack.c.h.b16 %v66
  %v132 = vunpack.c.l.b16 %v67
  %v133 = vunpack.c.h.b16 %v67
  %v134 = vunpack.c.l.b16 %v68
  %v135 = vunpack.c.h.b16 %v68
  %v136 = vunpack.c.l.b16 %v69
  %v137 = vunpack.c.h.b16 %v69
  %v138 = vunpack.c.l.b16 %v70
  %v139 = vunpack.c.h.b16 %v70
  %v140 = vunpack.c.l.b16 %v71
  %v141 = vunpack.c.h.b16 %v71
  %v142 = vunpack.c.l.b16 %v72
  %v143 = vunpack.c.h.b16 %v72
  %v144 = vunpack.c.l.b16 %v73
  %v145 = vunpack.c.h.b16 %v73
  %v146 = vunpack.c.l.b16 %v74
  %v147 = vunpack.c.h.b16 %v74
  %v148 = vunpack.c.l.b16 %v75
  %v149 = vunpack.c.h.b16 %v75
  %v150 = vunpack.c.l.b16 %v76
  %v151 = vunpack.c.h.b16 %v76
  %v152 = vunpack.c.l.b16 %v77
  %v153 = vunpack.c.h.b16 %v77
  %v154 = vunpack.c.l.b16 %v78
  %v155 = vunpack.c.h.b16 %v78
  %v156 = vunpack.c.l.b16 %v79
  %v157 = vunpack.c.h.b16 %v79
  %v158 = vunpack.c.l.b16 %v80
  %v159 = vunpack.c.h.b16 %v80
  %v160 = vunpack.c.l.b16 %v81
  %v161 = vunpack.c.h.b16 %v81
  %v162 = vunpack.c.l.b16 %v82
  %v163 = vunpack.c.h.b16 %v82
  %v164 = vunpack.c.l.b16 %v83
  %v165 = vunpack.c.h.b16 %v83
  %v166 = vunpack.c.l.b16 %v84
  %v167 = vunpack.c.h.b16 %v84
  %v168 = vunpack.c.l.b16 %v85
  %v169 = vunpack.c.h.b16 %v85
  %v170 = vunpack.c.l.b16 %v86
  %v171 = vunpack.c.h.b16 %v86
  %v172 = vunpack.c.l.b16 %v87
  %v173 = vunpack.c.h.b16 %v87
  %v174 = vunpack.c.l.b16 %v88
  %v175 = vunpack.c.h.b16 %v88
  %v176 = vunpack.c.l.b16 %v89
  %v177 = vunpack.c.h.b16 %v89
  %v178 = vunpack.c.l.b16 %v90
  %v179 = vunpack.c.h.b16 %v90
  %v180 = vunpack.c.l.b16 %v91
  %v181 = vunpack.c.h.b16 %v91
  %v182 = vunpack.c.l.b16 %v92
  %v183 = vunpack.c.h.b16 %v92
  %v184 = vunpack.c.l.b16 %v93
  %v185 = vunpack.c.h.b16 %v93
  %v186 = vunpack.c.l.b16 %v94
  %v187 = vunpack.c.h.b16 %v94
  %v188 = vunpack.c.l.b16 %v95
  %v189 = vunpack.c.h.b16 %v95
  %v190 = vunpack.c.l.b16 %v96
  %v191 = vunpack.c.h.b16 %v96
  %v192 = vunpack.c.l.b16 %v97
  %v193 = vunpack.c.h.b16 %v97
  %v194 = vpack.c.b16 %v138, %v130
  %v195 = vpack.c.b16 %v139, %v131
  %v196 = vpack.c.b16 %v140, %v132
  %v197 = vpack.c.b16 %v141, %v133
  %v198 = vpack.c.b16 %v142, %v134
  %v199 = vpack.c.b16 %v143, %v135
  %v200 = vpack.c.b16 %v144, %v136
  %v201 = vpack.c.b16 %v145, %v137
  %v202 = vpack.c.b16 %v154, %v146
  %v203 = vpack.c.b16 %v155, %v147
  %v204 = vpack.c.b16 %v156, %v148
  %v205 = vpack.c.b16 %v157, %v149
  %v206 = vpack.c.b16 %v158, %v150
  %v207 = vpack.c.b16 %v159, %v151
  %v208 = vpack.c.b16 %v160, %v152
  %v209 = vpack.c.b16 %v161, %v153
  %v210 = vpack.c.b16 %v170, %v162
  %v211 = vpack.c.b16 %v171, %v163
  %v212 = vpack.c.b16 %v172, %v164
  %v213 = vpack.c.b16 %v173, %v165
  %v214 = vpack.c.b16 %v174, %v166
  %v215 = vpack.c.b16 %v175, %v167
  %v216 = vpack.c.b16 %v176, %v168
  %v217 = vpack.c.b16 %v177, %v169
  %v218 = vpack.c.b16 %v186, %v178
  %v219 = vpack.c.b16 %v187, %v179
  %v220 = vpack.c.b16 %v188, %v180
  %v221 = vpack.c.b16 %v189, %v181
  %v222 = vpack.c.b16 %v190, %v182
  %v223 = vpack.c.b16 %v191, %v183
  %v224 = vpack.c.b16 %v192, %v184
  %v225 = vpack.c.b16 %v193, %v185
  %vm258 = vcmask 523264
  %v260 = vsel %vm258, %v65, 0
  %262 = vmatpush.bf16.msra.mxu0 0
  %263 = vmatpush.bf16.msra.mxu0 0
  %264 = vmatpush.bf16.msra.mxu0 0
  %265 = vmatpush.bf16.msra.mxu0 0
  %266 = vmatpush.bf16.msra.mxu0 %v218
  %267 = vmatpush.bf16.msra.mxu0 %v210
  %268 = vmatpush.bf16.msra.mxu0 %v202
  %269 = vmatpush.bf16.msra.mxu0 %v194
  %270 = vmatmul.bf16.gmra.mxu0 %v260
  %v271 = vpop.f32.mrf.mxu0
  %v272 = vadd.f32 0.0, %v271
  %v273 = vpop.f32.mrf.mxu0
  %274 = vdwg.mxu0
  %275 = vmatpush.bf16.msra.mxu0 0
  %276 = vmatpush.bf16.msra.mxu0 0
  %277 = vmatpush.bf16.msra.mxu0 0
  %278 = vmatpush.bf16.msra.mxu0 0
  %279 = vmatpush.bf16.msra.mxu0 %v219
  %280 = vmatpush.bf16.msra.mxu0 %v211
  %281 = vmatpush.bf16.msra.mxu0 %v203
  %282 = vmatpush.bf16.msra.mxu0 %v195
  %283 = vmatmul.bf16.gmra.mxu0 %v260
  %v284 = vpop.f32.mrf.mxu0
  %v285 = vadd.f32 0.0, %v284
  %v286 = vpop.f32.mrf.mxu0
  %287 = vdwg.mxu0
  %288 = vmatpush.bf16.msra.mxu0 0
  %289 = vmatpush.bf16.msra.mxu0 0
  %290 = vmatpush.bf16.msra.mxu0 0
  %291 = vmatpush.bf16.msra.mxu0 0
  %292 = vmatpush.bf16.msra.mxu0 %v220
  %293 = vmatpush.bf16.msra.mxu0 %v212
  %294 = vmatpush.bf16.msra.mxu0 %v204
  %295 = vmatpush.bf16.msra.mxu0 %v196
  %296 = vmatmul.bf16.gmra.mxu0 %v260
  %v297 = vpop.f32.mrf.mxu0
  %v298 = vadd.f32 0.0, %v297
  %v299 = vpop.f32.mrf.mxu0
  %300 = vdwg.mxu0
  %301 = vmatpush.bf16.msra.mxu0 0
  %302 = vmatpush.bf16.msra.mxu0 0
  %303 = vmatpush.bf16.msra.mxu0 0
  %304 = vmatpush.bf16.msra.mxu0 0
  %305 = vmatpush.bf16.msra.mxu0 %v221
  %306 = vmatpush.bf16.msra.mxu0 %v213
  %307 = vmatpush.bf16.msra.mxu0 %v205
  %308 = vmatpush.bf16.msra.mxu0 %v197
  %309 = vmatmul.bf16.gmra.mxu0 %v260
  %v310 = vpop.f32.mrf.mxu0
  %v311 = vadd.f32 0.0, %v310
  %v312 = vpop.f32.mrf.mxu0
  %313 = vdwg.mxu0
  %314 = vmatpush.bf16.msra.mxu0 0
  %315 = vmatpush.bf16.msra.mxu0 0
  %316 = vmatpush.bf16.msra.mxu0 0
  %317 = vmatpush.bf16.msra.mxu0 0
  %318 = vmatpush.bf16.msra.mxu0 %v222
  %319 = vmatpush.bf16.msra.mxu0 %v214
  %320 = vmatpush.bf16.msra.mxu0 %v206
  %321 = vmatpush.bf16.msra.mxu0 %v198
  %322 = vmatmul.bf16.gmra.mxu0 %v260
  %v323 = vpop.f32.mrf.mxu0
  %v324 = vadd.f32 0.0, %v323
  %v325 = vpop.f32.mrf.mxu0
  %326 = vdwg.mxu0
  %327 = vmatpush.bf16.msra.mxu0 0
  %328 = vmatpush.bf16.msra.mxu0 0
  %329 = vmatpush.bf16.msra.mxu0 0
  %330 = vmatpush.bf16.msra.mxu0 0
  %331 = vmatpush.bf16.msra.mxu0 %v223
  %332 = vmatpush.bf16.msra.mxu0 %v215
  %333 = vmatpush.bf16.msra.mxu0 %v207
  %334 = vmatpush.bf16.msra.mxu0 %v199
  %335 = vmatmul.bf16.gmra.mxu0 %v260
  %v336 = vpop.f32.mrf.mxu0
  %v337 = vadd.f32 0.0, %v336
  %v338 = vpop.f32.mrf.mxu0
  %339 = vdwg.mxu0
  %340 = vmatpush.bf16.msra.mxu0 0
  %341 = vmatpush.bf16.msra.mxu0 0
  %342 = vmatpush.bf16.msra.mxu0 0
  %343 = vmatpush.bf16.msra.mxu0 0
  %344 = vmatpush.bf16.msra.mxu0 %v224
  %345 = vmatpush.bf16.msra.mxu0 %v216
  %346 = vmatpush.bf16.msra.mxu0 %v208
  %347 = vmatpush.bf16.msra.mxu0 %v200
  %348 = vmatmul.bf16.gmra.mxu0 %v260
  %v349 = vpop.f32.mrf.mxu0
  %v350 = vadd.f32 0.0, %v349
  %v351 = vpop.f32.mrf.mxu0
  %352 = vdwg.mxu0
  %353 = vmatpush.bf16.msra.mxu0 0
  %354 = vmatpush.bf16.msra.mxu0 0
  %355 = vmatpush.bf16.msra.mxu0 0
  %356 = vmatpush.bf16.msra.mxu0 0
  %357 = vmatpush.bf16.msra.mxu0 %v225
  %358 = vmatpush.bf16.msra.mxu0 %v217
  %359 = vmatpush.bf16.msra.mxu0 %v209
  %360 = vmatpush.bf16.msra.mxu0 %v201
  %361 = vmatmul.bf16.gmra.mxu0 %v260
  %v362 = vpop.f32.mrf.mxu0
  %v363 = vadd.f32 0.0, %v362
  %v364 = vpop.f32.mrf.mxu0
  %365 = vdwg.mxu0
  %v366 = vld [vmem:[%s2] sm:$0xff]
  %v367 = vld [vmem:[%s3] sm:$0xff]
  %369 = vset.pattern.permute.xlu0 0
  %370 = vperm.xlu0 %369, %v366
  %v371 = vpop.permute.xlu0 %370
  %v373 = vmul.f32 %v272, %v371
  %v374 = vmul.f32 %v285, %v371
  %v375 = vmul.f32 %v298, %v371
  %v376 = vmul.f32 %v311, %v371
  %v377 = vmul.f32 %v324, %v371
  %v378 = vmul.f32 %v337, %v371
  %v379 = vmul.f32 %v350, %v371
  %v380 = vmul.f32 %v363, %v371
  %382 = vset.pattern.permute.xlu0 0
  %383 = vperm.xlu0 %382, %v367
  %v384 = vpop.permute.xlu0 %383
  %v386 = vadd.f32 %v373, %v384
  %v387 = vadd.f32 %v374, %v384
  %v388 = vadd.f32 %v375, %v384
  %v389 = vadd.f32 %v376, %v384
  %v390 = vadd.f32 %v377, %v384
  %v391 = vadd.f32 %v378, %v384
  %v392 = vadd.f32 %v379, %v384
  %v393 = vadd.f32 %v380, %v384
  %vm394 = vcmp.gt.f32.partialorder %v386, 0.0
  %vm395 = vcmp.gt.f32.partialorder %v387, 0.0
  %vm396 = vcmp.gt.f32.partialorder %v388, 0.0
  %vm397 = vcmp.gt.f32.partialorder %v389, 0.0
  %vm398 = vcmp.gt.f32.partialorder %v390, 0.0
  %vm399 = vcmp.gt.f32.partialorder %v391, 0.0
  %vm400 = vcmp.gt.f32.partialorder %v392, 0.0
  %vm401 = vcmp.gt.f32.partialorder %v393, 0.0
  %v402 = vmul.f32 %v386, 0.03
  %v403 = vmul.f32 %v387, 0.03
  %v404 = vmul.f32 %v388, 0.03
  %v405 = vmul.f32 %v389, 0.03
  %v406 = vmul.f32 %v390, 0.03
  %v407 = vmul.f32 %v391, 0.03
  %v408 = vmul.f32 %v392, 0.03
  %v409 = vmul.f32 %v393, 0.03
  %v410 = vsel %vm394, %v386, %v402
  %v411 = vsel %vm395, %v387, %v403
  %v412 = vsel %vm396, %v388, %v404
  %v413 = vsel %vm397, %v389, %v405
  %v414 = vsel %vm398, %v390, %v406
  %v415 = vsel %vm399, %v391, %v407
  %v416 = vsel %vm400, %v392, %v408
  %v417 = vsel %vm401, %v393, %v409
  %v418 = vpack.c.bf16 %v411, %v410
  %v419 = vpack.c.bf16 %v413, %v412
  %v420 = vpack.c.bf16 %v415, %v414
  %v421 = vpack.c.bf16 %v417, %v416
  %v422 = vld [vmem:[%s4] sm:$0xff]
  %v423 = vld [vmem:[%s4 + $0x8] sm:$0xff]
  %v424 = vld [vmem:[%s4 + $0x10] sm:$0xff]
  %v425 = vld [vmem:[%s4 + $0x18] sm:$0xff]
  %v426 = vld [vmem:[%s4 + $0x20] sm:$0xff]
  %v427 = vld [vmem:[%s4 + $0x28] sm:$0xff]
  %v428 = vld [vmem:[%s4 + $0x30] sm:$0xff]
  %v429 = vld [vmem:[%s4 + $0x38] sm:$0xff]
  %v430 = vld [vmem:[%s4 + $0x40] sm:$0xff]
  %v431 = vld [vmem:[%s4 + $0x48] sm:$0xff]
  %v432 = vld [vmem:[%s4 + $0x50] sm:$0xff]
  %v433 = vld [vmem:[%s4 + $0x58] sm:$0xff]
  %v434 = vld [vmem:[%s4 + $0x60] sm:$0xff]
  %v435 = vld [vmem:[%s4 + $0x68] sm:$0xff]
  %v436 = vld [vmem:[%s4 + $0x70] sm:$0xff]
  %v437 = vld [vmem:[%s4 + $0x78] sm:$0xff]
  %v438 = vld [vmem:[%s4 + $0x80] sm:$0xff]
  %v439 = vld [vmem:[%s4 + $0x88] sm:$0xff]
  %v440 = vld [vmem:[%s4 + $0x90] sm:$0xff]
  %v441 = vld [vmem:[%s4 + $0x98] sm:$0xff]
  %v442 = vld [vmem:[%s4 + $0xa0] sm:$0xff]
  %v443 = vld [vmem:[%s4 + $0xa8] sm:$0xff]
  %v444 = vld [vmem:[%s4 + $0xb0] sm:$0xff]
  %v445 = vld [vmem:[%s4 + $0xb8] sm:$0xff]
  %v446 = vld [vmem:[%s4 + $0xc0] sm:$0xff]
  %v447 = vld [vmem:[%s4 + $0xc8] sm:$0xff]
  %v448 = vld [vmem:[%s4 + $0xd0] sm:$0xff]
  %v449 = vld [vmem:[%s4 + $0xd8] sm:$0xff]
  %v450 = vld [vmem:[%s4 + $0xe0] sm:$0xff]
  %v451 = vld [vmem:[%s4 + $0xe8] sm:$0xff]
  %v452 = vld [vmem:[%s4 + $0xf0] sm:$0xff]
  %v453 = vld [vmem:[%s4 + $0xf8] sm:$0xff]
  %v454 = vld [vmem:[%s4 + $0x100] sm:$0xff]
  %v455 = vld [vmem:[%s4 + $0x108] sm:$0xff]
  %v456 = vld [vmem:[%s4 + $0x110] sm:$0xff]
  %v457 = vld [vmem:[%s4 + $0x118] sm:$0xff]
  %v458 = vld [vmem:[%s4 + $0x120] sm:$0xff]
  %v459 = vld [vmem:[%s4 + $0x128] sm:$0xff]
  %v460 = vld [vmem:[%s4 + $0x130] sm:$0xff]
  %v461 = vld [vmem:[%s4 + $0x138] sm:$0xff]
  %v462 = vld [vmem:[%s4 + $0x140] sm:$0xff]
  %v463 = vld [vmem:[%s4 + $0x148] sm:$0xff]
  %v464 = vld [vmem:[%s4 + $0x150] sm:$0xff]
  %v465 = vld [vmem:[%s4 + $0x158] sm:$0xff]
  %v466 = vld [vmem:[%s4 + $0x160] sm:$0xff]
  %v467 = vld [vmem:[%s4 + $0x168] sm:$0xff]
  %v468 = vld [vmem:[%s4 + $0x170] sm:$0xff]
  %v469 = vld [vmem:[%s4 + $0x178] sm:$0xff]
  %v470 = vld [vmem:[%s4 + $0x180] sm:$0xff]
  %v471 = vld [vmem:[%s4 + $0x188] sm:$0xff]
  %v472 = vld [vmem:[%s4 + $0x190] sm:$0xff]
  %v473 = vld [vmem:[%s4 + $0x198] sm:$0xff]
  %v474 = vld [vmem:[%s4 + $0x1a0] sm:$0xff]
  %v475 = vld [vmem:[%s4 + $0x1a8] sm:$0xff]
  %v476 = vld [vmem:[%s4 + $0x1b0] sm:$0xff]
  %v477 = vld [vmem:[%s4 + $0x1b8] sm:$0xff]
  %v478 = vld [vmem:[%s4 + $0x1c0] sm:$0xff]
  %v479 = vld [vmem:[%s4 + $0x1c8] sm:$0xff]
  %v480 = vld [vmem:[%s4 + $0x1d0] sm:$0xff]
  %v481 = vld [vmem:[%s4 + $0x1d8] sm:$0xff]
  %v482 = vld [vmem:[%s4 + $0x1e0] sm:$0xff]
  %v483 = vld [vmem:[%s4 + $0x1e8] sm:$0xff]
  %v484 = vld [vmem:[%s4 + $0x1f0] sm:$0xff]
  %v485 = vld [vmem:[%s4 + $0x1f8] sm:$0xff]
  %v486 = vld [vmem:[%s4 + $0x200] sm:$0xff]
  %v487 = vld [vmem:[%s4 + $0x208] sm:$0xff]
  %v488 = vld [vmem:[%s4 + $0x210] sm:$0xff]
  %v489 = vld [vmem:[%s4 + $0x218] sm:$0xff]
  %v490 = vld [vmem:[%s4 + $0x220] sm:$0xff]
  %v491 = vld [vmem:[%s4 + $0x228] sm:$0xff]
  %v492 = vld [vmem:[%s4 + $0x230] sm:$0xff]
  %v493 = vld [vmem:[%s4 + $0x238] sm:$0xff]
  %v494 = vld [vmem:[%s4 + $0x240] sm:$0xff]
  %v495 = vld [vmem:[%s4 + $0x248] sm:$0xff]
  %v496 = vld [vmem:[%s4 + $0x250] sm:$0xff]
  %v497 = vld [vmem:[%s4 + $0x258] sm:$0xff]
  %v498 = vld [vmem:[%s4 + $0x260] sm:$0xff]
  %v499 = vld [vmem:[%s4 + $0x268] sm:$0xff]
  %v500 = vld [vmem:[%s4 + $0x270] sm:$0xff]
  %v501 = vld [vmem:[%s4 + $0x278] sm:$0xff]
  %v502 = vld [vmem:[%s4 + $0x280] sm:$0xff]
  %v503 = vld [vmem:[%s4 + $0x288] sm:$0xff]
  %v504 = vld [vmem:[%s4 + $0x290] sm:$0xff]
  %v505 = vld [vmem:[%s4 + $0x298] sm:$0xff]
  %v506 = vld [vmem:[%s4 + $0x2a0] sm:$0xff]
  %v507 = vld [vmem:[%s4 + $0x2a8] sm:$0xff]
  %v508 = vld [vmem:[%s4 + $0x2b0] sm:$0xff]
  %v509 = vld [vmem:[%s4 + $0x2b8] sm:$0xff]
  %v510 = vld [vmem:[%s4 + $0x2c0] sm:$0xff]
  %v511 = vld [vmem:[%s4 + $0x2c8] sm:$0xff]
  %v512 = vld [vmem:[%s4 + $0x2d0] sm:$0xff]
  %v513 = vld [vmem:[%s4 + $0x2d8] sm:$0xff]
  %v514 = vld [vmem:[%s4 + $0x2e0] sm:$0xff]
  %v515 = vld [vmem:[%s4 + $0x2e8] sm:$0xff]
  %v516 = vld [vmem:[%s4 + $0x2f0] sm:$0xff]
  %v517 = vld [vmem:[%s4 + $0x2f8] sm:$0xff]
  %v518 = vld [vmem:[%s4 + $0x300] sm:$0xff]
  %v519 = vld [vmem:[%s4 + $0x308] sm:$0xff]
  %v520 = vld [vmem:[%s4 + $0x310] sm:$0xff]
  %v521 = vld [vmem:[%s4 + $0x318] sm:$0xff]
  %v522 = vld [vmem:[%s4 + $0x320] sm:$0xff]
  %v523 = vld [vmem:[%s4 + $0x328] sm:$0xff]
  %v524 = vld [vmem:[%s4 + $0x330] sm:$0xff]
  %v525 = vld [vmem:[%s4 + $0x338] sm:$0xff]
  %v526 = vld [vmem:[%s4 + $0x340] sm:$0xff]
  %v527 = vld [vmem:[%s4 + $0x348] sm:$0xff]
  %v528 = vld [vmem:[%s4 + $0x350] sm:$0xff]
  %v529 = vld [vmem:[%s4 + $0x358] sm:$0xff]
  %v530 = vld [vmem:[%s4 + $0x360] sm:$0xff]
  %v531 = vld [vmem:[%s4 + $0x368] sm:$0xff]
  %v532 = vld [vmem:[%s4 + $0x370] sm:$0xff]
  %v533 = vld [vmem:[%s4 + $0x378] sm:$0xff]
  %v534 = vld [vmem:[%s4 + $0x380] sm:$0xff]
  %v535 = vld [vmem:[%s4 + $0x388] sm:$0xff]
  %v536 = vld [vmem:[%s4 + $0x390] sm:$0xff]
  %v537 = vld [vmem:[%s4 + $0x398] sm:$0xff]
  %v538 = vld [vmem:[%s4 + $0x3a0] sm:$0xff]
  %v539 = vld [vmem:[%s4 + $0x3a8] sm:$0xff]
  %v540 = vld [vmem:[%s4 + $0x3b0] sm:$0xff]
  %v541 = vld [vmem:[%s4 + $0x3b8] sm:$0xff]
  %v542 = vld [vmem:[%s4 + $0x3c0] sm:$0xff]
  %v543 = vld [vmem:[%s4 + $0x3c8] sm:$0xff]
  %v544 = vld [vmem:[%s4 + $0x3d0] sm:$0xff]
  %v545 = vld [vmem:[%s4 + $0x3d8] sm:$0xff]
  %v546 = vld [vmem:[%s4 + $0x3e0] sm:$0xff]
  %v547 = vld [vmem:[%s4 + $0x3e8] sm:$0xff]
  %v548 = vld [vmem:[%s4 + $0x3f0] sm:$0xff]
  %v549 = vld [vmem:[%s4 + $0x3f8] sm:$0xff]
  %v550 = vld [vmem:[%s4 + $0x400] sm:$0xff]
  %v551 = vld [vmem:[%s4 + $0x408] sm:$0xff]
  %v552 = vld [vmem:[%s4 + $0x410] sm:$0xff]
  %v553 = vld [vmem:[%s4 + $0x418] sm:$0xff]
  %v554 = vld [vmem:[%s4 + $0x420] sm:$0xff]
  %v555 = vld [vmem:[%s4 + $0x428] sm:$0xff]
  %v556 = vld [vmem:[%s4 + $0x430] sm:$0xff]
  %v557 = vld [vmem:[%s4 + $0x438] sm:$0xff]
  %v558 = vld [vmem:[%s4 + $0x440] sm:$0xff]
  %v559 = vld [vmem:[%s4 + $0x448] sm:$0xff]
  %v560 = vld [vmem:[%s4 + $0x450] sm:$0xff]
  %v561 = vld [vmem:[%s4 + $0x458] sm:$0xff]
  %v562 = vld [vmem:[%s4 + $0x460] sm:$0xff]
  %v563 = vld [vmem:[%s4 + $0x468] sm:$0xff]
  %v564 = vld [vmem:[%s4 + $0x470] sm:$0xff]
  %v565 = vld [vmem:[%s4 + $0x478] sm:$0xff]
  %v566 = vld [vmem:[%s4 + $0x480] sm:$0xff]
  %v567 = vld [vmem:[%s4 + $0x488] sm:$0xff]
  %v568 = vld [vmem:[%s4 + $0x490] sm:$0xff]
  %v569 = vld [vmem:[%s4 + $0x498] sm:$0xff]
  %v570 = vld [vmem:[%s4 + $0x4a0] sm:$0xff]
  %v571 = vld [vmem:[%s4 + $0x4a8] sm:$0xff]
  %v572 = vld [vmem:[%s4 + $0x4b0] sm:$0xff]
  %v573 = vld [vmem:[%s4 + $0x4b8] sm:$0xff]
  %v574 = vld [vmem:[%s4 + $0x4c0] sm:$0xff]
  %v575 = vld [vmem:[%s4 + $0x4c8] sm:$0xff]
  %v576 = vld [vmem:[%s4 + $0x4d0] sm:$0xff]
  %v577 = vld [vmem:[%s4 + $0x4d8] sm:$0xff]
  %v578 = vld [vmem:[%s4 + $0x4e0] sm:$0xff]
  %v579 = vld [vmem:[%s4 + $0x4e8] sm:$0xff]
  %v580 = vld [vmem:[%s4 + $0x4f0] sm:$0xff]
  %v581 = vld [vmem:[%s4 + $0x4f8] sm:$0xff]
  %v582 = vld [vmem:[%s4 + $0x500] sm:$0xff]
  %v583 = vld [vmem:[%s4 + $0x508] sm:$0xff]
  %v584 = vld [vmem:[%s4 + $0x510] sm:$0xff]
  %v585 = vld [vmem:[%s4 + $0x518] sm:$0xff]
  %v586 = vld [vmem:[%s4 + $0x520] sm:$0xff]
  %v587 = vld [vmem:[%s4 + $0x528] sm:$0xff]
  %v588 = vld [vmem:[%s4 + $0x530] sm:$0xff]
  %v589 = vld [vmem:[%s4 + $0x538] sm:$0xff]
  %v590 = vld [vmem:[%s4 + $0x540] sm:$0xff]
  %v591 = vld [vmem:[%s4 + $0x548] sm:$0xff]
  %v592 = vld [vmem:[%s4 + $0x550] sm:$0xff]
  %v593 = vld [vmem:[%s4 + $0x558] sm:$0xff]
  %v594 = vld [vmem:[%s4 + $0x560] sm:$0xff]
  %v595 = vld [vmem:[%s4 + $0x568] sm:$0xff]
  %v596 = vld [vmem:[%s4 + $0x570] sm:$0xff]
  %v597 = vld [vmem:[%s4 + $0x578] sm:$0xff]
  %v598 = vld [vmem:[%s4 + $0x580] sm:$0xff]
  %v599 = vld [vmem:[%s4 + $0x588] sm:$0xff]
  %v600 = vld [vmem:[%s4 + $0x590] sm:$0xff]
  %v601 = vld [vmem:[%s4 + $0x598] sm:$0xff]
  %v602 = vld [vmem:[%s4 + $0x5a0] sm:$0xff]
  %v603 = vld [vmem:[%s4 + $0x5a8] sm:$0xff]
  %v604 = vld [vmem:[%s4 + $0x5b0] sm:$0xff]
  %v605 = vld [vmem:[%s4 + $0x5b8] sm:$0xff]
  %v606 = vld [vmem:[%s4 + $0x5c0] sm:$0xff]
  %v607 = vld [vmem:[%s4 + $0x5c8] sm:$0xff]
  %v608 = vld [vmem:[%s4 + $0x5d0] sm:$0xff]
  %v609 = vld [vmem:[%s4 + $0x5d8] sm:$0xff]
  %v610 = vld [vmem:[%s4 + $0x5e0] sm:$0xff]
  %v611 = vld [vmem:[%s4 + $0x5e8] sm:$0xff]
  %v612 = vld [vmem:[%s4 + $0x5f0] sm:$0xff]
  %v613 = vld [vmem:[%s4 + $0x5f8] sm:$0xff]
  %v614 = vld [vmem:[%s4 + $0x600] sm:$0xff]
  %v615 = vld [vmem:[%s4 + $0x608] sm:$0xff]
  %v616 = vld [vmem:[%s4 + $0x610] sm:$0xff]
  %v617 = vld [vmem:[%s4 + $0x618] sm:$0xff]
  %v618 = vld [vmem:[%s4 + $0x620] sm:$0xff]
  %v619 = vld [vmem:[%s4 + $0x628] sm:$0xff]
  %v620 = vld [vmem:[%s4 + $0x630] sm:$0xff]
  %v621 = vld [vmem:[%s4 + $0x638] sm:$0xff]
  %v622 = vld [vmem:[%s4 + $0x640] sm:$0xff]
  %v623 = vld [vmem:[%s4 + $0x648] sm:$0xff]
  %v624 = vld [vmem:[%s4 + $0x650] sm:$0xff]
  %v625 = vld [vmem:[%s4 + $0x658] sm:$0xff]
  %v626 = vld [vmem:[%s4 + $0x660] sm:$0xff]
  %v627 = vld [vmem:[%s4 + $0x668] sm:$0xff]
  %v628 = vld [vmem:[%s4 + $0x670] sm:$0xff]
  %v629 = vld [vmem:[%s4 + $0x678] sm:$0xff]
  %v630 = vld [vmem:[%s4 + $0x680] sm:$0xff]
  %v631 = vld [vmem:[%s4 + $0x688] sm:$0xff]
  %v632 = vld [vmem:[%s4 + $0x690] sm:$0xff]
  %v633 = vld [vmem:[%s4 + $0x698] sm:$0xff]
  %v634 = vld [vmem:[%s4 + $0x6a0] sm:$0xff]
  %v635 = vld [vmem:[%s4 + $0x6a8] sm:$0xff]
  %v636 = vld [vmem:[%s4 + $0x6b0] sm:$0xff]
  %v637 = vld [vmem:[%s4 + $0x6b8] sm:$0xff]
  %v638 = vld [vmem:[%s4 + $0x6c0] sm:$0xff]
  %v639 = vld [vmem:[%s4 + $0x6c8] sm:$0xff]
  %v640 = vld [vmem:[%s4 + $0x6d0] sm:$0xff]
  %v641 = vld [vmem:[%s4 + $0x6d8] sm:$0xff]
  %v642 = vld [vmem:[%s4 + $0x6e0] sm:$0xff]
  %v643 = vld [vmem:[%s4 + $0x6e8] sm:$0xff]
  %v644 = vld [vmem:[%s4 + $0x6f0] sm:$0xff]
  %v645 = vld [vmem:[%s4 + $0x6f8] sm:$0xff]
  %v646 = vld [vmem:[%s4 + $0x700] sm:$0xff]
  %v647 = vld [vmem:[%s4 + $0x708] sm:$0xff]
  %v648 = vld [vmem:[%s4 + $0x710] sm:$0xff]
  %v649 = vld [vmem:[%s4 + $0x718] sm:$0xff]
  %v650 = vld [vmem:[%s4 + $0x720] sm:$0xff]
  %v651 = vld [vmem:[%s4 + $0x728] sm:$0xff]
  %v652 = vld [vmem:[%s4 + $0x730] sm:$0xff]
  %v653 = vld [vmem:[%s4 + $0x738] sm:$0xff]
  %v654 = vld [vmem:[%s4 + $0x740] sm:$0xff]
  %v655 = vld [vmem:[%s4 + $0x748] sm:$0xff]
  %v656 = vld [vmem:[%s4 + $0x750] sm:$0xff]
  %v657 = vld [vmem:[%s4 + $0x758] sm:$0xff]
  %v658 = vld [vmem:[%s4 + $0x760] sm:$0xff]
  %v659 = vld [vmem:[%s4 + $0x768] sm:$0xff]
  %v660 = vld [vmem:[%s4 + $0x770] sm:$0xff]
  %v661 = vld [vmem:[%s4 + $0x778] sm:$0xff]
  %v662 = vld [vmem:[%s4 + $0x780] sm:$0xff]
  %v663 = vld [vmem:[%s4 + $0x788] sm:$0xff]
  %v664 = vld [vmem:[%s4 + $0x790] sm:$0xff]
  %v665 = vld [vmem:[%s4 + $0x798] sm:$0xff]
  %v666 = vld [vmem:[%s4 + $0x7a0] sm:$0xff]
  %v667 = vld [vmem:[%s4 + $0x7a8] sm:$0xff]
  %v668 = vld [vmem:[%s4 + $0x7b0] sm:$0xff]
  %v669 = vld [vmem:[%s4 + $0x7b8] sm:$0xff]
  %v670 = vld [vmem:[%s4 + $0x7c0] sm:$0xff]
  %v671 = vld [vmem:[%s4 + $0x7c8] sm:$0xff]
  %v672 = vld [vmem:[%s4 + $0x7d0] sm:$0xff]
  %v673 = vld [vmem:[%s4 + $0x7d8] sm:$0xff]
  %v674 = vld [vmem:[%s4 + $0x7e0] sm:$0xff]
  %v675 = vld [vmem:[%s4 + $0x7e8] sm:$0xff]
  %v676 = vld [vmem:[%s4 + $0x7f0] sm:$0xff]
  %v677 = vld [vmem:[%s4 + $0x7f8] sm:$0xff]
  %v680 = vunpack.c.l.b16 %v418
  %v681 = vunpack.c.h.b16 %v418
  %v682 = vunpack.c.l.b16 %v419
  %v683 = vunpack.c.h.b16 %v419
  %v684 = vpack.c.b16 %v680, %v680
  %v685 = vpack.c.b16 %v681, %v681
  %v686 = vpack.c.b16 %v682, %v682
  %v687 = vpack.c.b16 %v683, %v683
  %v689 = vshrl.u32 %v684, 16
  %v692 = vshrl.u32 %v685, 16
  %v695 = vshrl.u32 %v686, 16
  %v698 = vshrl.u32 %v687, 16
  %v832 = vunpack.c.l.b16 %v550
  %v833 = vunpack.c.h.b16 %v550
  %v834 = vunpack.c.l.b16 %v551
  %v835 = vunpack.c.h.b16 %v551
  %v836 = vunpack.c.l.b16 %v552
  %v837 = vunpack.c.h.b16 %v552
  %v838 = vunpack.c.l.b16 %v553
  %v839 = vunpack.c.h.b16 %v553
  %v840 = vunpack.c.l.b16 %v554
  %v841 = vunpack.c.h.b16 %v554
  %v842 = vunpack.c.l.b16 %v555
  %v843 = vunpack.c.h.b16 %v555
  %v844 = vunpack.c.l.b16 %v556
  %v845 = vunpack.c.h.b16 %v556
  %v846 = vunpack.c.l.b16 %v557
  %v847 = vunpack.c.h.b16 %v557
  %v848 = vunpack.c.l.b16 %v558
  %v849 = vunpack.c.h.b16 %v558
  %v850 = vunpack.c.l.b16 %v559
  %v851 = vunpack.c.h.b16 %v559
  %v852 = vunpack.c.l.b16 %v560
  %v853 = vunpack.c.h.b16 %v560
  %v854 = vunpack.c.l.b16 %v561
  %v855 = vunpack.c.h.b16 %v561
  %v856 = vunpack.c.l.b16 %v562
  %v857 = vunpack.c.h.b16 %v562
  %v858 = vunpack.c.l.b16 %v563
  %v859 = vunpack.c.h.b16 %v563
  %v860 = vunpack.c.l.b16 %v564
  %v861 = vunpack.c.h.b16 %v564
  %v862 = vunpack.c.l.b16 %v565
  %v863 = vunpack.c.h.b16 %v565
  %v864 = vunpack.c.l.b16 %v566
  %v865 = vunpack.c.h.b16 %v566
  %v866 = vunpack.c.l.b16 %v567
  %v867 = vunpack.c.h.b16 %v567
  %v868 = vunpack.c.l.b16 %v568
  %v869 = vunpack.c.h.b16 %v568
  %v870 = vunpack.c.l.b16 %v569
  %v871 = vunpack.c.h.b16 %v569
  %v872 = vunpack.c.l.b16 %v570
  %v873 = vunpack.c.h.b16 %v570
  %v874 = vunpack.c.l.b16 %v571
  %v875 = vunpack.c.h.b16 %v571
  %v876 = vunpack.c.l.b16 %v572
  %v877 = vunpack.c.h.b16 %v572
  %v878 = vunpack.c.l.b16 %v573
  %v879 = vunpack.c.h.b16 %v573
  %v880 = vunpack.c.l.b16 %v574
  %v881 = vunpack.c.h.b16 %v574
  %v882 = vunpack.c.l.b16 %v575
  %v883 = vunpack.c.h.b16 %v575
  %v884 = vunpack.c.l.b16 %v576
  %v885 = vunpack.c.h.b16 %v576
  %v886 = vunpack.c.l.b16 %v577
  %v887 = vunpack.c.h.b16 %v577
  %v888 = vunpack.c.l.b16 %v578
  %v889 = vunpack.c.h.b16 %v578
  %v890 = vunpack.c.l.b16 %v579
  %v891 = vunpack.c.h.b16 %v579
  %v892 = vunpack.c.l.b16 %v580
  %v893 = vunpack.c.h.b16 %v580
  %v894 = vunpack.c.l.b16 %v581
  %v895 = vunpack.c.h.b16 %v581
  %v896 = vunpack.c.l.b16 %v582
  %v897 = vunpack.c.h.b16 %v582
  %v898 = vunpack.c.l.b16 %v583
  %v899 = vunpack.c.h.b16 %v583
  %v900 = vunpack.c.l.b16 %v584
  %v901 = vunpack.c.h.b16 %v584
  %v902 = vunpack.c.l.b16 %v585
  %v903 = vunpack.c.h.b16 %v585
  %v904 = vunpack.c.l.b16 %v586
  %v905 = vunpack.c.h.b16 %v586
  %v906 = vunpack.c.l.b16 %v587
  %v907 = vunpack.c.h.b16 %v587
  %v908 = vunpack.c.l.b16 %v588
  %v909 = vunpack.c.h.b16 %v588
  %v910 = vunpack.c.l.b16 %v589
  %v911 = vunpack.c.h.b16 %v589
  %v912 = vunpack.c.l.b16 %v590
  %v913 = vunpack.c.h.b16 %v590
  %v914 = vunpack.c.l.b16 %v591
  %v915 = vunpack.c.h.b16 %v591
  %v916 = vunpack.c.l.b16 %v592
  %v917 = vunpack.c.h.b16 %v592
  %v918 = vunpack.c.l.b16 %v593
  %v919 = vunpack.c.h.b16 %v593
  %v920 = vunpack.c.l.b16 %v594
  %v921 = vunpack.c.h.b16 %v594
  %v922 = vunpack.c.l.b16 %v595
  %v923 = vunpack.c.h.b16 %v595
  %v924 = vunpack.c.l.b16 %v596
  %v925 = vunpack.c.h.b16 %v596
  %v926 = vunpack.c.l.b16 %v597
  %v927 = vunpack.c.h.b16 %v597
  %v928 = vunpack.c.l.b16 %v598
  %v929 = vunpack.c.h.b16 %v598
  %v930 = vunpack.c.l.b16 %v599
  %v931 = vunpack.c.h.b16 %v599
  %v932 = vunpack.c.l.b16 %v600
  %v933 = vunpack.c.h.b16 %v600
  %v934 = vunpack.c.l.b16 %v601
  %v935 = vunpack.c.h.b16 %v601
  %v936 = vunpack.c.l.b16 %v602
  %v937 = vunpack.c.h.b16 %v602
  %v938 = vunpack.c.l.b16 %v603
  %v939 = vunpack.c.h.b16 %v603
  %v940 = vunpack.c.l.b16 %v604
  %v941 = vunpack.c.h.b16 %v604
  %v942 = vunpack.c.l.b16 %v605
  %v943 = vunpack.c.h.b16 %v605
  %v944 = vunpack.c.l.b16 %v606
  %v945 = vunpack.c.h.b16 %v606
  %v946 = vunpack.c.l.b16 %v607
  %v947 = vunpack.c.h.b16 %v607
  %v948 = vunpack.c.l.b16 %v608
  %v949 = vunpack.c.h.b16 %v608
  %v950 = vunpack.c.l.b16 %v609
  %v951 = vunpack.c.h.b16 %v609
  %v952 = vunpack.c.l.b16 %v610
  %v953 = vunpack.c.h.b16 %v610
  %v954 = vunpack.c.l.b16 %v611
  %v955 = vunpack.c.h.b16 %v611
  %v956 = vunpack.c.l.b16 %v612
  %v957 = vunpack.c.h.b16 %v612
  %v958 = vunpack.c.l.b16 %v613
  %v959 = vunpack.c.h.b16 %v613
  %v960 = vunpack.c.l.b16 %v614
  %v961 = vunpack.c.h.b16 %v614
  %v962 = vunpack.c.l.b16 %v615
  %v963 = vunpack.c.h.b16 %v615
  %v964 = vunpack.c.l.b16 %v616
  %v965 = vunpack.c.h.b16 %v616
  %v966 = vunpack.c.l.b16 %v617
  %v967 = vunpack.c.h.b16 %v617
  %v968 = vunpack.c.l.b16 %v618
  %v969 = vunpack.c.h.b16 %v618
  %v970 = vunpack.c.l.b16 %v619
  %v971 = vunpack.c.h.b16 %v619
  %v972 = vunpack.c.l.b16 %v620
  %v973 = vunpack.c.h.b16 %v620
  %v974 = vunpack.c.l.b16 %v621
  %v975 = vunpack.c.h.b16 %v621
  %v976 = vunpack.c.l.b16 %v622
  %v977 = vunpack.c.h.b16 %v622
  %v978 = vunpack.c.l.b16 %v623
  %v979 = vunpack.c.h.b16 %v623
  %v980 = vunpack.c.l.b16 %v624
  %v981 = vunpack.c.h.b16 %v624
  %v982 = vunpack.c.l.b16 %v625
  %v983 = vunpack.c.h.b16 %v625
  %v984 = vunpack.c.l.b16 %v626
  %v985 = vunpack.c.h.b16 %v626
  %v986 = vunpack.c.l.b16 %v627
  %v987 = vunpack.c.h.b16 %v627
  %v988 = vunpack.c.l.b16 %v628
  %v989 = vunpack.c.h.b16 %v628
  %v990 = vunpack.c.l.b16 %v629
  %v991 = vunpack.c.h.b16 %v629
  %v992 = vunpack.c.l.b16 %v630
  %v993 = vunpack.c.h.b16 %v630
  %v994 = vunpack.c.l.b16 %v631
  %v995 = vunpack.c.h.b16 %v631
  %v996 = vunpack.c.l.b16 %v632
  %v997 = vunpack.c.h.b16 %v632
  %v998 = vunpack.c.l.b16 %v633
  %v999 = vunpack.c.h.b16 %v633
  %v1000 = vunpack.c.l.b16 %v634
  %v1001 = vunpack.c.h.b16 %v634
  %v1002 = vunpack.c.l.b16 %v635
  %v1003 = vunpack.c.h.b16 %v635
  %v1004 = vunpack.c.l.b16 %v636
  %v1005 = vunpack.c.h.b16 %v636
  %v1006 = vunpack.c.l.b16 %v637
  %v1007 = vunpack.c.h.b16 %v637
  %v1008 = vunpack.c.l.b16 %v638
  %v1009 = vunpack.c.h.b16 %v638
  %v1010 = vunpack.c.l.b16 %v639
  %v1011 = vunpack.c.h.b16 %v639
  %v1012 = vunpack.c.l.b16 %v640
  %v1013 = vunpack.c.h.b16 %v640
  %v1014 = vunpack.c.l.b16 %v641
  %v1015 = vunpack.c.h.b16 %v641
  %v1016 = vunpack.c.l.b16 %v642
  %v1017 = vunpack.c.h.b16 %v642
  %v1018 = vunpack.c.l.b16 %v643
  %v1019 = vunpack.c.h.b16 %v643
  %v1020 = vunpack.c.l.b16 %v644
  %v1021 = vunpack.c.h.b16 %v644
  %v1022 = vunpack.c.l.b16 %v645
  %v1023 = vunpack.c.h.b16 %v645
  %v1024 = vunpack.c.l.b16 %v646
  %v1025 = vunpack.c.h.b16 %v646
  %v1026 = vunpack.c.l.b16 %v647
  %v1027 = vunpack.c.h.b16 %v647
  %v1028 = vunpack.c.l.b16 %v648
  %v1029 = vunpack.c.h.b16 %v648
  %v1030 = vunpack.c.l.b16 %v649
  %v1031 = vunpack.c.h.b16 %v649
  %v1032 = vunpack.c.l.b16 %v650
  %v1033 = vunpack.c.h.b16 %v650
  %v1034 = vunpack.c.l.b16 %v651
  %v1035 = vunpack.c.h.b16 %v651
  %v1036 = vunpack.c.l.b16 %v652
  %v1037 = vunpack.c.h.b16 %v652
  %v1038 = vunpack.c.l.b16 %v653
  %v1039 = vunpack.c.h.b16 %v653
  %v1040 = vunpack.c.l.b16 %v654
  %v1041 = vunpack.c.h.b16 %v654
  %v1042 = vunpack.c.l.b16 %v655
  %v1043 = vunpack.c.h.b16 %v655
  %v1044 = vunpack.c.l.b16 %v656
  %v1045 = vunpack.c.h.b16 %v656
  %v1046 = vunpack.c.l.b16 %v657
  %v1047 = vunpack.c.h.b16 %v657
  %v1048 = vunpack.c.l.b16 %v658
  %v1049 = vunpack.c.h.b16 %v658
  %v1050 = vunpack.c.l.b16 %v659
  %v1051 = vunpack.c.h.b16 %v659
  %v1052 = vunpack.c.l.b16 %v660
  %v1053 = vunpack.c.h.b16 %v660
  %v1054 = vunpack.c.l.b16 %v661
  %v1055 = vunpack.c.h.b16 %v661
  %v1056 = vunpack.c.l.b16 %v662
  %v1057 = vunpack.c.h.b16 %v662
  %v1058 = vunpack.c.l.b16 %v663
  %v1059 = vunpack.c.h.b16 %v663
  %v1060 = vunpack.c.l.b16 %v664
  %v1061 = vunpack.c.h.b16 %v664
  %v1062 = vunpack.c.l.b16 %v665
  %v1063 = vunpack.c.h.b16 %v665
  %v1064 = vunpack.c.l.b16 %v666
  %v1065 = vunpack.c.h.b16 %v666
  %v1066 = vunpack.c.l.b16 %v667
  %v1067 = vunpack.c.h.b16 %v667
  %v1068 = vunpack.c.l.b16 %v668
  %v1069 = vunpack.c.h.b16 %v668
  %v1070 = vunpack.c.l.b16 %v669
  %v1071 = vunpack.c.h.b16 %v669
  %v1072 = vunpack.c.l.b16 %v670
  %v1073 = vunpack.c.h.b16 %v670
  %v1074 = vunpack.c.l.b16 %v671
  %v1075 = vunpack.c.h.b16 %v671
  %v1076 = vunpack.c.l.b16 %v672
  %v1077 = vunpack.c.h.b16 %v672
  %v1078 = vunpack.c.l.b16 %v673
  %v1079 = vunpack.c.h.b16 %v673
  %v1080 = vunpack.c.l.b16 %v674
  %v1081 = vunpack.c.h.b16 %v674
  %v1082 = vunpack.c.l.b16 %v675
  %v1083 = vunpack.c.h.b16 %v675
  %v1084 = vunpack.c.l.b16 %v676
  %v1085 = vunpack.c.h.b16 %v676
  %v1086 = vunpack.c.l.b16 %v677
  %v1087 = vunpack.c.h.b16 %v677
  %v1088 = vpack.c.b16 %v836, %v832
  %v1089 = vpack.c.b16 %v837, %v833
  %v1090 = vpack.c.b16 %v838, %v834
  %v1091 = vpack.c.b16 %v839, %v835
  %v1092 = vpack.c.b16 %v844, %v840
  %v1093 = vpack.c.b16 %v845, %v841
  %v1094 = vpack.c.b16 %v846, %v842
  %v1095 = vpack.c.b16 %v847, %v843
  %v1096 = vpack.c.b16 %v852, %v848
  %v1097 = vpack.c.b16 %v853, %v849
  %v1098 = vpack.c.b16 %v854, %v850
  %v1099 = vpack.c.b16 %v855, %v851
  %v1100 = vpack.c.b16 %v860, %v856
  %v1101 = vpack.c.b16 %v861, %v857
  %v1102 = vpack.c.b16 %v862, %v858
  %v1103 = vpack.c.b16 %v863, %v859
  %v1104 = vpack.c.b16 %v868, %v864
  %v1105 = vpack.c.b16 %v869, %v865
  %v1106 = vpack.c.b16 %v870, %v866
  %v1107 = vpack.c.b16 %v871, %v867
  %v1108 = vpack.c.b16 %v876, %v872
  %v1109 = vpack.c.b16 %v877, %v873
  %v1110 = vpack.c.b16 %v878, %v874
  %v1111 = vpack.c.b16 %v879, %v875
  %v1112 = vpack.c.b16 %v884, %v880
  %v1113 = vpack.c.b16 %v885, %v881
  %v1114 = vpack.c.b16 %v886, %v882
  %v1115 = vpack.c.b16 %v887, %v883
  %v1116 = vpack.c.b16 %v892, %v888
  %v1117 = vpack.c.b16 %v893, %v889
  %v1118 = vpack.c.b16 %v894, %v890
  %v1119 = vpack.c.b16 %v895, %v891
  %v1120 = vpack.c.b16 %v900, %v896
  %v1121 = vpack.c.b16 %v901, %v897
  %v1122 = vpack.c.b16 %v902, %v898
  %v1123 = vpack.c.b16 %v903, %v899
  %v1124 = vpack.c.b16 %v908, %v904
  %v1125 = vpack.c.b16 %v909, %v905
  %v1126 = vpack.c.b16 %v910, %v906
  %v1127 = vpack.c.b16 %v911, %v907
  %v1128 = vpack.c.b16 %v916, %v912
  %v1129 = vpack.c.b16 %v917, %v913
  %v1130 = vpack.c.b16 %v918, %v914
  %v1131 = vpack.c.b16 %v919, %v915
  %v1132 = vpack.c.b16 %v924, %v920
  %v1133 = vpack.c.b16 %v925, %v921
  %v1134 = vpack.c.b16 %v926, %v922
  %v1135 = vpack.c.b16 %v927, %v923
  %v1136 = vpack.c.b16 %v932, %v928
  %v1137 = vpack.c.b16 %v933, %v929
  %v1138 = vpack.c.b16 %v934, %v930
  %v1139 = vpack.c.b16 %v935, %v931
  %v1140 = vpack.c.b16 %v940, %v936
  %v1141 = vpack.c.b16 %v941, %v937
  %v1142 = vpack.c.b16 %v942, %v938
  %v1143 = vpack.c.b16 %v943, %v939
  %v1144 = vpack.c.b16 %v948, %v944
  %v1145 = vpack.c.b16 %v949, %v945
  %v1146 = vpack.c.b16 %v950, %v946
  %v1147 = vpack.c.b16 %v951, %v947
  %v1148 = vpack.c.b16 %v956, %v952
  %v1149 = vpack.c.b16 %v957, %v953
  %v1150 = vpack.c.b16 %v958, %v954
  %v1151 = vpack.c.b16 %v959, %v955
  %v1152 = vpack.c.b16 %v964, %v960
  %v1153 = vpack.c.b16 %v965, %v961
  %v1154 = vpack.c.b16 %v966, %v962
  %v1155 = vpack.c.b16 %v967, %v963
  %v1156 = vpack.c.b16 %v972, %v968
  %v1157 = vpack.c.b16 %v973, %v969
  %v1158 = vpack.c.b16 %v974, %v970
  %v1159 = vpack.c.b16 %v975, %v971
  %v1160 = vpack.c.b16 %v980, %v976
  %v1161 = vpack.c.b16 %v981, %v977
  %v1162 = vpack.c.b16 %v982, %v978
  %v1163 = vpack.c.b16 %v983, %v979
  %v1164 = vpack.c.b16 %v988, %v984
  %v1165 = vpack.c.b16 %v989, %v985
  %v1166 = vpack.c.b16 %v990, %v986
  %v1167 = vpack.c.b16 %v991, %v987
  %v1168 = vpack.c.b16 %v996, %v992
  %v1169 = vpack.c.b16 %v997, %v993
  %v1170 = vpack.c.b16 %v998, %v994
  %v1171 = vpack.c.b16 %v999, %v995
  %v1172 = vpack.c.b16 %v1004, %v1000
  %v1173 = vpack.c.b16 %v1005, %v1001
  %v1174 = vpack.c.b16 %v1006, %v1002
  %v1175 = vpack.c.b16 %v1007, %v1003
  %v1176 = vpack.c.b16 %v1012, %v1008
  %v1177 = vpack.c.b16 %v1013, %v1009
  %v1178 = vpack.c.b16 %v1014, %v1010
  %v1179 = vpack.c.b16 %v1015, %v1011
  %v1180 = vpack.c.b16 %v1020, %v1016
  %v1181 = vpack.c.b16 %v1021, %v1017
  %v1182 = vpack.c.b16 %v1022, %v1018
  %v1183 = vpack.c.b16 %v1023, %v1019
  %v1184 = vpack.c.b16 %v1028, %v1024
  %v1185 = vpack.c.b16 %v1029, %v1025
  %v1186 = vpack.c.b16 %v1030, %v1026
  %v1187 = vpack.c.b16 %v1031, %v1027
  %v1188 = vpack.c.b16 %v1036, %v1032
  %v1189 = vpack.c.b16 %v1037, %v1033
  %v1190 = vpack.c.b16 %v1038, %v1034
  %v1191 = vpack.c.b16 %v1039, %v1035
  %v1192 = vpack.c.b16 %v1044, %v1040
  %v1193 = vpack.c.b16 %v1045, %v1041
  %v1194 = vpack.c.b16 %v1046, %v1042
  %v1195 = vpack.c.b16 %v1047, %v1043
  %v1196 = vpack.c.b16 %v1052, %v1048
  %v1197 = vpack.c.b16 %v1053, %v1049
  %v1198 = vpack.c.b16 %v1054, %v1050
  %v1199 = vpack.c.b16 %v1055, %v1051
  %v1200 = vpack.c.b16 %v1060, %v1056
  %v1201 = vpack.c.b16 %v1061, %v1057
  %v1202 = vpack.c.b16 %v1062, %v1058
  %v1203 = vpack.c.b16 %v1063, %v1059
  %v1204 = vpack.c.b16 %v1068, %v1064
  %v1205 = vpack.c.b16 %v1069, %v1065
  %v1206 = vpack.c.b16 %v1070, %v1066
  %v1207 = vpack.c.b16 %v1071, %v1067
  %v1208 = vpack.c.b16 %v1076, %v1072
  %v1209 = vpack.c.b16 %v1077, %v1073
  %v1210 = vpack.c.b16 %v1078, %v1074
  %v1211 = vpack.c.b16 %v1079, %v1075
  %v1212 = vpack.c.b16 %v1084, %v1080
  %v1213 = vpack.c.b16 %v1085, %v1081
  %v1214 = vpack.c.b16 %v1086, %v1082
  %v1215 = vpack.c.b16 %v1087, %v1083
  %1344 = vmatpush.bf16.msra.mxu0 %v1116
  %1345 = vmatpush.bf16.msra.mxu0 %v1112
  %1346 = vmatpush.bf16.msra.mxu0 %v1108
  %1347 = vmatpush.bf16.msra.mxu0 %v1104
  %1348 = vmatpush.bf16.msra.mxu0 %v1100
  %1349 = vmatpush.bf16.msra.mxu0 %v1096
  %1350 = vmatpush.bf16.msra.mxu0 %v1092
  %1351 = vmatpush.bf16.msra.mxu0 %v1088
  %1352 = vmatmul.bf16.gmra.mxu0 %v689
  %v1353 = vpop.f32.mrf.mxu0
  %v1354 = vadd.f32 0.0, %v1353
  %v1355 = vpop.f32.mrf.mxu0
  %1356 = vdwg.mxu0
  %1357 = vmatpush.bf16.msra.mxu0 %v1148
  %1358 = vmatpush.bf16.msra.mxu0 %v1144
  %1359 = vmatpush.bf16.msra.mxu0 %v1140
  %1360 = vmatpush.bf16.msra.mxu0 %v1136
  %1361 = vmatpush.bf16.msra.mxu0 %v1132
  %1362 = vmatpush.bf16.msra.mxu0 %v1128
  %1363 = vmatpush.bf16.msra.mxu0 %v1124
  %1364 = vmatpush.bf16.msra.mxu0 %v1120
  %1365 = vmatmul.bf16.gmra.mxu0 %v692
  %v1366 = vpop.f32.mrf.mxu0
  %v1367 = vadd.f32 %v1354, %v1366
  %v1368 = vpop.f32.mrf.mxu0
  %1369 = vdwg.mxu0
  %1370 = vmatpush.bf16.msra.mxu0 %v1180
  %1371 = vmatpush.bf16.msra.mxu0 %v1176
  %1372 = vmatpush.bf16.msra.mxu0 %v1172
  %1373 = vmatpush.bf16.msra.mxu0 %v1168
  %1374 = vmatpush.bf16.msra.mxu0 %v1164
  %1375 = vmatpush.bf16.msra.mxu0 %v1160
  %1376 = vmatpush.bf16.msra.mxu0 %v1156
  %1377 = vmatpush.bf16.msra.mxu0 %v1152
  %1378 = vmatmul.bf16.gmra.mxu0 %v695
  %v1379 = vpop.f32.mrf.mxu0
  %v1380 = vadd.f32 %v1367, %v1379
  %v1381 = vpop.f32.mrf.mxu0
  %1382 = vdwg.mxu0
  %1383 = vmatpush.bf16.msra.mxu0 %v1212
  %1384 = vmatpush.bf16.msra.mxu0 %v1208
  %1385 = vmatpush.bf16.msra.mxu0 %v1204
  %1386 = vmatpush.bf16.msra.mxu0 %v1200
  %1387 = vmatpush.bf16.msra.mxu0 %v1196
  %1388 = vmatpush.bf16.msra.mxu0 %v1192
  %1389 = vmatpush.bf16.msra.mxu0 %v1188
  %1390 = vmatpush.bf16.msra.mxu0 %v1184
  %1391 = vmatmul.bf16.gmra.mxu0 %v698
  %v1392 = vpop.f32.mrf.mxu0
  %v1393 = vadd.f32 %v1380, %v1392
  %v1394 = vpop.f32.mrf.mxu0
  %1395 = vdwg.mxu0
  %1396 = vmatpush.bf16.msra.mxu0 %v1117
  %1397 = vmatpush.bf16.msra.mxu0 %v1113
  %1398 = vmatpush.bf16.msra.mxu0 %v1109
  %1399 = vmatpush.bf16.msra.mxu0 %v1105
  %1400 = vmatpush.bf16.msra.mxu0 %v1101
  %1401 = vmatpush.bf16.msra.mxu0 %v1097
  %1402 = vmatpush.bf16.msra.mxu0 %v1093
  %1403 = vmatpush.bf16.msra.mxu0 %v1089
  %1404 = vmatmul.bf16.gmra.mxu0 %v689
  %v1405 = vpop.f32.mrf.mxu0
  %v1406 = vadd.f32 0.0, %v1405
  %v1407 = vpop.f32.mrf.mxu0
  %1408 = vdwg.mxu0
  %1409 = vmatpush.bf16.msra.mxu0 %v1149
  %1410 = vmatpush.bf16.msra.mxu0 %v1145
  %1411 = vmatpush.bf16.msra.mxu0 %v1141
  %1412 = vmatpush.bf16.msra.mxu0 %v1137
  %1413 = vmatpush.bf16.msra.mxu0 %v1133
  %1414 = vmatpush.bf16.msra.mxu0 %v1129
  %1415 = vmatpush.bf16.msra.mxu0 %v1125
  %1416 = vmatpush.bf16.msra.mxu0 %v1121
  %1417 = vmatmul.bf16.gmra.mxu0 %v692
  %v1418 = vpop.f32.mrf.mxu0
  %v1419 = vadd.f32 %v1406, %v1418
  %v1420 = vpop.f32.mrf.mxu0
  %1421 = vdwg.mxu0
  %1422 = vmatpush.bf16.msra.mxu0 %v1181
  %1423 = vmatpush.bf16.msra.mxu0 %v1177
  %1424 = vmatpush.bf16.msra.mxu0 %v1173
  %1425 = vmatpush.bf16.msra.mxu0 %v1169
  %1426 = vmatpush.bf16.msra.mxu0 %v1165
  %1427 = vmatpush.bf16.msra.mxu0 %v1161
  %1428 = vmatpush.bf16.msra.mxu0 %v1157
  %1429 = vmatpush.bf16.msra.mxu0 %v1153
  %1430 = vmatmul.bf16.gmra.mxu0 %v695
  %v1431 = vpop.f32.mrf.mxu0
  %v1432 = vadd.f32 %v1419, %v1431
  %v1433 = vpop.f32.mrf.mxu0
  %1434 = vdwg.mxu0
  %1435 = vmatpush.bf16.msra.mxu0 %v1213
  %1436 = vmatpush.bf16.msra.mxu0 %v1209
  %1437 = vmatpush.bf16.msra.mxu0 %v1205
  %1438 = vmatpush.bf16.msra.mxu0 %v1201
  %1439 = vmatpush.bf16.msra.mxu0 %v1197
  %1440 = vmatpush.bf16.msra.mxu0 %v1193
  %1441 = vmatpush.bf16.msra.mxu0 %v1189
  %1442 = vmatpush.bf16.msra.mxu0 %v1185
  %1443 = vmatmul.bf16.gmra.mxu0 %v698
  %v1444 = vpop.f32.mrf.mxu0
  %v1445 = vadd.f32 %v1432, %v1444
  %v1446 = vpop.f32.mrf.mxu0
  %1447 = vdwg.mxu0
  %1448 = vmatpush.bf16.msra.mxu0 %v1118
  %1449 = vmatpush.bf16.msra.mxu0 %v1114
  %1450 = vmatpush.bf16.msra.mxu0 %v1110
  %1451 = vmatpush.bf16.msra.mxu0 %v1106
  %1452 = vmatpush.bf16.msra.mxu0 %v1102
  %1453 = vmatpush.bf16.msra.mxu0 %v1098
  %1454 = vmatpush.bf16.msra.mxu0 %v1094
  %1455 = vmatpush.bf16.msra.mxu0 %v1090
  %1456 = vmatmul.bf16.gmra.mxu0 %v689
  %v1457 = vpop.f32.mrf.mxu0
  %v1458 = vadd.f32 0.0, %v1457
  %v1459 = vpop.f32.mrf.mxu0
  %1460 = vdwg.mxu0
  %1461 = vmatpush.bf16.msra.mxu0 %v1150
  %1462 = vmatpush.bf16.msra.mxu0 %v1146
  %1463 = vmatpush.bf16.msra.mxu0 %v1142
  %1464 = vmatpush.bf16.msra.mxu0 %v1138
  %1465 = vmatpush.bf16.msra.mxu0 %v1134
  %1466 = vmatpush.bf16.msra.mxu0 %v1130
  %1467 = vmatpush.bf16.msra.mxu0 %v1126
  %1468 = vmatpush.bf16.msra.mxu0 %v1122
  %1469 = vmatmul.bf16.gmra.mxu0 %v692
  %v1470 = vpop.f32.mrf.mxu0
  %v1471 = vadd.f32 %v1458, %v1470
  %v1472 = vpop.f32.mrf.mxu0
  %1473 = vdwg.mxu0
  %1474 = vmatpush.bf16.msra.mxu0 %v1182
  %1475 = vmatpush.bf16.msra.mxu0 %v1178
  %1476 = vmatpush.bf16.msra.mxu0 %v1174
  %1477 = vmatpush.bf16.msra.mxu0 %v1170
  %1478 = vmatpush.bf16.msra.mxu0 %v1166
  %1479 = vmatpush.bf16.msra.mxu0 %v1162
  %1480 = vmatpush.bf16.msra.mxu0 %v1158
  %1481 = vmatpush.bf16.msra.mxu0 %v1154
  %1482 = vmatmul.bf16.gmra.mxu0 %v695
  %v1483 = vpop.f32.mrf.mxu0
  %v1484 = vadd.f32 %v1471, %v1483
  %v1485 = vpop.f32.mrf.mxu0
  %1486 = vdwg.mxu0
  %1487 = vmatpush.bf16.msra.mxu0 %v1214
  %1488 = vmatpush.bf16.msra.mxu0 %v1210
  %1489 = vmatpush.bf16.msra.mxu0 %v1206
  %1490 = vmatpush.bf16.msra.mxu0 %v1202
  %1491 = vmatpush.bf16.msra.mxu0 %v1198
  %1492 = vmatpush.bf16.msra.mxu0 %v1194
  %1493 = vmatpush.bf16.msra.mxu0 %v1190
  %1494 = vmatpush.bf16.msra.mxu0 %v1186
  %1495 = vmatmul.bf16.gmra.mxu0 %v698
  %v1496 = vpop.f32.mrf.mxu0
  %v1497 = vadd.f32 %v1484, %v1496
  %v1498 = vpop.f32.mrf.mxu0
  %1499 = vdwg.mxu0
  %1500 = vmatpush.bf16.msra.mxu0 %v1119
  %1501 = vmatpush.bf16.msra.mxu0 %v1115
  %1502 = vmatpush.bf16.msra.mxu0 %v1111
  %1503 = vmatpush.bf16.msra.mxu0 %v1107
  %1504 = vmatpush.bf16.msra.mxu0 %v1103
  %1505 = vmatpush.bf16.msra.mxu0 %v1099
  %1506 = vmatpush.bf16.msra.mxu0 %v1095
  %1507 = vmatpush.bf16.msra.mxu0 %v1091
  %1508 = vmatmul.bf16.gmra.mxu0 %v689
  %v1509 = vpop.f32.mrf.mxu0
  %v1510 = vadd.f32 0.0, %v1509
  %v1511 = vpop.f32.mrf.mxu0
  %1512 = vdwg.mxu0
  %1513 = vmatpush.bf16.msra.mxu0 %v1151
  %1514 = vmatpush.bf16.msra.mxu0 %v1147
  %1515 = vmatpush.bf16.msra.mxu0 %v1143
  %1516 = vmatpush.bf16.msra.mxu0 %v1139
  %1517 = vmatpush.bf16.msra.mxu0 %v1135
  %1518 = vmatpush.bf16.msra.mxu0 %v1131
  %1519 = vmatpush.bf16.msra.mxu0 %v1127
  %1520 = vmatpush.bf16.msra.mxu0 %v1123
  %1521 = vmatmul.bf16.gmra.mxu0 %v692
  %v1522 = vpop.f32.mrf.mxu0
  %v1523 = vadd.f32 %v1510, %v1522
  %v1524 = vpop.f32.mrf.mxu0
  %1525 = vdwg.mxu0
  %1526 = vmatpush.bf16.msra.mxu0 %v1183
  %1527 = vmatpush.bf16.msra.mxu0 %v1179
  %1528 = vmatpush.bf16.msra.mxu0 %v1175
  %1529 = vmatpush.bf16.msra.mxu0 %v1171
  %1530 = vmatpush.bf16.msra.mxu0 %v1167
  %1531 = vmatpush.bf16.msra.mxu0 %v1163
  %1532 = vmatpush.bf16.msra.mxu0 %v1159
  %1533 = vmatpush.bf16.msra.mxu0 %v1155
  %1534 = vmatmul.bf16.gmra.mxu0 %v695
  %v1535 = vpop.f32.mrf.mxu0
  %v1536 = vadd.f32 %v1523, %v1535
  %v1537 = vpop.f32.mrf.mxu0
  %1538 = vdwg.mxu0
  %1539 = vmatpush.bf16.msra.mxu0 %v1215
  %1540 = vmatpush.bf16.msra.mxu0 %v1211
  %1541 = vmatpush.bf16.msra.mxu0 %v1207
  %1542 = vmatpush.bf16.msra.mxu0 %v1203
  %1543 = vmatpush.bf16.msra.mxu0 %v1199
  %1544 = vmatpush.bf16.msra.mxu0 %v1195
  %1545 = vmatpush.bf16.msra.mxu0 %v1191
  %1546 = vmatpush.bf16.msra.mxu0 %v1187
  %1547 = vmatmul.bf16.gmra.mxu0 %v698
  %v1548 = vpop.f32.mrf.mxu0
  %v1549 = vadd.f32 %v1536, %v1548
  %v1550 = vpop.f32.mrf.mxu0
  %1551 = vdwg.mxu0
  %v1684 = vunpack.c.l.b16 %v422
  %v1685 = vunpack.c.h.b16 %v422
  %v1686 = vunpack.c.l.b16 %v423
  %v1687 = vunpack.c.h.b16 %v423
  %v1688 = vunpack.c.l.b16 %v424
  %v1689 = vunpack.c.h.b16 %v424
  %v1690 = vunpack.c.l.b16 %v425
  %v1691 = vunpack.c.h.b16 %v425
  %v1692 = vunpack.c.l.b16 %v426
  %v1693 = vunpack.c.h.b16 %v426
  %v1694 = vunpack.c.l.b16 %v427
  %v1695 = vunpack.c.h.b16 %v427
  %v1696 = vunpack.c.l.b16 %v428
  %v1697 = vunpack.c.h.b16 %v428
  %v1698 = vunpack.c.l.b16 %v429
  %v1699 = vunpack.c.h.b16 %v429
  %v1700 = vunpack.c.l.b16 %v430
  %v1701 = vunpack.c.h.b16 %v430
  %v1702 = vunpack.c.l.b16 %v431
  %v1703 = vunpack.c.h.b16 %v431
  %v1704 = vunpack.c.l.b16 %v432
  %v1705 = vunpack.c.h.b16 %v432
  %v1706 = vunpack.c.l.b16 %v433
  %v1707 = vunpack.c.h.b16 %v433
  %v1708 = vunpack.c.l.b16 %v434
  %v1709 = vunpack.c.h.b16 %v434
  %v1710 = vunpack.c.l.b16 %v435
  %v1711 = vunpack.c.h.b16 %v435
  %v1712 = vunpack.c.l.b16 %v436
  %v1713 = vunpack.c.h.b16 %v436
  %v1714 = vunpack.c.l.b16 %v437
  %v1715 = vunpack.c.h.b16 %v437
  %v1716 = vunpack.c.l.b16 %v438
  %v1717 = vunpack.c.h.b16 %v438
  %v1718 = vunpack.c.l.b16 %v439
  %v1719 = vunpack.c.h.b16 %v439
  %v1720 = vunpack.c.l.b16 %v440
  %v1721 = vunpack.c.h.b16 %v440
  %v1722 = vunpack.c.l.b16 %v441
  %v1723 = vunpack.c.h.b16 %v441
  %v1724 = vunpack.c.l.b16 %v442
  %v1725 = vunpack.c.h.b16 %v442
  %v1726 = vunpack.c.l.b16 %v443
  %v1727 = vunpack.c.h.b16 %v443
  %v1728 = vunpack.c.l.b16 %v444
  %v1729 = vunpack.c.h.b16 %v444
  %v1730 = vunpack.c.l.b16 %v445
  %v1731 = vunpack.c.h.b16 %v445
  %v1732 = vunpack.c.l.b16 %v446
  %v1733 = vunpack.c.h.b16 %v446
  %v1734 = vunpack.c.l.b16 %v447
  %v1735 = vunpack.c.h.b16 %v447
  %v1736 = vunpack.c.l.b16 %v448
  %v1737 = vunpack.c.h.b16 %v448
  %v1738 = vunpack.c.l.b16 %v449
  %v1739 = vunpack.c.h.b16 %v449
  %v1740 = vunpack.c.l.b16 %v450
  %v1741 = vunpack.c.h.b16 %v450
  %v1742 = vunpack.c.l.b16 %v451
  %v1743 = vunpack.c.h.b16 %v451
  %v1744 = vunpack.c.l.b16 %v452
  %v1745 = vunpack.c.h.b16 %v452
  %v1746 = vunpack.c.l.b16 %v453
  %v1747 = vunpack.c.h.b16 %v453
  %v1748 = vunpack.c.l.b16 %v454
  %v1749 = vunpack.c.h.b16 %v454
  %v1750 = vunpack.c.l.b16 %v455
  %v1751 = vunpack.c.h.b16 %v455
  %v1752 = vunpack.c.l.b16 %v456
  %v1753 = vunpack.c.h.b16 %v456
  %v1754 = vunpack.c.l.b16 %v457
  %v1755 = vunpack.c.h.b16 %v457
  %v1756 = vunpack.c.l.b16 %v458
  %v1757 = vunpack.c.h.b16 %v458
  %v1758 = vunpack.c.l.b16 %v459
  %v1759 = vunpack.c.h.b16 %v459
  %v1760 = vunpack.c.l.b16 %v460
  %v1761 = vunpack.c.h.b16 %v460
  %v1762 = vunpack.c.l.b16 %v461
  %v1763 = vunpack.c.h.b16 %v461
  %v1764 = vunpack.c.l.b16 %v462
  %v1765 = vunpack.c.h.b16 %v462
  %v1766 = vunpack.c.l.b16 %v463
  %v1767 = vunpack.c.h.b16 %v463
  %v1768 = vunpack.c.l.b16 %v464
  %v1769 = vunpack.c.h.b16 %v464
  %v1770 = vunpack.c.l.b16 %v465
  %v1771 = vunpack.c.h.b16 %v465
  %v1772 = vunpack.c.l.b16 %v466
  %v1773 = vunpack.c.h.b16 %v466
  %v1774 = vunpack.c.l.b16 %v467
  %v1775 = vunpack.c.h.b16 %v467
  %v1776 = vunpack.c.l.b16 %v468
  %v1777 = vunpack.c.h.b16 %v468
  %v1778 = vunpack.c.l.b16 %v469
  %v1779 = vunpack.c.h.b16 %v469
  %v1780 = vunpack.c.l.b16 %v470
  %v1781 = vunpack.c.h.b16 %v470
  %v1782 = vunpack.c.l.b16 %v471
  %v1783 = vunpack.c.h.b16 %v471
  %v1784 = vunpack.c.l.b16 %v472
  %v1785 = vunpack.c.h.b16 %v472
  %v1786 = vunpack.c.l.b16 %v473
  %v1787 = vunpack.c.h.b16 %v473
  %v1788 = vunpack.c.l.b16 %v474
  %v1789 = vunpack.c.h.b16 %v474
  %v1790 = vunpack.c.l.b16 %v475
  %v1791 = vunpack.c.h.b16 %v475
  %v1792 = vunpack.c.l.b16 %v476
  %v1793 = vunpack.c.h.b16 %v476
  %v1794 = vunpack.c.l.b16 %v477
  %v1795 = vunpack.c.h.b16 %v477
  %v1796 = vunpack.c.l.b16 %v478
  %v1797 = vunpack.c.h.b16 %v478
  %v1798 = vunpack.c.l.b16 %v479
  %v1799 = vunpack.c.h.b16 %v479
  %v1800 = vunpack.c.l.b16 %v480
  %v1801 = vunpack.c.h.b16 %v480
  %v1802 = vunpack.c.l.b16 %v481
  %v1803 = vunpack.c.h.b16 %v481
  %v1804 = vunpack.c.l.b16 %v482
  %v1805 = vunpack.c.h.b16 %v482
  %v1806 = vunpack.c.l.b16 %v483
  %v1807 = vunpack.c.h.b16 %v483
  %v1808 = vunpack.c.l.b16 %v484
  %v1809 = vunpack.c.h.b16 %v484
  %v1810 = vunpack.c.l.b16 %v485
  %v1811 = vunpack.c.h.b16 %v485
  %v1812 = vunpack.c.l.b16 %v486
  %v1813 = vunpack.c.h.b16 %v486
  %v1814 = vunpack.c.l.b16 %v487
  %v1815 = vunpack.c.h.b16 %v487
  %v1816 = vunpack.c.l.b16 %v488
  %v1817 = vunpack.c.h.b16 %v488
  %v1818 = vunpack.c.l.b16 %v489
  %v1819 = vunpack.c.h.b16 %v489
  %v1820 = vunpack.c.l.b16 %v490
  %v1821 = vunpack.c.h.b16 %v490
  %v1822 = vunpack.c.l.b16 %v491
  %v1823 = vunpack.c.h.b16 %v491
  %v1824 = vunpack.c.l.b16 %v492
  %v1825 = vunpack.c.h.b16 %v492
  %v1826 = vunpack.c.l.b16 %v493
  %v1827 = vunpack.c.h.b16 %v493
  %v1828 = vunpack.c.l.b16 %v494
  %v1829 = vunpack.c.h.b16 %v494
  %v1830 = vunpack.c.l.b16 %v495
  %v1831 = vunpack.c.h.b16 %v495
  %v1832 = vunpack.c.l.b16 %v496
  %v1833 = vunpack.c.h.b16 %v496
  %v1834 = vunpack.c.l.b16 %v497
  %v1835 = vunpack.c.h.b16 %v497
  %v1836 = vunpack.c.l.b16 %v498
  %v1837 = vunpack.c.h.b16 %v498
  %v1838 = vunpack.c.l.b16 %v499
  %v1839 = vunpack.c.h.b16 %v499
  %v1840 = vunpack.c.l.b16 %v500
  %v1841 = vunpack.c.h.b16 %v500
  %v1842 = vunpack.c.l.b16 %v501
  %v1843 = vunpack.c.h.b16 %v501
  %v1844 = vunpack.c.l.b16 %v502
  %v1845 = vunpack.c.h.b16 %v502
  %v1846 = vunpack.c.l.b16 %v503
  %v1847 = vunpack.c.h.b16 %v503
  %v1848 = vunpack.c.l.b16 %v504
  %v1849 = vunpack.c.h.b16 %v504
  %v1850 = vunpack.c.l.b16 %v505
  %v1851 = vunpack.c.h.b16 %v505
  %v1852 = vunpack.c.l.b16 %v506
  %v1853 = vunpack.c.h.b16 %v506
  %v1854 = vunpack.c.l.b16 %v507
  %v1855 = vunpack.c.h.b16 %v507
  %v1856 = vunpack.c.l.b16 %v508
  %v1857 = vunpack.c.h.b16 %v508
  %v1858 = vunpack.c.l.b16 %v509
  %v1859 = vunpack.c.h.b16 %v509
  %v1860 = vunpack.c.l.b16 %v510
  %v1861 = vunpack.c.h.b16 %v510
  %v1862 = vunpack.c.l.b16 %v511
  %v1863 = vunpack.c.h.b16 %v511
  %v1864 = vunpack.c.l.b16 %v512
  %v1865 = vunpack.c.h.b16 %v512
  %v1866 = vunpack.c.l.b16 %v513
  %v1867 = vunpack.c.h.b16 %v513
  %v1868 = vunpack.c.l.b16 %v514
  %v1869 = vunpack.c.h.b16 %v514
  %v1870 = vunpack.c.l.b16 %v515
  %v1871 = vunpack.c.h.b16 %v515
  %v1872 = vunpack.c.l.b16 %v516
  %v1873 = vunpack.c.h.b16 %v516
  %v1874 = vunpack.c.l.b16 %v517
  %v1875 = vunpack.c.h.b16 %v517
  %v1876 = vunpack.c.l.b16 %v518
  %v1877 = vunpack.c.h.b16 %v518
  %v1878 = vunpack.c.l.b16 %v519
  %v1879 = vunpack.c.h.b16 %v519
  %v1880 = vunpack.c.l.b16 %v520
  %v1881 = vunpack.c.h.b16 %v520
  %v1882 = vunpack.c.l.b16 %v521
  %v1883 = vunpack.c.h.b16 %v521
  %v1884 = vunpack.c.l.b16 %v522
  %v1885 = vunpack.c.h.b16 %v522
  %v1886 = vunpack.c.l.b16 %v523
  %v1887 = vunpack.c.h.b16 %v523
  %v1888 = vunpack.c.l.b16 %v524
  %v1889 = vunpack.c.h.b16 %v524
  %v1890 = vunpack.c.l.b16 %v525
  %v1891 = vunpack.c.h.b16 %v525
  %v1892 = vunpack.c.l.b16 %v526
  %v1893 = vunpack.c.h.b16 %v526
  %v1894 = vunpack.c.l.b16 %v527
  %v1895 = vunpack.c.h.b16 %v527
  %v1896 = vunpack.c.l.b16 %v528
  %v1897 = vunpack.c.h.b16 %v528
  %v1898 = vunpack.c.l.b16 %v529
  %v1899 = vunpack.c.h.b16 %v529
  %v1900 = vunpack.c.l.b16 %v530
  %v1901 = vunpack.c.h.b16 %v530
  %v1902 = vunpack.c.l.b16 %v531
  %v1903 = vunpack.c.h.b16 %v531
  %v1904 = vunpack.c.l.b16 %v532
  %v1905 = vunpack.c.h.b16 %v532
  %v1906 = vunpack.c.l.b16 %v533
  %v1907 = vunpack.c.h.b16 %v533
  %v1908 = vunpack.c.l.b16 %v534
  %v1909 = vunpack.c.h.b16 %v534
  %v1910 = vunpack.c.l.b16 %v535
  %v1911 = vunpack.c.h.b16 %v535
  %v1912 = vunpack.c.l.b16 %v536
  %v1913 = vunpack.c.h.b16 %v536
  %v1914 = vunpack.c.l.b16 %v537
  %v1915 = vunpack.c.h.b16 %v537
  %v1916 = vunpack.c.l.b16 %v538
  %v1917 = vunpack.c.h.b16 %v538
  %v1918 = vunpack.c.l.b16 %v539
  %v1919 = vunpack.c.h.b16 %v539
  %v1920 = vunpack.c.l.b16 %v540
  %v1921 = vunpack.c.h.b16 %v540
  %v1922 = vunpack.c.l.b16 %v541
  %v1923 = vunpack.c.h.b16 %v541
  %v1924 = vunpack.c.l.b16 %v542
  %v1925 = vunpack.c.h.b16 %v542
  %v1926 = vunpack.c.l.b16 %v543
  %v1927 = vunpack.c.h.b16 %v543
  %v1928 = vunpack.c.l.b16 %v544
  %v1929 = vunpack.c.h.b16 %v544
  %v1930 = vunpack.c.l.b16 %v545
  %v1931 = vunpack.c.h.b16 %v545
  %v1932 = vunpack.c.l.b16 %v546
  %v1933 = vunpack.c.h.b16 %v546
  %v1934 = vunpack.c.l.b16 %v547
  %v1935 = vunpack.c.h.b16 %v547
  %v1936 = vunpack.c.l.b16 %v548
  %v1937 = vunpack.c.h.b16 %v548
  %v1938 = vunpack.c.l.b16 %v549
  %v1939 = vunpack.c.h.b16 %v549
  %v1940 = vpack.c.b16 %v1688, %v1684
  %v1941 = vpack.c.b16 %v1689, %v1685
  %v1942 = vpack.c.b16 %v1690, %v1686
  %v1943 = vpack.c.b16 %v1691, %v1687
  %v1944 = vpack.c.b16 %v1696, %v1692
  %v1945 = vpack.c.b16 %v1697, %v1693
  %v1946 = vpack.c.b16 %v1698, %v1694
  %v1947 = vpack.c.b16 %v1699, %v1695
  %v1948 = vpack.c.b16 %v1704, %v1700
  %v1949 = vpack.c.b16 %v1705, %v1701
  %v1950 = vpack.c.b16 %v1706, %v1702
  %v1951 = vpack.c.b16 %v1707, %v1703
  %v1952 = vpack.c.b16 %v1712, %v1708
  %v1953 = vpack.c.b16 %v1713, %v1709
  %v1954 = vpack.c.b16 %v1714, %v1710
  %v1955 = vpack.c.b16 %v1715, %v1711
  %v1956 = vpack.c.b16 %v1720, %v1716
  %v1957 = vpack.c.b16 %v1721, %v1717
  %v1958 = vpack.c.b16 %v1722, %v1718
  %v1959 = vpack.c.b16 %v1723, %v1719
  %v1960 = vpack.c.b16 %v1728, %v1724
  %v1961 = vpack.c.b16 %v1729, %v1725
  %v1962 = vpack.c.b16 %v1730, %v1726
  %v1963 = vpack.c.b16 %v1731, %v1727
  %v1964 = vpack.c.b16 %v1736, %v1732
  %v1965 = vpack.c.b16 %v1737, %v1733
  %v1966 = vpack.c.b16 %v1738, %v1734
  %v1967 = vpack.c.b16 %v1739, %v1735
  %v1968 = vpack.c.b16 %v1744, %v1740
  %v1969 = vpack.c.b16 %v1745, %v1741
  %v1970 = vpack.c.b16 %v1746, %v1742
  %v1971 = vpack.c.b16 %v1747, %v1743
  %v1972 = vpack.c.b16 %v1752, %v1748
  %v1973 = vpack.c.b16 %v1753, %v1749
  %v1974 = vpack.c.b16 %v1754, %v1750
  %v1975 = vpack.c.b16 %v1755, %v1751
  %v1976 = vpack.c.b16 %v1760, %v1756
  %v1977 = vpack.c.b16 %v1761, %v1757
  %v1978 = vpack.c.b16 %v1762, %v1758
  %v1979 = vpack.c.b16 %v1763, %v1759
  %v1980 = vpack.c.b16 %v1768, %v1764
  %v1981 = vpack.c.b16 %v1769, %v1765
  %v1982 = vpack.c.b16 %v1770, %v1766
  %v1983 = vpack.c.b16 %v1771, %v1767
  %v1984 = vpack.c.b16 %v1776, %v1772
  %v1985 = vpack.c.b16 %v1777, %v1773
  %v1986 = vpack.c.b16 %v1778, %v1774
  %v1987 = vpack.c.b16 %v1779, %v1775
  %v1988 = vpack.c.b16 %v1784, %v1780
  %v1989 = vpack.c.b16 %v1785, %v1781
  %v1990 = vpack.c.b16 %v1786, %v1782
  %v1991 = vpack.c.b16 %v1787, %v1783
  %v1992 = vpack.c.b16 %v1792, %v1788
  %v1993 = vpack.c.b16 %v1793, %v1789
  %v1994 = vpack.c.b16 %v1794, %v1790
  %v1995 = vpack.c.b16 %v1795, %v1791
  %v1996 = vpack.c.b16 %v1800, %v1796
  %v1997 = vpack.c.b16 %v1801, %v1797
  %v1998 = vpack.c.b16 %v1802, %v1798
  %v1999 = vpack.c.b16 %v1803, %v1799
  %v2000 = vpack.c.b16 %v1808, %v1804
  %v2001 = vpack.c.b16 %v1809, %v1805
  %v2002 = vpack.c.b16 %v1810, %v1806
  %v2003 = vpack.c.b16 %v1811, %v1807
  %v2004 = vpack.c.b16 %v1816, %v1812
  %v2005 = vpack.c.b16 %v1817, %v1813
  %v2006 = vpack.c.b16 %v1818, %v1814
  %v2007 = vpack.c.b16 %v1819, %v1815
  %v2008 = vpack.c.b16 %v1824, %v1820
  %v2009 = vpack.c.b16 %v1825, %v1821
  %v2010 = vpack.c.b16 %v1826, %v1822
  %v2011 = vpack.c.b16 %v1827, %v1823
  %v2012 = vpack.c.b16 %v1832, %v1828
  %v2013 = vpack.c.b16 %v1833, %v1829
  %v2014 = vpack.c.b16 %v1834, %v1830
  %v2015 = vpack.c.b16 %v1835, %v1831
  %v2016 = vpack.c.b16 %v1840, %v1836
  %v2017 = vpack.c.b16 %v1841, %v1837
  %v2018 = vpack.c.b16 %v1842, %v1838
  %v2019 = vpack.c.b16 %v1843, %v1839
  %v2020 = vpack.c.b16 %v1848, %v1844
  %v2021 = vpack.c.b16 %v1849, %v1845
  %v2022 = vpack.c.b16 %v1850, %v1846
  %v2023 = vpack.c.b16 %v1851, %v1847
  %v2024 = vpack.c.b16 %v1856, %v1852
  %v2025 = vpack.c.b16 %v1857, %v1853
  %v2026 = vpack.c.b16 %v1858, %v1854
  %v2027 = vpack.c.b16 %v1859, %v1855
  %v2028 = vpack.c.b16 %v1864, %v1860
  %v2029 = vpack.c.b16 %v1865, %v1861
  %v2030 = vpack.c.b16 %v1866, %v1862
  %v2031 = vpack.c.b16 %v1867, %v1863
  %v2032 = vpack.c.b16 %v1872, %v1868
  %v2033 = vpack.c.b16 %v1873, %v1869
  %v2034 = vpack.c.b16 %v1874, %v1870
  %v2035 = vpack.c.b16 %v1875, %v1871
  %v2036 = vpack.c.b16 %v1880, %v1876
  %v2037 = vpack.c.b16 %v1881, %v1877
  %v2038 = vpack.c.b16 %v1882, %v1878
  %v2039 = vpack.c.b16 %v1883, %v1879
  %v2040 = vpack.c.b16 %v1888, %v1884
  %v2041 = vpack.c.b16 %v1889, %v1885
  %v2042 = vpack.c.b16 %v1890, %v1886
  %v2043 = vpack.c.b16 %v1891, %v1887
  %v2044 = vpack.c.b16 %v1896, %v1892
  %v2045 = vpack.c.b16 %v1897, %v1893
  %v2046 = vpack.c.b16 %v1898, %v1894
  %v2047 = vpack.c.b16 %v1899, %v1895
  %v2048 = vpack.c.b16 %v1904, %v1900
  %v2049 = vpack.c.b16 %v1905, %v1901
  %v2050 = vpack.c.b16 %v1906, %v1902
  %v2051 = vpack.c.b16 %v1907, %v1903
  %v2052 = vpack.c.b16 %v1912, %v1908
  %v2053 = vpack.c.b16 %v1913, %v1909
  %v2054 = vpack.c.b16 %v1914, %v1910
  %v2055 = vpack.c.b16 %v1915, %v1911
  %v2056 = vpack.c.b16 %v1920, %v1916
  %v2057 = vpack.c.b16 %v1921, %v1917
  %v2058 = vpack.c.b16 %v1922, %v1918
  %v2059 = vpack.c.b16 %v1923, %v1919
  %v2060 = vpack.c.b16 %v1928, %v1924
  %v2061 = vpack.c.b16 %v1929, %v1925
  %v2062 = vpack.c.b16 %v1930, %v1926
  %v2063 = vpack.c.b16 %v1931, %v1927
  %v2064 = vpack.c.b16 %v1936, %v1932
  %v2065 = vpack.c.b16 %v1937, %v1933
  %v2066 = vpack.c.b16 %v1938, %v1934
  %v2067 = vpack.c.b16 %v1939, %v1935
  %2196 = vmatpush.bf16.msra.mxu0 %v1968
  %2197 = vmatpush.bf16.msra.mxu0 %v1964
  %2198 = vmatpush.bf16.msra.mxu0 %v1960
  %2199 = vmatpush.bf16.msra.mxu0 %v1956
  %2200 = vmatpush.bf16.msra.mxu0 %v1952
  %2201 = vmatpush.bf16.msra.mxu0 %v1948
  %2202 = vmatpush.bf16.msra.mxu0 %v1944
  %2203 = vmatpush.bf16.msra.mxu0 %v1940
  %2204 = vmatmul.bf16.gmra.mxu0 %v684
  %v2205 = vpop.f32.mrf.mxu0
  %v2206 = vadd.f32 %v1393, %v2205
  %v2207 = vpop.f32.mrf.mxu0
  %2208 = vdwg.mxu0
  %2209 = vmatpush.bf16.msra.mxu0 %v2000
  %2210 = vmatpush.bf16.msra.mxu0 %v1996
  %2211 = vmatpush.bf16.msra.mxu0 %v1992
  %2212 = vmatpush.bf16.msra.mxu0 %v1988
  %2213 = vmatpush.bf16.msra.mxu0 %v1984
  %2214 = vmatpush.bf16.msra.mxu0 %v1980
  %2215 = vmatpush.bf16.msra.mxu0 %v1976
  %2216 = vmatpush.bf16.msra.mxu0 %v1972
  %2217 = vmatmul.bf16.gmra.mxu0 %v685
  %v2218 = vpop.f32.mrf.mxu0
  %v2219 = vadd.f32 %v2206, %v2218
  %v2220 = vpop.f32.mrf.mxu0
  %2221 = vdwg.mxu0
  %2222 = vmatpush.bf16.msra.mxu0 %v2032
  %2223 = vmatpush.bf16.msra.mxu0 %v2028
  %2224 = vmatpush.bf16.msra.mxu0 %v2024
  %2225 = vmatpush.bf16.msra.mxu0 %v2020
  %2226 = vmatpush.bf16.msra.mxu0 %v2016
  %2227 = vmatpush.bf16.msra.mxu0 %v2012
  %2228 = vmatpush.bf16.msra.mxu0 %v2008
  %2229 = vmatpush.bf16.msra.mxu0 %v2004
  %2230 = vmatmul.bf16.gmra.mxu0 %v686
  %v2231 = vpop.f32.mrf.mxu0
  %v2232 = vadd.f32 %v2219, %v2231
  %v2233 = vpop.f32.mrf.mxu0
  %2234 = vdwg.mxu0
  %2235 = vmatpush.bf16.msra.mxu0 %v2064
  %2236 = vmatpush.bf16.msra.mxu0 %v2060
  %2237 = vmatpush.bf16.msra.mxu0 %v2056
  %2238 = vmatpush.bf16.msra.mxu0 %v2052
  %2239 = vmatpush.bf16.msra.mxu0 %v2048
  %2240 = vmatpush.bf16.msra.mxu0 %v2044
  %2241 = vmatpush.bf16.msra.mxu0 %v2040
  %2242 = vmatpush.bf16.msra.mxu0 %v2036
  %2243 = vmatmul.bf16.gmra.mxu0 %v687
  %v2244 = vpop.f32.mrf.mxu0
  %v2245 = vadd.f32 %v2232, %v2244
  %v2246 = vpop.f32.mrf.mxu0
  %2247 = vdwg.mxu0
  %2248 = vmatpush.bf16.msra.mxu0 %v1969
  %2249 = vmatpush.bf16.msra.mxu0 %v1965
  %2250 = vmatpush.bf16.msra.mxu0 %v1961
  %2251 = vmatpush.bf16.msra.mxu0 %v1957
  %2252 = vmatpush.bf16.msra.mxu0 %v1953
  %2253 = vmatpush.bf16.msra.mxu0 %v1949
  %2254 = vmatpush.bf16.msra.mxu0 %v1945
  %2255 = vmatpush.bf16.msra.mxu0 %v1941
  %2256 = vmatmul.bf16.gmra.mxu0 %v684
  %v2257 = vpop.f32.mrf.mxu0
  %v2258 = vadd.f32 %v1445, %v2257
  %v2259 = vpop.f32.mrf.mxu0
  %2260 = vdwg.mxu0
  %2261 = vmatpush.bf16.msra.mxu0 %v2001
  %2262 = vmatpush.bf16.msra.mxu0 %v1997
  %2263 = vmatpush.bf16.msra.mxu0 %v1993
  %2264 = vmatpush.bf16.msra.mxu0 %v1989
  %2265 = vmatpush.bf16.msra.mxu0 %v1985
  %2266 = vmatpush.bf16.msra.mxu0 %v1981
  %2267 = vmatpush.bf16.msra.mxu0 %v1977
  %2268 = vmatpush.bf16.msra.mxu0 %v1973
  %2269 = vmatmul.bf16.gmra.mxu0 %v685
  %v2270 = vpop.f32.mrf.mxu0
  %v2271 = vadd.f32 %v2258, %v2270
  %v2272 = vpop.f32.mrf.mxu0
  %2273 = vdwg.mxu0
  %2274 = vmatpush.bf16.msra.mxu0 %v2033
  %2275 = vmatpush.bf16.msra.mxu0 %v2029
  %2276 = vmatpush.bf16.msra.mxu0 %v2025
  %2277 = vmatpush.bf16.msra.mxu0 %v2021
  %2278 = vmatpush.bf16.msra.mxu0 %v2017
  %2279 = vmatpush.bf16.msra.mxu0 %v2013
  %2280 = vmatpush.bf16.msra.mxu0 %v2009
  %2281 = vmatpush.bf16.msra.mxu0 %v2005
  %2282 = vmatmul.bf16.gmra.mxu0 %v686
  %v2283 = vpop.f32.mrf.mxu0
  %v2284 = vadd.f32 %v2271, %v2283
  %v2285 = vpop.f32.mrf.mxu0
  %2286 = vdwg.mxu0
  %2287 = vmatpush.bf16.msra.mxu0 %v2065
  %2288 = vmatpush.bf16.msra.mxu0 %v2061
  %2289 = vmatpush.bf16.msra.mxu0 %v2057
  %2290 = vmatpush.bf16.msra.mxu0 %v2053
  %2291 = vmatpush.bf16.msra.mxu0 %v2049
  %2292 = vmatpush.bf16.msra.mxu0 %v2045
  %2293 = vmatpush.bf16.msra.mxu0 %v2041
  %2294 = vmatpush.bf16.msra.mxu0 %v2037
  %2295 = vmatmul.bf16.gmra.mxu0 %v687
  %v2296 = vpop.f32.mrf.mxu0
  %v2297 = vadd.f32 %v2284, %v2296
  %v2298 = vpop.f32.mrf.mxu0
  %2299 = vdwg.mxu0
  %2300 = vmatpush.bf16.msra.mxu0 %v1970
  %2301 = vmatpush.bf16.msra.mxu0 %v1966
  %2302 = vmatpush.bf16.msra.mxu0 %v1962
  %2303 = vmatpush.bf16.msra.mxu0 %v1958
  %2304 = vmatpush.bf16.msra.mxu0 %v1954
  %2305 = vmatpush.bf16.msra.mxu0 %v1950
  %2306 = vmatpush.bf16.msra.mxu0 %v1946
  %2307 = vmatpush.bf16.msra.mxu0 %v1942
  %2308 = vmatmul.bf16.gmra.mxu0 %v684
  %v2309 = vpop.f32.mrf.mxu0
  %v2310 = vadd.f32 %v1497, %v2309
  %v2311 = vpop.f32.mrf.mxu0
  %2312 = vdwg.mxu0
  %2313 = vmatpush.bf16.msra.mxu0 %v2002
  %2314 = vmatpush.bf16.msra.mxu0 %v1998
  %2315 = vmatpush.bf16.msra.mxu0 %v1994
  %2316 = vmatpush.bf16.msra.mxu0 %v1990
  %2317 = vmatpush.bf16.msra.mxu0 %v1986
  %2318 = vmatpush.bf16.msra.mxu0 %v1982
  %2319 = vmatpush.bf16.msra.mxu0 %v1978
  %2320 = vmatpush.bf16.msra.mxu0 %v1974
  %2321 = vmatmul.bf16.gmra.mxu0 %v685
  %v2322 = vpop.f32.mrf.mxu0
  %v2323 = vadd.f32 %v2310, %v2322
  %v2324 = vpop.f32.mrf.mxu0
  %2325 = vdwg.mxu0
  %2326 = vmatpush.bf16.msra.mxu0 %v2034
  %2327 = vmatpush.bf16.msra.mxu0 %v2030
  %2328 = vmatpush.bf16.msra.mxu0 %v2026
  %2329 = vmatpush.bf16.msra.mxu0 %v2022
  %2330 = vmatpush.bf16.msra.mxu0 %v2018
  %2331 = vmatpush.bf16.msra.mxu0 %v2014
  %2332 = vmatpush.bf16.msra.mxu0 %v2010
  %2333 = vmatpush.bf16.msra.mxu0 %v2006
  %2334 = vmatmul.bf16.gmra.mxu0 %v686
  %v2335 = vpop.f32.mrf.mxu0
  %v2336 = vadd.f32 %v2323, %v2335
  %v2337 = vpop.f32.mrf.mxu0
  %2338 = vdwg.mxu0
  %2339 = vmatpush.bf16.msra.mxu0 %v2066
  %2340 = vmatpush.bf16.msra.mxu0 %v2062
  %2341 = vmatpush.bf16.msra.mxu0 %v2058
  %2342 = vmatpush.bf16.msra.mxu0 %v2054
  %2343 = vmatpush.bf16.msra.mxu0 %v2050
  %2344 = vmatpush.bf16.msra.mxu0 %v2046
  %2345 = vmatpush.bf16.msra.mxu0 %v2042
  %2346 = vmatpush.bf16.msra.mxu0 %v2038
  %2347 = vmatmul.bf16.gmra.mxu0 %v687
  %v2348 = vpop.f32.mrf.mxu0
  %v2349 = vadd.f32 %v2336, %v2348
  %v2350 = vpop.f32.mrf.mxu0
  %2351 = vdwg.mxu0
  %2352 = vmatpush.bf16.msra.mxu0 %v1971
  %2353 = vmatpush.bf16.msra.mxu0 %v1967
  %2354 = vmatpush.bf16.msra.mxu0 %v1963
  %2355 = vmatpush.bf16.msra.mxu0 %v1959
  %2356 = vmatpush.bf16.msra.mxu0 %v1955
  %2357 = vmatpush.bf16.msra.mxu0 %v1951
  %2358 = vmatpush.bf16.msra.mxu0 %v1947
  %2359 = vmatpush.bf16.msra.mxu0 %v1943
  %2360 = vmatmul.bf16.gmra.mxu0 %v684
  %v2361 = vpop.f32.mrf.mxu0
  %v2362 = vadd.f32 %v1549, %v2361
  %v2363 = vpop.f32.mrf.mxu0
  %2364 = vdwg.mxu0
  %2365 = vmatpush.bf16.msra.mxu0 %v2003
  %2366 = vmatpush.bf16.msra.mxu0 %v1999
  %2367 = vmatpush.bf16.msra.mxu0 %v1995
  %2368 = vmatpush.bf16.msra.mxu0 %v1991
  %2369 = vmatpush.bf16.msra.mxu0 %v1987
  %2370 = vmatpush.bf16.msra.mxu0 %v1983
  %2371 = vmatpush.bf16.msra.mxu0 %v1979
  %2372 = vmatpush.bf16.msra.mxu0 %v1975
  %2373 = vmatmul.bf16.gmra.mxu0 %v685
  %v2374 = vpop.f32.mrf.mxu0
  %v2375 = vadd.f32 %v2362, %v2374
  %v2376 = vpop.f32.mrf.mxu0
  %2377 = vdwg.mxu0
  %2378 = vmatpush.bf16.msra.mxu0 %v2035
  %2379 = vmatpush.bf16.msra.mxu0 %v2031
  %2380 = vmatpush.bf16.msra.mxu0 %v2027
  %2381 = vmatpush.bf16.msra.mxu0 %v2023
  %2382 = vmatpush.bf16.msra.mxu0 %v2019
  %2383 = vmatpush.bf16.msra.mxu0 %v2015
  %2384 = vmatpush.bf16.msra.mxu0 %v2011
  %2385 = vmatpush.bf16.msra.mxu0 %v2007
  %2386 = vmatmul.bf16.gmra.mxu0 %v686
  %v2387 = vpop.f32.mrf.mxu0
  %v2388 = vadd.f32 %v2375, %v2387
  %v2389 = vpop.f32.mrf.mxu0
  %2390 = vdwg.mxu0
  %2391 = vmatpush.bf16.msra.mxu0 %v2067
  %2392 = vmatpush.bf16.msra.mxu0 %v2063
  %2393 = vmatpush.bf16.msra.mxu0 %v2059
  %2394 = vmatpush.bf16.msra.mxu0 %v2055
  %2395 = vmatpush.bf16.msra.mxu0 %v2051
  %2396 = vmatpush.bf16.msra.mxu0 %v2047
  %2397 = vmatpush.bf16.msra.mxu0 %v2043
  %2398 = vmatpush.bf16.msra.mxu0 %v2039
  %2399 = vmatmul.bf16.gmra.mxu0 %v687
  %v2400 = vpop.f32.mrf.mxu0
  %v2401 = vadd.f32 %v2388, %v2400
  %v2402 = vpop.f32.mrf.mxu0
  %2403 = vdwg.mxu0
  %v2404 = vld [vmem:[%s4 + $0x800] sm:$0xff]
  %v2405 = vld [vmem:[%s4 + $0x808] sm:$0xff]
  %v2406 = vld [vmem:[%s4 + $0x810] sm:$0xff]
  %v2407 = vld [vmem:[%s4 + $0x818] sm:$0xff]
  %v2408 = vld [vmem:[%s4 + $0x820] sm:$0xff]
  %v2409 = vld [vmem:[%s4 + $0x828] sm:$0xff]
  %v2410 = vld [vmem:[%s4 + $0x830] sm:$0xff]
  %v2411 = vld [vmem:[%s4 + $0x838] sm:$0xff]
  %v2412 = vld [vmem:[%s4 + $0x840] sm:$0xff]
  %v2413 = vld [vmem:[%s4 + $0x848] sm:$0xff]
  %v2414 = vld [vmem:[%s4 + $0x850] sm:$0xff]
  %v2415 = vld [vmem:[%s4 + $0x858] sm:$0xff]
  %v2416 = vld [vmem:[%s4 + $0x860] sm:$0xff]
  %v2417 = vld [vmem:[%s4 + $0x868] sm:$0xff]
  %v2418 = vld [vmem:[%s4 + $0x870] sm:$0xff]
  %v2419 = vld [vmem:[%s4 + $0x878] sm:$0xff]
  %v2420 = vld [vmem:[%s4 + $0x880] sm:$0xff]
  %v2421 = vld [vmem:[%s4 + $0x888] sm:$0xff]
  %v2422 = vld [vmem:[%s4 + $0x890] sm:$0xff]
  %v2423 = vld [vmem:[%s4 + $0x898] sm:$0xff]
  %v2424 = vld [vmem:[%s4 + $0x8a0] sm:$0xff]
  %v2425 = vld [vmem:[%s4 + $0x8a8] sm:$0xff]
  %v2426 = vld [vmem:[%s4 + $0x8b0] sm:$0xff]
  %v2427 = vld [vmem:[%s4 + $0x8b8] sm:$0xff]
  %v2428 = vld [vmem:[%s4 + $0x8c0] sm:$0xff]
  %v2429 = vld [vmem:[%s4 + $0x8c8] sm:$0xff]
  %v2430 = vld [vmem:[%s4 + $0x8d0] sm:$0xff]
  %v2431 = vld [vmem:[%s4 + $0x8d8] sm:$0xff]
  %v2432 = vld [vmem:[%s4 + $0x8e0] sm:$0xff]
  %v2433 = vld [vmem:[%s4 + $0x8e8] sm:$0xff]
  %v2434 = vld [vmem:[%s4 + $0x8f0] sm:$0xff]
  %v2435 = vld [vmem:[%s4 + $0x8f8] sm:$0xff]
  %v2436 = vld [vmem:[%s4 + $0x900] sm:$0xff]
  %v2437 = vld [vmem:[%s4 + $0x908] sm:$0xff]
  %v2438 = vld [vmem:[%s4 + $0x910] sm:$0xff]
  %v2439 = vld [vmem:[%s4 + $0x918] sm:$0xff]
  %v2440 = vld [vmem:[%s4 + $0x920] sm:$0xff]
  %v2441 = vld [vmem:[%s4 + $0x928] sm:$0xff]
  %v2442 = vld [vmem:[%s4 + $0x930] sm:$0xff]
  %v2443 = vld [vmem:[%s4 + $0x938] sm:$0xff]
  %v2444 = vld [vmem:[%s4 + $0x940] sm:$0xff]
  %v2445 = vld [vmem:[%s4 + $0x948] sm:$0xff]
  %v2446 = vld [vmem:[%s4 + $0x950] sm:$0xff]
  %v2447 = vld [vmem:[%s4 + $0x958] sm:$0xff]
  %v2448 = vld [vmem:[%s4 + $0x960] sm:$0xff]
  %v2449 = vld [vmem:[%s4 + $0x968] sm:$0xff]
  %v2450 = vld [vmem:[%s4 + $0x970] sm:$0xff]
  %v2451 = vld [vmem:[%s4 + $0x978] sm:$0xff]
  %v2452 = vld [vmem:[%s4 + $0x980] sm:$0xff]
  %v2453 = vld [vmem:[%s4 + $0x988] sm:$0xff]
  %v2454 = vld [vmem:[%s4 + $0x990] sm:$0xff]
  %v2455 = vld [vmem:[%s4 + $0x998] sm:$0xff]
  %v2456 = vld [vmem:[%s4 + $0x9a0] sm:$0xff]
  %v2457 = vld [vmem:[%s4 + $0x9a8] sm:$0xff]
  %v2458 = vld [vmem:[%s4 + $0x9b0] sm:$0xff]
  %v2459 = vld [vmem:[%s4 + $0x9b8] sm:$0xff]
  %v2460 = vld [vmem:[%s4 + $0x9c0] sm:$0xff]
  %v2461 = vld [vmem:[%s4 + $0x9c8] sm:$0xff]
  %v2462 = vld [vmem:[%s4 + $0x9d0] sm:$0xff]
  %v2463 = vld [vmem:[%s4 + $0x9d8] sm:$0xff]
  %v2464 = vld [vmem:[%s4 + $0x9e0] sm:$0xff]
  %v2465 = vld [vmem:[%s4 + $0x9e8] sm:$0xff]
  %v2466 = vld [vmem:[%s4 + $0x9f0] sm:$0xff]
  %v2467 = vld [vmem:[%s4 + $0x9f8] sm:$0xff]
  %v2468 = vld [vmem:[%s4 + $0xa00] sm:$0xff]
  %v2469 = vld [vmem:[%s4 + $0xa08] sm:$0xff]
  %v2470 = vld [vmem:[%s4 + $0xa10] sm:$0xff]
  %v2471 = vld [vmem:[%s4 + $0xa18] sm:$0xff]
  %v2472 = vld [vmem:[%s4 + $0xa20] sm:$0xff]
  %v2473 = vld [vmem:[%s4 + $0xa28] sm:$0xff]
  %v2474 = vld [vmem:[%s4 + $0xa30] sm:$0xff]
  %v2475 = vld [vmem:[%s4 + $0xa38] sm:$0xff]
  %v2476 = vld [vmem:[%s4 + $0xa40] sm:$0xff]
  %v2477 = vld [vmem:[%s4 + $0xa48] sm:$0xff]
  %v2478 = vld [vmem:[%s4 + $0xa50] sm:$0xff]
  %v2479 = vld [vmem:[%s4 + $0xa58] sm:$0xff]
  %v2480 = vld [vmem:[%s4 + $0xa60] sm:$0xff]
  %v2481 = vld [vmem:[%s4 + $0xa68] sm:$0xff]
  %v2482 = vld [vmem:[%s4 + $0xa70] sm:$0xff]
  %v2483 = vld [vmem:[%s4 + $0xa78] sm:$0xff]
  %v2484 = vld [vmem:[%s4 + $0xa80] sm:$0xff]
  %v2485 = vld [vmem:[%s4 + $0xa88] sm:$0xff]
  %v2486 = vld [vmem:[%s4 + $0xa90] sm:$0xff]
  %v2487 = vld [vmem:[%s4 + $0xa98] sm:$0xff]
  %v2488 = vld [vmem:[%s4 + $0xaa0] sm:$0xff]
  %v2489 = vld [vmem:[%s4 + $0xaa8] sm:$0xff]
  %v2490 = vld [vmem:[%s4 + $0xab0] sm:$0xff]
  %v2491 = vld [vmem:[%s4 + $0xab8] sm:$0xff]
  %v2492 = vld [vmem:[%s4 + $0xac0] sm:$0xff]
  %v2493 = vld [vmem:[%s4 + $0xac8] sm:$0xff]
  %v2494 = vld [vmem:[%s4 + $0xad0] sm:$0xff]
  %v2495 = vld [vmem:[%s4 + $0xad8] sm:$0xff]
  %v2496 = vld [vmem:[%s4 + $0xae0] sm:$0xff]
  %v2497 = vld [vmem:[%s4 + $0xae8] sm:$0xff]
  %v2498 = vld [vmem:[%s4 + $0xaf0] sm:$0xff]
  %v2499 = vld [vmem:[%s4 + $0xaf8] sm:$0xff]
  %v2500 = vld [vmem:[%s4 + $0xb00] sm:$0xff]
  %v2501 = vld [vmem:[%s4 + $0xb08] sm:$0xff]
  %v2502 = vld [vmem:[%s4 + $0xb10] sm:$0xff]
  %v2503 = vld [vmem:[%s4 + $0xb18] sm:$0xff]
  %v2504 = vld [vmem:[%s4 + $0xb20] sm:$0xff]
  %v2505 = vld [vmem:[%s4 + $0xb28] sm:$0xff]
  %v2506 = vld [vmem:[%s4 + $0xb30] sm:$0xff]
  %v2507 = vld [vmem:[%s4 + $0xb38] sm:$0xff]
  %v2508 = vld [vmem:[%s4 + $0xb40] sm:$0xff]
  %v2509 = vld [vmem:[%s4 + $0xb48] sm:$0xff]
  %v2510 = vld [vmem:[%s4 + $0xb50] sm:$0xff]
  %v2511 = vld [vmem:[%s4 + $0xb58] sm:$0xff]
  %v2512 = vld [vmem:[%s4 + $0xb60] sm:$0xff]
  %v2513 = vld [vmem:[%s4 + $0xb68] sm:$0xff]
  %v2514 = vld [vmem:[%s4 + $0xb70] sm:$0xff]
  %v2515 = vld [vmem:[%s4 + $0xb78] sm:$0xff]
  %v2516 = vld [vmem:[%s4 + $0xb80] sm:$0xff]
  %v2517 = vld [vmem:[%s4 + $0xb88] sm:$0xff]
  %v2518 = vld [vmem:[%s4 + $0xb90] sm:$0xff]
  %v2519 = vld [vmem:[%s4 + $0xb98] sm:$0xff]
  %v2520 = vld [vmem:[%s4 + $0xba0] sm:$0xff]
  %v2521 = vld [vmem:[%s4 + $0xba8] sm:$0xff]
  %v2522 = vld [vmem:[%s4 + $0xbb0] sm:$0xff]
  %v2523 = vld [vmem:[%s4 + $0xbb8] sm:$0xff]
  %v2524 = vld [vmem:[%s4 + $0xbc0] sm:$0xff]
  %v2525 = vld [vmem:[%s4 + $0xbc8] sm:$0xff]
  %v2526 = vld [vmem:[%s4 + $0xbd0] sm:$0xff]
  %v2527 = vld [vmem:[%s4 + $0xbd8] sm:$0xff]
  %v2528 = vld [vmem:[%s4 + $0xbe0] sm:$0xff]
  %v2529 = vld [vmem:[%s4 + $0xbe8] sm:$0xff]
  %v2530 = vld [vmem:[%s4 + $0xbf0] sm:$0xff]
  %v2531 = vld [vmem:[%s4 + $0xbf8] sm:$0xff]
  %v2532 = vrot.slane %v684, 1
  %v2533 = vrot.slane %v685, 1
  %v2534 = vrot.slane %v686, 1
  %v2535 = vrot.slane %v687, 1
  %v2668 = vunpack.c.l.b16 %v2404
  %v2669 = vunpack.c.h.b16 %v2404
  %v2670 = vunpack.c.l.b16 %v2405
  %v2671 = vunpack.c.h.b16 %v2405
  %v2672 = vunpack.c.l.b16 %v2406
  %v2673 = vunpack.c.h.b16 %v2406
  %v2674 = vunpack.c.l.b16 %v2407
  %v2675 = vunpack.c.h.b16 %v2407
  %v2676 = vunpack.c.l.b16 %v2408
  %v2677 = vunpack.c.h.b16 %v2408
  %v2678 = vunpack.c.l.b16 %v2409
  %v2679 = vunpack.c.h.b16 %v2409
  %v2680 = vunpack.c.l.b16 %v2410
  %v2681 = vunpack.c.h.b16 %v2410
  %v2682 = vunpack.c.l.b16 %v2411
  %v2683 = vunpack.c.h.b16 %v2411
  %v2684 = vunpack.c.l.b16 %v2412
  %v2685 = vunpack.c.h.b16 %v2412
  %v2686 = vunpack.c.l.b16 %v2413
  %v2687 = vunpack.c.h.b16 %v2413
  %v2688 = vunpack.c.l.b16 %v2414
  %v2689 = vunpack.c.h.b16 %v2414
  %v2690 = vunpack.c.l.b16 %v2415
  %v2691 = vunpack.c.h.b16 %v2415
  %v2692 = vunpack.c.l.b16 %v2416
  %v2693 = vunpack.c.h.b16 %v2416
  %v2694 = vunpack.c.l.b16 %v2417
  %v2695 = vunpack.c.h.b16 %v2417
  %v2696 = vunpack.c.l.b16 %v2418
  %v2697 = vunpack.c.h.b16 %v2418
  %v2698 = vunpack.c.l.b16 %v2419
  %v2699 = vunpack.c.h.b16 %v2419
  %v2700 = vunpack.c.l.b16 %v2420
  %v2701 = vunpack.c.h.b16 %v2420
  %v2702 = vunpack.c.l.b16 %v2421
  %v2703 = vunpack.c.h.b16 %v2421
  %v2704 = vunpack.c.l.b16 %v2422
  %v2705 = vunpack.c.h.b16 %v2422
  %v2706 = vunpack.c.l.b16 %v2423
  %v2707 = vunpack.c.h.b16 %v2423
  %v2708 = vunpack.c.l.b16 %v2424
  %v2709 = vunpack.c.h.b16 %v2424
  %v2710 = vunpack.c.l.b16 %v2425
  %v2711 = vunpack.c.h.b16 %v2425
  %v2712 = vunpack.c.l.b16 %v2426
  %v2713 = vunpack.c.h.b16 %v2426
  %v2714 = vunpack.c.l.b16 %v2427
  %v2715 = vunpack.c.h.b16 %v2427
  %v2716 = vunpack.c.l.b16 %v2428
  %v2717 = vunpack.c.h.b16 %v2428
  %v2718 = vunpack.c.l.b16 %v2429
  %v2719 = vunpack.c.h.b16 %v2429
  %v2720 = vunpack.c.l.b16 %v2430
  %v2721 = vunpack.c.h.b16 %v2430
  %v2722 = vunpack.c.l.b16 %v2431
  %v2723 = vunpack.c.h.b16 %v2431
  %v2724 = vunpack.c.l.b16 %v2432
  %v2725 = vunpack.c.h.b16 %v2432
  %v2726 = vunpack.c.l.b16 %v2433
  %v2727 = vunpack.c.h.b16 %v2433
  %v2728 = vunpack.c.l.b16 %v2434
  %v2729 = vunpack.c.h.b16 %v2434
  %v2730 = vunpack.c.l.b16 %v2435
  %v2731 = vunpack.c.h.b16 %v2435
  %v2732 = vunpack.c.l.b16 %v2436
  %v2733 = vunpack.c.h.b16 %v2436
  %v2734 = vunpack.c.l.b16 %v2437
  %v2735 = vunpack.c.h.b16 %v2437
  %v2736 = vunpack.c.l.b16 %v2438
  %v2737 = vunpack.c.h.b16 %v2438
  %v2738 = vunpack.c.l.b16 %v2439
  %v2739 = vunpack.c.h.b16 %v2439
  %v2740 = vunpack.c.l.b16 %v2440
  %v2741 = vunpack.c.h.b16 %v2440
  %v2742 = vunpack.c.l.b16 %v2441
  %v2743 = vunpack.c.h.b16 %v2441
  %v2744 = vunpack.c.l.b16 %v2442
  %v2745 = vunpack.c.h.b16 %v2442
  %v2746 = vunpack.c.l.b16 %v2443
  %v2747 = vunpack.c.h.b16 %v2443
  %v2748 = vunpack.c.l.b16 %v2444
  %v2749 = vunpack.c.h.b16 %v2444
  %v2750 = vunpack.c.l.b16 %v2445
  %v2751 = vunpack.c.h.b16 %v2445
  %v2752 = vunpack.c.l.b16 %v2446
  %v2753 = vunpack.c.h.b16 %v2446
  %v2754 = vunpack.c.l.b16 %v2447
  %v2755 = vunpack.c.h.b16 %v2447
  %v2756 = vunpack.c.l.b16 %v2448
  %v2757 = vunpack.c.h.b16 %v2448
  %v2758 = vunpack.c.l.b16 %v2449
  %v2759 = vunpack.c.h.b16 %v2449
  %v2760 = vunpack.c.l.b16 %v2450
  %v2761 = vunpack.c.h.b16 %v2450
  %v2762 = vunpack.c.l.b16 %v2451
  %v2763 = vunpack.c.h.b16 %v2451
  %v2764 = vunpack.c.l.b16 %v2452
  %v2765 = vunpack.c.h.b16 %v2452
  %v2766 = vunpack.c.l.b16 %v2453
  %v2767 = vunpack.c.h.b16 %v2453
  %v2768 = vunpack.c.l.b16 %v2454
  %v2769 = vunpack.c.h.b16 %v2454
  %v2770 = vunpack.c.l.b16 %v2455
  %v2771 = vunpack.c.h.b16 %v2455
  %v2772 = vunpack.c.l.b16 %v2456
  %v2773 = vunpack.c.h.b16 %v2456
  %v2774 = vunpack.c.l.b16 %v2457
  %v2775 = vunpack.c.h.b16 %v2457
  %v2776 = vunpack.c.l.b16 %v2458
  %v2777 = vunpack.c.h.b16 %v2458
  %v2778 = vunpack.c.l.b16 %v2459
  %v2779 = vunpack.c.h.b16 %v2459
  %v2780 = vunpack.c.l.b16 %v2460
  %v2781 = vunpack.c.h.b16 %v2460
  %v2782 = vunpack.c.l.b16 %v2461
  %v2783 = vunpack.c.h.b16 %v2461
  %v2784 = vunpack.c.l.b16 %v2462
  %v2785 = vunpack.c.h.b16 %v2462
  %v2786 = vunpack.c.l.b16 %v2463
  %v2787 = vunpack.c.h.b16 %v2463
  %v2788 = vunpack.c.l.b16 %v2464
  %v2789 = vunpack.c.h.b16 %v2464
  %v2790 = vunpack.c.l.b16 %v2465
  %v2791 = vunpack.c.h.b16 %v2465
  %v2792 = vunpack.c.l.b16 %v2466
  %v2793 = vunpack.c.h.b16 %v2466
  %v2794 = vunpack.c.l.b16 %v2467
  %v2795 = vunpack.c.h.b16 %v2467
  %v2796 = vunpack.c.l.b16 %v2468
  %v2797 = vunpack.c.h.b16 %v2468
  %v2798 = vunpack.c.l.b16 %v2469
  %v2799 = vunpack.c.h.b16 %v2469
  %v2800 = vunpack.c.l.b16 %v2470
  %v2801 = vunpack.c.h.b16 %v2470
  %v2802 = vunpack.c.l.b16 %v2471
  %v2803 = vunpack.c.h.b16 %v2471
  %v2804 = vunpack.c.l.b16 %v2472
  %v2805 = vunpack.c.h.b16 %v2472
  %v2806 = vunpack.c.l.b16 %v2473
  %v2807 = vunpack.c.h.b16 %v2473
  %v2808 = vunpack.c.l.b16 %v2474
  %v2809 = vunpack.c.h.b16 %v2474
  %v2810 = vunpack.c.l.b16 %v2475
  %v2811 = vunpack.c.h.b16 %v2475
  %v2812 = vunpack.c.l.b16 %v2476
  %v2813 = vunpack.c.h.b16 %v2476
  %v2814 = vunpack.c.l.b16 %v2477
  %v2815 = vunpack.c.h.b16 %v2477
  %v2816 = vunpack.c.l.b16 %v2478
  %v2817 = vunpack.c.h.b16 %v2478
  %v2818 = vunpack.c.l.b16 %v2479
  %v2819 = vunpack.c.h.b16 %v2479
  %v2820 = vunpack.c.l.b16 %v2480
  %v2821 = vunpack.c.h.b16 %v2480
  %v2822 = vunpack.c.l.b16 %v2481
  %v2823 = vunpack.c.h.b16 %v2481
  %v2824 = vunpack.c.l.b16 %v2482
  %v2825 = vunpack.c.h.b16 %v2482
  %v2826 = vunpack.c.l.b16 %v2483
  %v2827 = vunpack.c.h.b16 %v2483
  %v2828 = vunpack.c.l.b16 %v2484
  %v2829 = vunpack.c.h.b16 %v2484
  %v2830 = vunpack.c.l.b16 %v2485
  %v2831 = vunpack.c.h.b16 %v2485
  %v2832 = vunpack.c.l.b16 %v2486
  %v2833 = vunpack.c.h.b16 %v2486
  %v2834 = vunpack.c.l.b16 %v2487
  %v2835 = vunpack.c.h.b16 %v2487
  %v2836 = vunpack.c.l.b16 %v2488
  %v2837 = vunpack.c.h.b16 %v2488
  %v2838 = vunpack.c.l.b16 %v2489
  %v2839 = vunpack.c.h.b16 %v2489
  %v2840 = vunpack.c.l.b16 %v2490
  %v2841 = vunpack.c.h.b16 %v2490
  %v2842 = vunpack.c.l.b16 %v2491
  %v2843 = vunpack.c.h.b16 %v2491
  %v2844 = vunpack.c.l.b16 %v2492
  %v2845 = vunpack.c.h.b16 %v2492
  %v2846 = vunpack.c.l.b16 %v2493
  %v2847 = vunpack.c.h.b16 %v2493
  %v2848 = vunpack.c.l.b16 %v2494
  %v2849 = vunpack.c.h.b16 %v2494
  %v2850 = vunpack.c.l.b16 %v2495
  %v2851 = vunpack.c.h.b16 %v2495
  %v2852 = vunpack.c.l.b16 %v2496
  %v2853 = vunpack.c.h.b16 %v2496
  %v2854 = vunpack.c.l.b16 %v2497
  %v2855 = vunpack.c.h.b16 %v2497
  %v2856 = vunpack.c.l.b16 %v2498
  %v2857 = vunpack.c.h.b16 %v2498
  %v2858 = vunpack.c.l.b16 %v2499
  %v2859 = vunpack.c.h.b16 %v2499
  %v2860 = vunpack.c.l.b16 %v2500
  %v2861 = vunpack.c.h.b16 %v2500
  %v2862 = vunpack.c.l.b16 %v2501
  %v2863 = vunpack.c.h.b16 %v2501
  %v2864 = vunpack.c.l.b16 %v2502
  %v2865 = vunpack.c.h.b16 %v2502
  %v2866 = vunpack.c.l.b16 %v2503
  %v2867 = vunpack.c.h.b16 %v2503
  %v2868 = vunpack.c.l.b16 %v2504
  %v2869 = vunpack.c.h.b16 %v2504
  %v2870 = vunpack.c.l.b16 %v2505
  %v2871 = vunpack.c.h.b16 %v2505
  %v2872 = vunpack.c.l.b16 %v2506
  %v2873 = vunpack.c.h.b16 %v2506
  %v2874 = vunpack.c.l.b16 %v2507
  %v2875 = vunpack.c.h.b16 %v2507
  %v2876 = vunpack.c.l.b16 %v2508
  %v2877 = vunpack.c.h.b16 %v2508
  %v2878 = vunpack.c.l.b16 %v2509
  %v2879 = vunpack.c.h.b16 %v2509
  %v2880 = vunpack.c.l.b16 %v2510
  %v2881 = vunpack.c.h.b16 %v2510
  %v2882 = vunpack.c.l.b16 %v2511
  %v2883 = vunpack.c.h.b16 %v2511
  %v2884 = vunpack.c.l.b16 %v2512
  %v2885 = vunpack.c.h.b16 %v2512
  %v2886 = vunpack.c.l.b16 %v2513
  %v2887 = vunpack.c.h.b16 %v2513
  %v2888 = vunpack.c.l.b16 %v2514
  %v2889 = vunpack.c.h.b16 %v2514
  %v2890 = vunpack.c.l.b16 %v2515
  %v2891 = vunpack.c.h.b16 %v2515
  %v2892 = vunpack.c.l.b16 %v2516
  %v2893 = vunpack.c.h.b16 %v2516
  %v2894 = vunpack.c.l.b16 %v2517
  %v2895 = vunpack.c.h.b16 %v2517
  %v2896 = vunpack.c.l.b16 %v2518
  %v2897 = vunpack.c.h.b16 %v2518
  %v2898 = vunpack.c.l.b16 %v2519
  %v2899 = vunpack.c.h.b16 %v2519
  %v2900 = vunpack.c.l.b16 %v2520
  %v2901 = vunpack.c.h.b16 %v2520
  %v2902 = vunpack.c.l.b16 %v2521
  %v2903 = vunpack.c.h.b16 %v2521
  %v2904 = vunpack.c.l.b16 %v2522
  %v2905 = vunpack.c.h.b16 %v2522
  %v2906 = vunpack.c.l.b16 %v2523
  %v2907 = vunpack.c.h.b16 %v2523
  %v2908 = vunpack.c.l.b16 %v2524
  %v2909 = vunpack.c.h.b16 %v2524
  %v2910 = vunpack.c.l.b16 %v2525
  %v2911 = vunpack.c.h.b16 %v2525
  %v2912 = vunpack.c.l.b16 %v2526
  %v2913 = vunpack.c.h.b16 %v2526
  %v2914 = vunpack.c.l.b16 %v2527
  %v2915 = vunpack.c.h.b16 %v2527
  %v2916 = vunpack.c.l.b16 %v2528
  %v2917 = vunpack.c.h.b16 %v2528
  %v2918 = vunpack.c.l.b16 %v2529
  %v2919 = vunpack.c.h.b16 %v2529
  %v2920 = vunpack.c.l.b16 %v2530
  %v2921 = vunpack.c.h.b16 %v2530
  %v2922 = vunpack.c.l.b16 %v2531
  %v2923 = vunpack.c.h.b16 %v2531
  %v2924 = vpack.c.b16 %v2672, %v2668
  %v2925 = vpack.c.b16 %v2673, %v2669
  %v2926 = vpack.c.b16 %v2674, %v2670
  %v2927 = vpack.c.b16 %v2675, %v2671
  %v2928 = vpack.c.b16 %v2680, %v2676
  %v2929 = vpack.c.b16 %v2681, %v2677
  %v2930 = vpack.c.b16 %v2682, %v2678
  %v2931 = vpack.c.b16 %v2683, %v2679
  %v2932 = vpack.c.b16 %v2688, %v2684
  %v2933 = vpack.c.b16 %v2689, %v2685
  %v2934 = vpack.c.b16 %v2690, %v2686
  %v2935 = vpack.c.b16 %v2691, %v2687
  %v2936 = vpack.c.b16 %v2696, %v2692
  %v2937 = vpack.c.b16 %v2697, %v2693
  %v2938 = vpack.c.b16 %v2698, %v2694
  %v2939 = vpack.c.b16 %v2699, %v2695
  %v2940 = vpack.c.b16 %v2704, %v2700
  %v2941 = vpack.c.b16 %v2705, %v2701
  %v2942 = vpack.c.b16 %v2706, %v2702
  %v2943 = vpack.c.b16 %v2707, %v2703
  %v2944 = vpack.c.b16 %v2712, %v2708
  %v2945 = vpack.c.b16 %v2713, %v2709
  %v2946 = vpack.c.b16 %v2714, %v2710
  %v2947 = vpack.c.b16 %v2715, %v2711
  %v2948 = vpack.c.b16 %v2720, %v2716
  %v2949 = vpack.c.b16 %v2721, %v2717
  %v2950 = vpack.c.b16 %v2722, %v2718
  %v2951 = vpack.c.b16 %v2723, %v2719
  %v2952 = vpack.c.b16 %v2728, %v2724
  %v2953 = vpack.c.b16 %v2729, %v2725
  %v2954 = vpack.c.b16 %v2730, %v2726
  %v2955 = vpack.c.b16 %v2731, %v2727
  %v2956 = vpack.c.b16 %v2736, %v2732
  %v2957 = vpack.c.b16 %v2737, %v2733
  %v2958 = vpack.c.b16 %v2738, %v2734
  %v2959 = vpack.c.b16 %v2739, %v2735
  %v2960 = vpack.c.b16 %v2744, %v2740
  %v2961 = vpack.c.b16 %v2745, %v2741
  %v2962 = vpack.c.b16 %v2746, %v2742
  %v2963 = vpack.c.b16 %v2747, %v2743
  %v2964 = vpack.c.b16 %v2752, %v2748
  %v2965 = vpack.c.b16 %v2753, %v2749
  %v2966 = vpack.c.b16 %v2754, %v2750
  %v2967 = vpack.c.b16 %v2755, %v2751
  %v2968 = vpack.c.b16 %v2760, %v2756
  %v2969 = vpack.c.b16 %v2761, %v2757
  %v2970 = vpack.c.b16 %v2762, %v2758
  %v2971 = vpack.c.b16 %v2763, %v2759
  %v2972 = vpack.c.b16 %v2768, %v2764
  %v2973 = vpack.c.b16 %v2769, %v2765
  %v2974 = vpack.c.b16 %v2770, %v2766
  %v2975 = vpack.c.b16 %v2771, %v2767
  %v2976 = vpack.c.b16 %v2776, %v2772
  %v2977 = vpack.c.b16 %v2777, %v2773
  %v2978 = vpack.c.b16 %v2778, %v2774
  %v2979 = vpack.c.b16 %v2779, %v2775
  %v2980 = vpack.c.b16 %v2784, %v2780
  %v2981 = vpack.c.b16 %v2785, %v2781
  %v2982 = vpack.c.b16 %v2786, %v2782
  %v2983 = vpack.c.b16 %v2787, %v2783
  %v2984 = vpack.c.b16 %v2792, %v2788
  %v2985 = vpack.c.b16 %v2793, %v2789
  %v2986 = vpack.c.b16 %v2794, %v2790
  %v2987 = vpack.c.b16 %v2795, %v2791
  %v2988 = vpack.c.b16 %v2800, %v2796
  %v2989 = vpack.c.b16 %v2801, %v2797
  %v2990 = vpack.c.b16 %v2802, %v2798
  %v2991 = vpack.c.b16 %v2803, %v2799
  %v2992 = vpack.c.b16 %v2808, %v2804
  %v2993 = vpack.c.b16 %v2809, %v2805
  %v2994 = vpack.c.b16 %v2810, %v2806
  %v2995 = vpack.c.b16 %v2811, %v2807
  %v2996 = vpack.c.b16 %v2816, %v2812
  %v2997 = vpack.c.b16 %v2817, %v2813
  %v2998 = vpack.c.b16 %v2818, %v2814
  %v2999 = vpack.c.b16 %v2819, %v2815
  %v3000 = vpack.c.b16 %v2824, %v2820
  %v3001 = vpack.c.b16 %v2825, %v2821
  %v3002 = vpack.c.b16 %v2826, %v2822
  %v3003 = vpack.c.b16 %v2827, %v2823
  %v3004 = vpack.c.b16 %v2832, %v2828
  %v3005 = vpack.c.b16 %v2833, %v2829
  %v3006 = vpack.c.b16 %v2834, %v2830
  %v3007 = vpack.c.b16 %v2835, %v2831
  %v3008 = vpack.c.b16 %v2840, %v2836
  %v3009 = vpack.c.b16 %v2841, %v2837
  %v3010 = vpack.c.b16 %v2842, %v2838
  %v3011 = vpack.c.b16 %v2843, %v2839
  %v3012 = vpack.c.b16 %v2848, %v2844
  %v3013 = vpack.c.b16 %v2849, %v2845
  %v3014 = vpack.c.b16 %v2850, %v2846
  %v3015 = vpack.c.b16 %v2851, %v2847
  %v3016 = vpack.c.b16 %v2856, %v2852
  %v3017 = vpack.c.b16 %v2857, %v2853
  %v3018 = vpack.c.b16 %v2858, %v2854
  %v3019 = vpack.c.b16 %v2859, %v2855
  %v3020 = vpack.c.b16 %v2864, %v2860
  %v3021 = vpack.c.b16 %v2865, %v2861
  %v3022 = vpack.c.b16 %v2866, %v2862
  %v3023 = vpack.c.b16 %v2867, %v2863
  %v3024 = vpack.c.b16 %v2872, %v2868
  %v3025 = vpack.c.b16 %v2873, %v2869
  %v3026 = vpack.c.b16 %v2874, %v2870
  %v3027 = vpack.c.b16 %v2875, %v2871
  %v3028 = vpack.c.b16 %v2880, %v2876
  %v3029 = vpack.c.b16 %v2881, %v2877
  %v3030 = vpack.c.b16 %v2882, %v2878
  %v3031 = vpack.c.b16 %v2883, %v2879
  %v3032 = vpack.c.b16 %v2888, %v2884
  %v3033 = vpack.c.b16 %v2889, %v2885
  %v3034 = vpack.c.b16 %v2890, %v2886
  %v3035 = vpack.c.b16 %v2891, %v2887
  %v3036 = vpack.c.b16 %v2896, %v2892
  %v3037 = vpack.c.b16 %v2897, %v2893
  %v3038 = vpack.c.b16 %v2898, %v2894
  %v3039 = vpack.c.b16 %v2899, %v2895
  %v3040 = vpack.c.b16 %v2904, %v2900
  %v3041 = vpack.c.b16 %v2905, %v2901
  %v3042 = vpack.c.b16 %v2906, %v2902
  %v3043 = vpack.c.b16 %v2907, %v2903
  %v3044 = vpack.c.b16 %v2912, %v2908
  %v3045 = vpack.c.b16 %v2913, %v2909
  %v3046 = vpack.c.b16 %v2914, %v2910
  %v3047 = vpack.c.b16 %v2915, %v2911
  %v3048 = vpack.c.b16 %v2920, %v2916
  %v3049 = vpack.c.b16 %v2921, %v2917
  %v3050 = vpack.c.b16 %v2922, %v2918
  %v3051 = vpack.c.b16 %v2923, %v2919
  %3180 = vmatpush.bf16.msra.mxu0 %v2952
  %3181 = vmatpush.bf16.msra.mxu0 %v2948
  %3182 = vmatpush.bf16.msra.mxu0 %v2944
  %3183 = vmatpush.bf16.msra.mxu0 %v2940
  %3184 = vmatpush.bf16.msra.mxu0 %v2936
  %3185 = vmatpush.bf16.msra.mxu0 %v2932
  %3186 = vmatpush.bf16.msra.mxu0 %v2928
  %3187 = vmatpush.bf16.msra.mxu0 %v2924
  %3188 = vmatmul.bf16.gmra.mxu0 %v2532
  %v3189 = vpop.f32.mrf.mxu0
  %v3190 = vadd.f32 0.0, %v3189
  %v3191 = vpop.f32.mrf.mxu0
  %3192 = vdwg.mxu0
  %3193 = vmatpush.bf16.msra.mxu0 %v2984
  %3194 = vmatpush.bf16.msra.mxu0 %v2980
  %3195 = vmatpush.bf16.msra.mxu0 %v2976
  %3196 = vmatpush.bf16.msra.mxu0 %v2972
  %3197 = vmatpush.bf16.msra.mxu0 %v2968
  %3198 = vmatpush.bf16.msra.mxu0 %v2964
  %3199 = vmatpush.bf16.msra.mxu0 %v2960
  %3200 = vmatpush.bf16.msra.mxu0 %v2956
  %3201 = vmatmul.bf16.gmra.mxu0 %v2533
  %v3202 = vpop.f32.mrf.mxu0
  %v3203 = vadd.f32 %v3190, %v3202
  %v3204 = vpop.f32.mrf.mxu0
  %3205 = vdwg.mxu0
  %3206 = vmatpush.bf16.msra.mxu0 %v3016
  %3207 = vmatpush.bf16.msra.mxu0 %v3012
  %3208 = vmatpush.bf16.msra.mxu0 %v3008
  %3209 = vmatpush.bf16.msra.mxu0 %v3004
  %3210 = vmatpush.bf16.msra.mxu0 %v3000
  %3211 = vmatpush.bf16.msra.mxu0 %v2996
  %3212 = vmatpush.bf16.msra.mxu0 %v2992
  %3213 = vmatpush.bf16.msra.mxu0 %v2988
  %3214 = vmatmul.bf16.gmra.mxu0 %v2534
  %v3215 = vpop.f32.mrf.mxu0
  %v3216 = vadd.f32 %v3203, %v3215
  %v3217 = vpop.f32.mrf.mxu0
  %3218 = vdwg.mxu0
  %3219 = vmatpush.bf16.msra.mxu0 %v3048
  %3220 = vmatpush.bf16.msra.mxu0 %v3044
  %3221 = vmatpush.bf16.msra.mxu0 %v3040
  %3222 = vmatpush.bf16.msra.mxu0 %v3036
  %3223 = vmatpush.bf16.msra.mxu0 %v3032
  %3224 = vmatpush.bf16.msra.mxu0 %v3028
  %3225 = vmatpush.bf16.msra.mxu0 %v3024
  %3226 = vmatpush.bf16.msra.mxu0 %v3020
  %3227 = vmatmul.bf16.gmra.mxu0 %v2535
  %v3228 = vpop.f32.mrf.mxu0
  %v3229 = vadd.f32 %v3216, %v3228
  %v3230 = vpop.f32.mrf.mxu0
  %3231 = vdwg.mxu0
  %3232 = vmatpush.bf16.msra.mxu0 %v2953
  %3233 = vmatpush.bf16.msra.mxu0 %v2949
  %3234 = vmatpush.bf16.msra.mxu0 %v2945
  %3235 = vmatpush.bf16.msra.mxu0 %v2941
  %3236 = vmatpush.bf16.msra.mxu0 %v2937
  %3237 = vmatpush.bf16.msra.mxu0 %v2933
  %3238 = vmatpush.bf16.msra.mxu0 %v2929
  %3239 = vmatpush.bf16.msra.mxu0 %v2925
  %3240 = vmatmul.bf16.gmra.mxu0 %v2532
  %v3241 = vpop.f32.mrf.mxu0
  %v3242 = vadd.f32 0.0, %v3241
  %v3243 = vpop.f32.mrf.mxu0
  %3244 = vdwg.mxu0
  %3245 = vmatpush.bf16.msra.mxu0 %v2985
  %3246 = vmatpush.bf16.msra.mxu0 %v2981
  %3247 = vmatpush.bf16.msra.mxu0 %v2977
  %3248 = vmatpush.bf16.msra.mxu0 %v2973
  %3249 = vmatpush.bf16.msra.mxu0 %v2969
  %3250 = vmatpush.bf16.msra.mxu0 %v2965
  %3251 = vmatpush.bf16.msra.mxu0 %v2961
  %3252 = vmatpush.bf16.msra.mxu0 %v2957
  %3253 = vmatmul.bf16.gmra.mxu0 %v2533
  %v3254 = vpop.f32.mrf.mxu0
  %v3255 = vadd.f32 %v3242, %v3254
  %v3256 = vpop.f32.mrf.mxu0
  %3257 = vdwg.mxu0
  %3258 = vmatpush.bf16.msra.mxu0 %v3017
  %3259 = vmatpush.bf16.msra.mxu0 %v3013
  %3260 = vmatpush.bf16.msra.mxu0 %v3009
  %3261 = vmatpush.bf16.msra.mxu0 %v3005
  %3262 = vmatpush.bf16.msra.mxu0 %v3001
  %3263 = vmatpush.bf16.msra.mxu0 %v2997
  %3264 = vmatpush.bf16.msra.mxu0 %v2993
  %3265 = vmatpush.bf16.msra.mxu0 %v2989
  %3266 = vmatmul.bf16.gmra.mxu0 %v2534
  %v3267 = vpop.f32.mrf.mxu0
  %v3268 = vadd.f32 %v3255, %v3267
  %v3269 = vpop.f32.mrf.mxu0
  %3270 = vdwg.mxu0
  %3271 = vmatpush.bf16.msra.mxu0 %v3049
  %3272 = vmatpush.bf16.msra.mxu0 %v3045
  %3273 = vmatpush.bf16.msra.mxu0 %v3041
  %3274 = vmatpush.bf16.msra.mxu0 %v3037
  %3275 = vmatpush.bf16.msra.mxu0 %v3033
  %3276 = vmatpush.bf16.msra.mxu0 %v3029
  %3277 = vmatpush.bf16.msra.mxu0 %v3025
  %3278 = vmatpush.bf16.msra.mxu0 %v3021
  %3279 = vmatmul.bf16.gmra.mxu0 %v2535
  %v3280 = vpop.f32.mrf.mxu0
  %v3281 = vadd.f32 %v3268, %v3280
  %v3282 = vpop.f32.mrf.mxu0
  %3283 = vdwg.mxu0
  %3284 = vmatpush.bf16.msra.mxu0 %v2954
  %3285 = vmatpush.bf16.msra.mxu0 %v2950
  %3286 = vmatpush.bf16.msra.mxu0 %v2946
  %3287 = vmatpush.bf16.msra.mxu0 %v2942
  %3288 = vmatpush.bf16.msra.mxu0 %v2938
  %3289 = vmatpush.bf16.msra.mxu0 %v2934
  %3290 = vmatpush.bf16.msra.mxu0 %v2930
  %3291 = vmatpush.bf16.msra.mxu0 %v2926
  %3292 = vmatmul.bf16.gmra.mxu0 %v2532
  %v3293 = vpop.f32.mrf.mxu0
  %v3294 = vadd.f32 0.0, %v3293
  %v3295 = vpop.f32.mrf.mxu0
  %3296 = vdwg.mxu0
  %3297 = vmatpush.bf16.msra.mxu0 %v2986
  %3298 = vmatpush.bf16.msra.mxu0 %v2982
  %3299 = vmatpush.bf16.msra.mxu0 %v2978
  %3300 = vmatpush.bf16.msra.mxu0 %v2974
  %3301 = vmatpush.bf16.msra.mxu0 %v2970
  %3302 = vmatpush.bf16.msra.mxu0 %v2966
  %3303 = vmatpush.bf16.msra.mxu0 %v2962
  %3304 = vmatpush.bf16.msra.mxu0 %v2958
  %3305 = vmatmul.bf16.gmra.mxu0 %v2533
  %v3306 = vpop.f32.mrf.mxu0
  %v3307 = vadd.f32 %v3294, %v3306
  %v3308 = vpop.f32.mrf.mxu0
  %3309 = vdwg.mxu0
  %3310 = vmatpush.bf16.msra.mxu0 %v3018
  %3311 = vmatpush.bf16.msra.mxu0 %v3014
  %3312 = vmatpush.bf16.msra.mxu0 %v3010
  %3313 = vmatpush.bf16.msra.mxu0 %v3006
  %3314 = vmatpush.bf16.msra.mxu0 %v3002
  %3315 = vmatpush.bf16.msra.mxu0 %v2998
  %3316 = vmatpush.bf16.msra.mxu0 %v2994
  %3317 = vmatpush.bf16.msra.mxu0 %v2990
  %3318 = vmatmul.bf16.gmra.mxu0 %v2534
  %v3319 = vpop.f32.mrf.mxu0
  %v3320 = vadd.f32 %v3307, %v3319
  %v3321 = vpop.f32.mrf.mxu0
  %3322 = vdwg.mxu0
  %3323 = vmatpush.bf16.msra.mxu0 %v3050
  %3324 = vmatpush.bf16.msra.mxu0 %v3046
  %3325 = vmatpush.bf16.msra.mxu0 %v3042
  %3326 = vmatpush.bf16.msra.mxu0 %v3038
  %3327 = vmatpush.bf16.msra.mxu0 %v3034
  %3328 = vmatpush.bf16.msra.mxu0 %v3030
  %3329 = vmatpush.bf16.msra.mxu0 %v3026
  %3330 = vmatpush.bf16.msra.mxu0 %v3022
  %3331 = vmatmul.bf16.gmra.mxu0 %v2535
  %v3332 = vpop.f32.mrf.mxu0
  %v3333 = vadd.f32 %v3320, %v3332
  %v3334 = vpop.f32.mrf.mxu0
  %3335 = vdwg.mxu0
  %3336 = vmatpush.bf16.msra.mxu0 %v2955
  %3337 = vmatpush.bf16.msra.mxu0 %v2951
  %3338 = vmatpush.bf16.msra.mxu0 %v2947
  %3339 = vmatpush.bf16.msra.mxu0 %v2943
  %3340 = vmatpush.bf16.msra.mxu0 %v2939
  %3341 = vmatpush.bf16.msra.mxu0 %v2935
  %3342 = vmatpush.bf16.msra.mxu0 %v2931
  %3343 = vmatpush.bf16.msra.mxu0 %v2927
  %3344 = vmatmul.bf16.gmra.mxu0 %v2532
  %v3345 = vpop.f32.mrf.mxu0
  %v3346 = vadd.f32 0.0, %v3345
  %v3347 = vpop.f32.mrf.mxu0
  %3348 = vdwg.mxu0
  %3349 = vmatpush.bf16.msra.mxu0 %v2987
  %3350 = vmatpush.bf16.msra.mxu0 %v2983
  %3351 = vmatpush.bf16.msra.mxu0 %v2979
  %3352 = vmatpush.bf16.msra.mxu0 %v2975
  %3353 = vmatpush.bf16.msra.mxu0 %v2971
  %3354 = vmatpush.bf16.msra.mxu0 %v2967
  %3355 = vmatpush.bf16.msra.mxu0 %v2963
  %3356 = vmatpush.bf16.msra.mxu0 %v2959
  %3357 = vmatmul.bf16.gmra.mxu0 %v2533
  %v3358 = vpop.f32.mrf.mxu0
  %v3359 = vadd.f32 %v3346, %v3358
  %v3360 = vpop.f32.mrf.mxu0
  %3361 = vdwg.mxu0
  %3362 = vmatpush.bf16.msra.mxu0 %v3019
  %3363 = vmatpush.bf16.msra.mxu0 %v3015
  %3364 = vmatpush.bf16.msra.mxu0 %v3011
  %3365 = vmatpush.bf16.msra.mxu0 %v3007
  %3366 = vmatpush.bf16.msra.mxu0 %v3003
  %3367 = vmatpush.bf16.msra.mxu0 %v2999
  %3368 = vmatpush.bf16.msra.mxu0 %v2995
  %3369 = vmatpush.bf16.msra.mxu0 %v2991
  %3370 = vmatmul.bf16.gmra.mxu0 %v2534
  %v3371 = vpop.f32.mrf.mxu0
  %v3372 = vadd.f32 %v3359, %v3371
  %v3373 = vpop.f32.mrf.mxu0
  %3374 = vdwg.mxu0
  %3375 = vmatpush.bf16.msra.mxu0 %v3051
  %3376 = vmatpush.bf16.msra.mxu0 %v3047
  %3377 = vmatpush.bf16.msra.mxu0 %v3043
  %3378 = vmatpush.bf16.msra.mxu0 %v3039
  %3379 = vmatpush.bf16.msra.mxu0 %v3035
  %3380 = vmatpush.bf16.msra.mxu0 %v3031
  %3381 = vmatpush.bf16.msra.mxu0 %v3027
  %3382 = vmatpush.bf16.msra.mxu0 %v3023
  %3383 = vmatmul.bf16.gmra.mxu0 %v2535
  %v3384 = vpop.f32.mrf.mxu0
  %v3385 = vadd.f32 %v3372, %v3384
  %v3386 = vpop.f32.mrf.mxu0
  %3387 = vdwg.mxu0
  %v3388 = vadd.f32 %v2245, %v3229
  %v3389 = vadd.f32 %v2297, %v3281
  %v3390 = vadd.f32 %v2349, %v3333
  %v3391 = vadd.f32 %v2401, %v3385
  %v3392 = vld [vmem:[%s4 + $0xc00] sm:$0xff]
  %v3393 = vld [vmem:[%s4 + $0xc08] sm:$0xff]
  %v3394 = vld [vmem:[%s4 + $0xc10] sm:$0xff]
  %v3395 = vld [vmem:[%s4 + $0xc18] sm:$0xff]
  %v3396 = vld [vmem:[%s4 + $0xc20] sm:$0xff]
  %v3397 = vld [vmem:[%s4 + $0xc28] sm:$0xff]
  %v3398 = vld [vmem:[%s4 + $0xc30] sm:$0xff]
  %v3399 = vld [vmem:[%s4 + $0xc38] sm:$0xff]
  %v3400 = vld [vmem:[%s4 + $0xc40] sm:$0xff]
  %v3401 = vld [vmem:[%s4 + $0xc48] sm:$0xff]
  %v3402 = vld [vmem:[%s4 + $0xc50] sm:$0xff]
  %v3403 = vld [vmem:[%s4 + $0xc58] sm:$0xff]
  %v3404 = vld [vmem:[%s4 + $0xc60] sm:$0xff]
  %v3405 = vld [vmem:[%s4 + $0xc68] sm:$0xff]
  %v3406 = vld [vmem:[%s4 + $0xc70] sm:$0xff]
  %v3407 = vld [vmem:[%s4 + $0xc78] sm:$0xff]
  %v3408 = vld [vmem:[%s4 + $0xc80] sm:$0xff]
  %v3409 = vld [vmem:[%s4 + $0xc88] sm:$0xff]
  %v3410 = vld [vmem:[%s4 + $0xc90] sm:$0xff]
  %v3411 = vld [vmem:[%s4 + $0xc98] sm:$0xff]
  %v3412 = vld [vmem:[%s4 + $0xca0] sm:$0xff]
  %v3413 = vld [vmem:[%s4 + $0xca8] sm:$0xff]
  %v3414 = vld [vmem:[%s4 + $0xcb0] sm:$0xff]
  %v3415 = vld [vmem:[%s4 + $0xcb8] sm:$0xff]
  %v3416 = vld [vmem:[%s4 + $0xcc0] sm:$0xff]
  %v3417 = vld [vmem:[%s4 + $0xcc8] sm:$0xff]
  %v3418 = vld [vmem:[%s4 + $0xcd0] sm:$0xff]
  %v3419 = vld [vmem:[%s4 + $0xcd8] sm:$0xff]
  %v3420 = vld [vmem:[%s4 + $0xce0] sm:$0xff]
  %v3421 = vld [vmem:[%s4 + $0xce8] sm:$0xff]
  %v3422 = vld [vmem:[%s4 + $0xcf0] sm:$0xff]
  %v3423 = vld [vmem:[%s4 + $0xcf8] sm:$0xff]
  %v3424 = vld [vmem:[%s4 + $0xd00] sm:$0xff]
  %v3425 = vld [vmem:[%s4 + $0xd08] sm:$0xff]
  %v3426 = vld [vmem:[%s4 + $0xd10] sm:$0xff]
  %v3427 = vld [vmem:[%s4 + $0xd18] sm:$0xff]
  %v3428 = vld [vmem:[%s4 + $0xd20] sm:$0xff]
  %v3429 = vld [vmem:[%s4 + $0xd28] sm:$0xff]
  %v3430 = vld [vmem:[%s4 + $0xd30] sm:$0xff]
  %v3431 = vld [vmem:[%s4 + $0xd38] sm:$0xff]
  %v3432 = vld [vmem:[%s4 + $0xd40] sm:$0xff]
  %v3433 = vld [vmem:[%s4 + $0xd48] sm:$0xff]
  %v3434 = vld [vmem:[%s4 + $0xd50] sm:$0xff]
  %v3435 = vld [vmem:[%s4 + $0xd58] sm:$0xff]
  %v3436 = vld [vmem:[%s4 + $0xd60] sm:$0xff]
  %v3437 = vld [vmem:[%s4 + $0xd68] sm:$0xff]
  %v3438 = vld [vmem:[%s4 + $0xd70] sm:$0xff]
  %v3439 = vld [vmem:[%s4 + $0xd78] sm:$0xff]
  %v3440 = vld [vmem:[%s4 + $0xd80] sm:$0xff]
  %v3441 = vld [vmem:[%s4 + $0xd88] sm:$0xff]
  %v3442 = vld [vmem:[%s4 + $0xd90] sm:$0xff]
  %v3443 = vld [vmem:[%s4 + $0xd98] sm:$0xff]
  %v3444 = vld [vmem:[%s4 + $0xda0] sm:$0xff]
  %v3445 = vld [vmem:[%s4 + $0xda8] sm:$0xff]
  %v3446 = vld [vmem:[%s4 + $0xdb0] sm:$0xff]
  %v3447 = vld [vmem:[%s4 + $0xdb8] sm:$0xff]
  %v3448 = vld [vmem:[%s4 + $0xdc0] sm:$0xff]
  %v3449 = vld [vmem:[%s4 + $0xdc8] sm:$0xff]
  %v3450 = vld [vmem:[%s4 + $0xdd0] sm:$0xff]
  %v3451 = vld [vmem:[%s4 + $0xdd8] sm:$0xff]
  %v3452 = vld [vmem:[%s4 + $0xde0] sm:$0xff]
  %v3453 = vld [vmem:[%s4 + $0xde8] sm:$0xff]
  %v3454 = vld [vmem:[%s4 + $0xdf0] sm:$0xff]
  %v3455 = vld [vmem:[%s4 + $0xdf8] sm:$0xff]
  %v3456 = vld [vmem:[%s4 + $0xe00] sm:$0xff]
  %v3457 = vld [vmem:[%s4 + $0xe08] sm:$0xff]
  %v3458 = vld [vmem:[%s4 + $0xe10] sm:$0xff]
  %v3459 = vld [vmem:[%s4 + $0xe18] sm:$0xff]
  %v3460 = vld [vmem:[%s4 + $0xe20] sm:$0xff]
  %v3461 = vld [vmem:[%s4 + $0xe28] sm:$0xff]
  %v3462 = vld [vmem:[%s4 + $0xe30] sm:$0xff]
  %v3463 = vld [vmem:[%s4 + $0xe38] sm:$0xff]
  %v3464 = vld [vmem:[%s4 + $0xe40] sm:$0xff]
  %v3465 = vld [vmem:[%s4 + $0xe48] sm:$0xff]
  %v3466 = vld [vmem:[%s4 + $0xe50] sm:$0xff]
  %v3467 = vld [vmem:[%s4 + $0xe58] sm:$0xff]
  %v3468 = vld [vmem:[%s4 + $0xe60] sm:$0xff]
  %v3469 = vld [vmem:[%s4 + $0xe68] sm:$0xff]
  %v3470 = vld [vmem:[%s4 + $0xe70] sm:$0xff]
  %v3471 = vld [vmem:[%s4 + $0xe78] sm:$0xff]
  %v3472 = vld [vmem:[%s4 + $0xe80] sm:$0xff]
  %v3473 = vld [vmem:[%s4 + $0xe88] sm:$0xff]
  %v3474 = vld [vmem:[%s4 + $0xe90] sm:$0xff]
  %v3475 = vld [vmem:[%s4 + $0xe98] sm:$0xff]
  %v3476 = vld [vmem:[%s4 + $0xea0] sm:$0xff]
  %v3477 = vld [vmem:[%s4 + $0xea8] sm:$0xff]
  %v3478 = vld [vmem:[%s4 + $0xeb0] sm:$0xff]
  %v3479 = vld [vmem:[%s4 + $0xeb8] sm:$0xff]
  %v3480 = vld [vmem:[%s4 + $0xec0] sm:$0xff]
  %v3481 = vld [vmem:[%s4 + $0xec8] sm:$0xff]
  %v3482 = vld [vmem:[%s4 + $0xed0] sm:$0xff]
  %v3483 = vld [vmem:[%s4 + $0xed8] sm:$0xff]
  %v3484 = vld [vmem:[%s4 + $0xee0] sm:$0xff]
  %v3485 = vld [vmem:[%s4 + $0xee8] sm:$0xff]
  %v3486 = vld [vmem:[%s4 + $0xef0] sm:$0xff]
  %v3487 = vld [vmem:[%s4 + $0xef8] sm:$0xff]
  %v3488 = vld [vmem:[%s4 + $0xf00] sm:$0xff]
  %v3489 = vld [vmem:[%s4 + $0xf08] sm:$0xff]
  %v3490 = vld [vmem:[%s4 + $0xf10] sm:$0xff]
  %v3491 = vld [vmem:[%s4 + $0xf18] sm:$0xff]
  %v3492 = vld [vmem:[%s4 + $0xf20] sm:$0xff]
  %v3493 = vld [vmem:[%s4 + $0xf28] sm:$0xff]
  %v3494 = vld [vmem:[%s4 + $0xf30] sm:$0xff]
  %v3495 = vld [vmem:[%s4 + $0xf38] sm:$0xff]
  %v3496 = vld [vmem:[%s4 + $0xf40] sm:$0xff]
  %v3497 = vld [vmem:[%s4 + $0xf48] sm:$0xff]
  %v3498 = vld [vmem:[%s4 + $0xf50] sm:$0xff]
  %v3499 = vld [vmem:[%s4 + $0xf58] sm:$0xff]
  %v3500 = vld [vmem:[%s4 + $0xf60] sm:$0xff]
  %v3501 = vld [vmem:[%s4 + $0xf68] sm:$0xff]
  %v3502 = vld [vmem:[%s4 + $0xf70] sm:$0xff]
  %v3503 = vld [vmem:[%s4 + $0xf78] sm:$0xff]
  %v3504 = vld [vmem:[%s4 + $0xf80] sm:$0xff]
  %v3505 = vld [vmem:[%s4 + $0xf88] sm:$0xff]
  %v3506 = vld [vmem:[%s4 + $0xf90] sm:$0xff]
  %v3507 = vld [vmem:[%s4 + $0xf98] sm:$0xff]
  %v3508 = vld [vmem:[%s4 + $0xfa0] sm:$0xff]
  %v3509 = vld [vmem:[%s4 + $0xfa8] sm:$0xff]
  %v3510 = vld [vmem:[%s4 + $0xfb0] sm:$0xff]
  %v3511 = vld [vmem:[%s4 + $0xfb8] sm:$0xff]
  %v3512 = vld [vmem:[%s4 + $0xfc0] sm:$0xff]
  %v3513 = vld [vmem:[%s4 + $0xfc8] sm:$0xff]
  %v3514 = vld [vmem:[%s4 + $0xfd0] sm:$0xff]
  %v3515 = vld [vmem:[%s4 + $0xfd8] sm:$0xff]
  %v3516 = vld [vmem:[%s4 + $0xfe0] sm:$0xff]
  %v3517 = vld [vmem:[%s4 + $0xfe8] sm:$0xff]
  %v3518 = vld [vmem:[%s4 + $0xff0] sm:$0xff]
  %v3519 = vld [vmem:[%s4 + $0xff8] sm:$0xff]
  %v3520 = vrot.slane %v689, 1
  %v3521 = vrot.slane %v692, 1
  %v3522 = vrot.slane %v695, 1
  %v3523 = vrot.slane %v698, 1
  %v3656 = vunpack.c.l.b16 %v3392
  %v3657 = vunpack.c.h.b16 %v3392
  %v3658 = vunpack.c.l.b16 %v3393
  %v3659 = vunpack.c.h.b16 %v3393
  %v3660 = vunpack.c.l.b16 %v3394
  %v3661 = vunpack.c.h.b16 %v3394
  %v3662 = vunpack.c.l.b16 %v3395
  %v3663 = vunpack.c.h.b16 %v3395
  %v3664 = vunpack.c.l.b16 %v3396
  %v3665 = vunpack.c.h.b16 %v3396
  %v3666 = vunpack.c.l.b16 %v3397
  %v3667 = vunpack.c.h.b16 %v3397
  %v3668 = vunpack.c.l.b16 %v3398
  %v3669 = vunpack.c.h.b16 %v3398
  %v3670 = vunpack.c.l.b16 %v3399
  %v3671 = vunpack.c.h.b16 %v3399
  %v3672 = vunpack.c.l.b16 %v3400
  %v3673 = vunpack.c.h.b16 %v3400
  %v3674 = vunpack.c.l.b16 %v3401
  %v3675 = vunpack.c.h.b16 %v3401
  %v3676 = vunpack.c.l.b16 %v3402
  %v3677 = vunpack.c.h.b16 %v3402
  %v3678 = vunpack.c.l.b16 %v3403
  %v3679 = vunpack.c.h.b16 %v3403
  %v3680 = vunpack.c.l.b16 %v3404
  %v3681 = vunpack.c.h.b16 %v3404
  %v3682 = vunpack.c.l.b16 %v3405
  %v3683 = vunpack.c.h.b16 %v3405
  %v3684 = vunpack.c.l.b16 %v3406
  %v3685 = vunpack.c.h.b16 %v3406
  %v3686 = vunpack.c.l.b16 %v3407
  %v3687 = vunpack.c.h.b16 %v3407
  %v3688 = vunpack.c.l.b16 %v3408
  %v3689 = vunpack.c.h.b16 %v3408
  %v3690 = vunpack.c.l.b16 %v3409
  %v3691 = vunpack.c.h.b16 %v3409
  %v3692 = vunpack.c.l.b16 %v3410
  %v3693 = vunpack.c.h.b16 %v3410
  %v3694 = vunpack.c.l.b16 %v3411
  %v3695 = vunpack.c.h.b16 %v3411
  %v3696 = vunpack.c.l.b16 %v3412
  %v3697 = vunpack.c.h.b16 %v3412
  %v3698 = vunpack.c.l.b16 %v3413
  %v3699 = vunpack.c.h.b16 %v3413
  %v3700 = vunpack.c.l.b16 %v3414
  %v3701 = vunpack.c.h.b16 %v3414
  %v3702 = vunpack.c.l.b16 %v3415
  %v3703 = vunpack.c.h.b16 %v3415
  %v3704 = vunpack.c.l.b16 %v3416
  %v3705 = vunpack.c.h.b16 %v3416
  %v3706 = vunpack.c.l.b16 %v3417
  %v3707 = vunpack.c.h.b16 %v3417
  %v3708 = vunpack.c.l.b16 %v3418
  %v3709 = vunpack.c.h.b16 %v3418
  %v3710 = vunpack.c.l.b16 %v3419
  %v3711 = vunpack.c.h.b16 %v3419
  %v3712 = vunpack.c.l.b16 %v3420
  %v3713 = vunpack.c.h.b16 %v3420
  %v3714 = vunpack.c.l.b16 %v3421
  %v3715 = vunpack.c.h.b16 %v3421
  %v3716 = vunpack.c.l.b16 %v3422
  %v3717 = vunpack.c.h.b16 %v3422
  %v3718 = vunpack.c.l.b16 %v3423
  %v3719 = vunpack.c.h.b16 %v3423
  %v3720 = vunpack.c.l.b16 %v3424
  %v3721 = vunpack.c.h.b16 %v3424
  %v3722 = vunpack.c.l.b16 %v3425
  %v3723 = vunpack.c.h.b16 %v3425
  %v3724 = vunpack.c.l.b16 %v3426
  %v3725 = vunpack.c.h.b16 %v3426
  %v3726 = vunpack.c.l.b16 %v3427
  %v3727 = vunpack.c.h.b16 %v3427
  %v3728 = vunpack.c.l.b16 %v3428
  %v3729 = vunpack.c.h.b16 %v3428
  %v3730 = vunpack.c.l.b16 %v3429
  %v3731 = vunpack.c.h.b16 %v3429
  %v3732 = vunpack.c.l.b16 %v3430
  %v3733 = vunpack.c.h.b16 %v3430
  %v3734 = vunpack.c.l.b16 %v3431
  %v3735 = vunpack.c.h.b16 %v3431
  %v3736 = vunpack.c.l.b16 %v3432
  %v3737 = vunpack.c.h.b16 %v3432
  %v3738 = vunpack.c.l.b16 %v3433
  %v3739 = vunpack.c.h.b16 %v3433
  %v3740 = vunpack.c.l.b16 %v3434
  %v3741 = vunpack.c.h.b16 %v3434
  %v3742 = vunpack.c.l.b16 %v3435
  %v3743 = vunpack.c.h.b16 %v3435
  %v3744 = vunpack.c.l.b16 %v3436
  %v3745 = vunpack.c.h.b16 %v3436
  %v3746 = vunpack.c.l.b16 %v3437
  %v3747 = vunpack.c.h.b16 %v3437
  %v3748 = vunpack.c.l.b16 %v3438
  %v3749 = vunpack.c.h.b16 %v3438
  %v3750 = vunpack.c.l.b16 %v3439
  %v3751 = vunpack.c.h.b16 %v3439
  %v3752 = vunpack.c.l.b16 %v3440
  %v3753 = vunpack.c.h.b16 %v3440
  %v3754 = vunpack.c.l.b16 %v3441
  %v3755 = vunpack.c.h.b16 %v3441
  %v3756 = vunpack.c.l.b16 %v3442
  %v3757 = vunpack.c.h.b16 %v3442
  %v3758 = vunpack.c.l.b16 %v3443
  %v3759 = vunpack.c.h.b16 %v3443
  %v3760 = vunpack.c.l.b16 %v3444
  %v3761 = vunpack.c.h.b16 %v3444
  %v3762 = vunpack.c.l.b16 %v3445
  %v3763 = vunpack.c.h.b16 %v3445
  %v3764 = vunpack.c.l.b16 %v3446
  %v3765 = vunpack.c.h.b16 %v3446
  %v3766 = vunpack.c.l.b16 %v3447
  %v3767 = vunpack.c.h.b16 %v3447
  %v3768 = vunpack.c.l.b16 %v3448
  %v3769 = vunpack.c.h.b16 %v3448
  %v3770 = vunpack.c.l.b16 %v3449
  %v3771 = vunpack.c.h.b16 %v3449
  %v3772 = vunpack.c.l.b16 %v3450
  %v3773 = vunpack.c.h.b16 %v3450
  %v3774 = vunpack.c.l.b16 %v3451
  %v3775 = vunpack.c.h.b16 %v3451
  %v3776 = vunpack.c.l.b16 %v3452
  %v3777 = vunpack.c.h.b16 %v3452
  %v3778 = vunpack.c.l.b16 %v3453
  %v3779 = vunpack.c.h.b16 %v3453
  %v3780 = vunpack.c.l.b16 %v3454
  %v3781 = vunpack.c.h.b16 %v3454
  %v3782 = vunpack.c.l.b16 %v3455
  %v3783 = vunpack.c.h.b16 %v3455
  %v3784 = vunpack.c.l.b16 %v3456
  %v3785 = vunpack.c.h.b16 %v3456
  %v3786 = vunpack.c.l.b16 %v3457
  %v3787 = vunpack.c.h.b16 %v3457
  %v3788 = vunpack.c.l.b16 %v3458
  %v3789 = vunpack.c.h.b16 %v3458
  %v3790 = vunpack.c.l.b16 %v3459
  %v3791 = vunpack.c.h.b16 %v3459
  %v3792 = vunpack.c.l.b16 %v3460
  %v3793 = vunpack.c.h.b16 %v3460
  %v3794 = vunpack.c.l.b16 %v3461
  %v3795 = vunpack.c.h.b16 %v3461
  %v3796 = vunpack.c.l.b16 %v3462
  %v3797 = vunpack.c.h.b16 %v3462
  %v3798 = vunpack.c.l.b16 %v3463
  %v3799 = vunpack.c.h.b16 %v3463
  %v3800 = vunpack.c.l.b16 %v3464
  %v3801 = vunpack.c.h.b16 %v3464
  %v3802 = vunpack.c.l.b16 %v3465
  %v3803 = vunpack.c.h.b16 %v3465
  %v3804 = vunpack.c.l.b16 %v3466
  %v3805 = vunpack.c.h.b16 %v3466
  %v3806 = vunpack.c.l.b16 %v3467
  %v3807 = vunpack.c.h.b16 %v3467
  %v3808 = vunpack.c.l.b16 %v3468
  %v3809 = vunpack.c.h.b16 %v3468
  %v3810 = vunpack.c.l.b16 %v3469
  %v3811 = vunpack.c.h.b16 %v3469
  %v3812 = vunpack.c.l.b16 %v3470
  %v3813 = vunpack.c.h.b16 %v3470
  %v3814 = vunpack.c.l.b16 %v3471
  %v3815 = vunpack.c.h.b16 %v3471
  %v3816 = vunpack.c.l.b16 %v3472
  %v3817 = vunpack.c.h.b16 %v3472
  %v3818 = vunpack.c.l.b16 %v3473
  %v3819 = vunpack.c.h.b16 %v3473
  %v3820 = vunpack.c.l.b16 %v3474
  %v3821 = vunpack.c.h.b16 %v3474
  %v3822 = vunpack.c.l.b16 %v3475
  %v3823 = vunpack.c.h.b16 %v3475
  %v3824 = vunpack.c.l.b16 %v3476
  %v3825 = vunpack.c.h.b16 %v3476
  %v3826 = vunpack.c.l.b16 %v3477
  %v3827 = vunpack.c.h.b16 %v3477
  %v3828 = vunpack.c.l.b16 %v3478
  %v3829 = vunpack.c.h.b16 %v3478
  %v3830 = vunpack.c.l.b16 %v3479
  %v3831 = vunpack.c.h.b16 %v3479
  %v3832 = vunpack.c.l.b16 %v3480
  %v3833 = vunpack.c.h.b16 %v3480
  %v3834 = vunpack.c.l.b16 %v3481
  %v3835 = vunpack.c.h.b16 %v3481
  %v3836 = vunpack.c.l.b16 %v3482
  %v3837 = vunpack.c.h.b16 %v3482
  %v3838 = vunpack.c.l.b16 %v3483
  %v3839 = vunpack.c.h.b16 %v3483
  %v3840 = vunpack.c.l.b16 %v3484
  %v3841 = vunpack.c.h.b16 %v3484
  %v3842 = vunpack.c.l.b16 %v3485
  %v3843 = vunpack.c.h.b16 %v3485
  %v3844 = vunpack.c.l.b16 %v3486
  %v3845 = vunpack.c.h.b16 %v3486
  %v3846 = vunpack.c.l.b16 %v3487
  %v3847 = vunpack.c.h.b16 %v3487
  %v3848 = vunpack.c.l.b16 %v3488
  %v3849 = vunpack.c.h.b16 %v3488
  %v3850 = vunpack.c.l.b16 %v3489
  %v3851 = vunpack.c.h.b16 %v3489
  %v3852 = vunpack.c.l.b16 %v3490
  %v3853 = vunpack.c.h.b16 %v3490
  %v3854 = vunpack.c.l.b16 %v3491
  %v3855 = vunpack.c.h.b16 %v3491
  %v3856 = vunpack.c.l.b16 %v3492
  %v3857 = vunpack.c.h.b16 %v3492
  %v3858 = vunpack.c.l.b16 %v3493
  %v3859 = vunpack.c.h.b16 %v3493
  %v3860 = vunpack.c.l.b16 %v3494
  %v3861 = vunpack.c.h.b16 %v3494
  %v3862 = vunpack.c.l.b16 %v3495
  %v3863 = vunpack.c.h.b16 %v3495
  %v3864 = vunpack.c.l.b16 %v3496
  %v3865 = vunpack.c.h.b16 %v3496
  %v3866 = vunpack.c.l.b16 %v3497
  %v3867 = vunpack.c.h.b16 %v3497
  %v3868 = vunpack.c.l.b16 %v3498
  %v3869 = vunpack.c.h.b16 %v3498
  %v3870 = vunpack.c.l.b16 %v3499
  %v3871 = vunpack.c.h.b16 %v3499
  %v3872 = vunpack.c.l.b16 %v3500
  %v3873 = vunpack.c.h.b16 %v3500
  %v3874 = vunpack.c.l.b16 %v3501
  %v3875 = vunpack.c.h.b16 %v3501
  %v3876 = vunpack.c.l.b16 %v3502
  %v3877 = vunpack.c.h.b16 %v3502
  %v3878 = vunpack.c.l.b16 %v3503
  %v3879 = vunpack.c.h.b16 %v3503
  %v3880 = vunpack.c.l.b16 %v3504
  %v3881 = vunpack.c.h.b16 %v3504
  %v3882 = vunpack.c.l.b16 %v3505
  %v3883 = vunpack.c.h.b16 %v3505
  %v3884 = vunpack.c.l.b16 %v3506
  %v3885 = vunpack.c.h.b16 %v3506
  %v3886 = vunpack.c.l.b16 %v3507
  %v3887 = vunpack.c.h.b16 %v3507
  %v3888 = vunpack.c.l.b16 %v3508
  %v3889 = vunpack.c.h.b16 %v3508
  %v3890 = vunpack.c.l.b16 %v3509
  %v3891 = vunpack.c.h.b16 %v3509
  %v3892 = vunpack.c.l.b16 %v3510
  %v3893 = vunpack.c.h.b16 %v3510
  %v3894 = vunpack.c.l.b16 %v3511
  %v3895 = vunpack.c.h.b16 %v3511
  %v3896 = vunpack.c.l.b16 %v3512
  %v3897 = vunpack.c.h.b16 %v3512
  %v3898 = vunpack.c.l.b16 %v3513
  %v3899 = vunpack.c.h.b16 %v3513
  %v3900 = vunpack.c.l.b16 %v3514
  %v3901 = vunpack.c.h.b16 %v3514
  %v3902 = vunpack.c.l.b16 %v3515
  %v3903 = vunpack.c.h.b16 %v3515
  %v3904 = vunpack.c.l.b16 %v3516
  %v3905 = vunpack.c.h.b16 %v3516
  %v3906 = vunpack.c.l.b16 %v3517
  %v3907 = vunpack.c.h.b16 %v3517
  %v3908 = vunpack.c.l.b16 %v3518
  %v3909 = vunpack.c.h.b16 %v3518
  %v3910 = vunpack.c.l.b16 %v3519
  %v3911 = vunpack.c.h.b16 %v3519
  %v3912 = vpack.c.b16 %v3660, %v3656
  %v3913 = vpack.c.b16 %v3661, %v3657
  %v3914 = vpack.c.b16 %v3662, %v3658
  %v3915 = vpack.c.b16 %v3663, %v3659
  %v3916 = vpack.c.b16 %v3668, %v3664
  %v3917 = vpack.c.b16 %v3669, %v3665
  %v3918 = vpack.c.b16 %v3670, %v3666
  %v3919 = vpack.c.b16 %v3671, %v3667
  %v3920 = vpack.c.b16 %v3676, %v3672
  %v3921 = vpack.c.b16 %v3677, %v3673
  %v3922 = vpack.c.b16 %v3678, %v3674
  %v3923 = vpack.c.b16 %v3679, %v3675
  %v3924 = vpack.c.b16 %v3684, %v3680
  %v3925 = vpack.c.b16 %v3685, %v3681
  %v3926 = vpack.c.b16 %v3686, %v3682
  %v3927 = vpack.c.b16 %v3687, %v3683
  %v3928 = vpack.c.b16 %v3692, %v3688
  %v3929 = vpack.c.b16 %v3693, %v3689
  %v3930 = vpack.c.b16 %v3694, %v3690
  %v3931 = vpack.c.b16 %v3695, %v3691
  %v3932 = vpack.c.b16 %v3700, %v3696
  %v3933 = vpack.c.b16 %v3701, %v3697
  %v3934 = vpack.c.b16 %v3702, %v3698
  %v3935 = vpack.c.b16 %v3703, %v3699
  %v3936 = vpack.c.b16 %v3708, %v3704
  %v3937 = vpack.c.b16 %v3709, %v3705
  %v3938 = vpack.c.b16 %v3710, %v3706
  %v3939 = vpack.c.b16 %v3711, %v3707
  %v3940 = vpack.c.b16 %v3716, %v3712
  %v3941 = vpack.c.b16 %v3717, %v3713
  %v3942 = vpack.c.b16 %v3718, %v3714
  %v3943 = vpack.c.b16 %v3719, %v3715
  %v3944 = vpack.c.b16 %v3724, %v3720
  %v3945 = vpack.c.b16 %v3725, %v3721
  %v3946 = vpack.c.b16 %v3726, %v3722
  %v3947 = vpack.c.b16 %v3727, %v3723
  %v3948 = vpack.c.b16 %v3732, %v3728
  %v3949 = vpack.c.b16 %v3733, %v3729
  %v3950 = vpack.c.b16 %v3734, %v3730
  %v3951 = vpack.c.b16 %v3735, %v3731
  %v3952 = vpack.c.b16 %v3740, %v3736
  %v3953 = vpack.c.b16 %v3741, %v3737
  %v3954 = vpack.c.b16 %v3742, %v3738
  %v3955 = vpack.c.b16 %v3743, %v3739
  %v3956 = vpack.c.b16 %v3748, %v3744
  %v3957 = vpack.c.b16 %v3749, %v3745
  %v3958 = vpack.c.b16 %v3750, %v3746
  %v3959 = vpack.c.b16 %v3751, %v3747
  %v3960 = vpack.c.b16 %v3756, %v3752
  %v3961 = vpack.c.b16 %v3757, %v3753
  %v3962 = vpack.c.b16 %v3758, %v3754
  %v3963 = vpack.c.b16 %v3759, %v3755
  %v3964 = vpack.c.b16 %v3764, %v3760
  %v3965 = vpack.c.b16 %v3765, %v3761
  %v3966 = vpack.c.b16 %v3766, %v3762
  %v3967 = vpack.c.b16 %v3767, %v3763
  %v3968 = vpack.c.b16 %v3772, %v3768
  %v3969 = vpack.c.b16 %v3773, %v3769
  %v3970 = vpack.c.b16 %v3774, %v3770
  %v3971 = vpack.c.b16 %v3775, %v3771
  %v3972 = vpack.c.b16 %v3780, %v3776
  %v3973 = vpack.c.b16 %v3781, %v3777
  %v3974 = vpack.c.b16 %v3782, %v3778
  %v3975 = vpack.c.b16 %v3783, %v3779
  %v3976 = vpack.c.b16 %v3788, %v3784
  %v3977 = vpack.c.b16 %v3789, %v3785
  %v3978 = vpack.c.b16 %v3790, %v3786
  %v3979 = vpack.c.b16 %v3791, %v3787
  %v3980 = vpack.c.b16 %v3796, %v3792
  %v3981 = vpack.c.b16 %v3797, %v3793
  %v3982 = vpack.c.b16 %v3798, %v3794
  %v3983 = vpack.c.b16 %v3799, %v3795
  %v3984 = vpack.c.b16 %v3804, %v3800
  %v3985 = vpack.c.b16 %v3805, %v3801
  %v3986 = vpack.c.b16 %v3806, %v3802
  %v3987 = vpack.c.b16 %v3807, %v3803
  %v3988 = vpack.c.b16 %v3812, %v3808
  %v3989 = vpack.c.b16 %v3813, %v3809
  %v3990 = vpack.c.b16 %v3814, %v3810
  %v3991 = vpack.c.b16 %v3815, %v3811
  %v3992 = vpack.c.b16 %v3820, %v3816
  %v3993 = vpack.c.b16 %v3821, %v3817
  %v3994 = vpack.c.b16 %v3822, %v3818
  %v3995 = vpack.c.b16 %v3823, %v3819
  %v3996 = vpack.c.b16 %v3828, %v3824
  %v3997 = vpack.c.b16 %v3829, %v3825
  %v3998 = vpack.c.b16 %v3830, %v3826
  %v3999 = vpack.c.b16 %v3831, %v3827
  %v4000 = vpack.c.b16 %v3836, %v3832
  %v4001 = vpack.c.b16 %v3837, %v3833
  %v4002 = vpack.c.b16 %v3838, %v3834
  %v4003 = vpack.c.b16 %v3839, %v3835
  %v4004 = vpack.c.b16 %v3844, %v3840
  %v4005 = vpack.c.b16 %v3845, %v3841
  %v4006 = vpack.c.b16 %v3846, %v3842
  %v4007 = vpack.c.b16 %v3847, %v3843
  %v4008 = vpack.c.b16 %v3852, %v3848
  %v4009 = vpack.c.b16 %v3853, %v3849
  %v4010 = vpack.c.b16 %v3854, %v3850
  %v4011 = vpack.c.b16 %v3855, %v3851
  %v4012 = vpack.c.b16 %v3860, %v3856
  %v4013 = vpack.c.b16 %v3861, %v3857
  %v4014 = vpack.c.b16 %v3862, %v3858
  %v4015 = vpack.c.b16 %v3863, %v3859
  %v4016 = vpack.c.b16 %v3868, %v3864
  %v4017 = vpack.c.b16 %v3869, %v3865
  %v4018 = vpack.c.b16 %v3870, %v3866
  %v4019 = vpack.c.b16 %v3871, %v3867
  %v4020 = vpack.c.b16 %v3876, %v3872
  %v4021 = vpack.c.b16 %v3877, %v3873
  %v4022 = vpack.c.b16 %v3878, %v3874
  %v4023 = vpack.c.b16 %v3879, %v3875
  %v4024 = vpack.c.b16 %v3884, %v3880
  %v4025 = vpack.c.b16 %v3885, %v3881
  %v4026 = vpack.c.b16 %v3886, %v3882
  %v4027 = vpack.c.b16 %v3887, %v3883
  %v4028 = vpack.c.b16 %v3892, %v3888
  %v4029 = vpack.c.b16 %v3893, %v3889
  %v4030 = vpack.c.b16 %v3894, %v3890
  %v4031 = vpack.c.b16 %v3895, %v3891
  %v4032 = vpack.c.b16 %v3900, %v3896
  %v4033 = vpack.c.b16 %v3901, %v3897
  %v4034 = vpack.c.b16 %v3902, %v3898
  %v4035 = vpack.c.b16 %v3903, %v3899
  %v4036 = vpack.c.b16 %v3908, %v3904
  %v4037 = vpack.c.b16 %v3909, %v3905
  %v4038 = vpack.c.b16 %v3910, %v3906
  %v4039 = vpack.c.b16 %v3911, %v3907
  %4168 = vmatpush.bf16.msra.mxu0 %v3940
  %4169 = vmatpush.bf16.msra.mxu0 %v3936
  %4170 = vmatpush.bf16.msra.mxu0 %v3932
  %4171 = vmatpush.bf16.msra.mxu0 %v3928
  %4172 = vmatpush.bf16.msra.mxu0 %v3924
  %4173 = vmatpush.bf16.msra.mxu0 %v3920
  %4174 = vmatpush.bf16.msra.mxu0 %v3916
  %4175 = vmatpush.bf16.msra.mxu0 %v3912
  %4176 = vmatmul.bf16.gmra.mxu0 %v3520
  %v4177 = vpop.f32.mrf.mxu0
  %v4178 = vadd.f32 0.0, %v4177
  %v4179 = vpop.f32.mrf.mxu0
  %4180 = vdwg.mxu0
  %4181 = vmatpush.bf16.msra.mxu0 %v3972
  %4182 = vmatpush.bf16.msra.mxu0 %v3968
  %4183 = vmatpush.bf16.msra.mxu0 %v3964
  %4184 = vmatpush.bf16.msra.mxu0 %v3960
  %4185 = vmatpush.bf16.msra.mxu0 %v3956
  %4186 = vmatpush.bf16.msra.mxu0 %v3952
  %4187 = vmatpush.bf16.msra.mxu0 %v3948
  %4188 = vmatpush.bf16.msra.mxu0 %v3944
  %4189 = vmatmul.bf16.gmra.mxu0 %v3521
  %v4190 = vpop.f32.mrf.mxu0
  %v4191 = vadd.f32 %v4178, %v4190
  %v4192 = vpop.f32.mrf.mxu0
  %4193 = vdwg.mxu0
  %4194 = vmatpush.bf16.msra.mxu0 %v4004
  %4195 = vmatpush.bf16.msra.mxu0 %v4000
  %4196 = vmatpush.bf16.msra.mxu0 %v3996
  %4197 = vmatpush.bf16.msra.mxu0 %v3992
  %4198 = vmatpush.bf16.msra.mxu0 %v3988
  %4199 = vmatpush.bf16.msra.mxu0 %v3984
  %4200 = vmatpush.bf16.msra.mxu0 %v3980
  %4201 = vmatpush.bf16.msra.mxu0 %v3976
  %4202 = vmatmul.bf16.gmra.mxu0 %v3522
  %v4203 = vpop.f32.mrf.mxu0
  %v4204 = vadd.f32 %v4191, %v4203
  %v4205 = vpop.f32.mrf.mxu0
  %4206 = vdwg.mxu0
  %4207 = vmatpush.bf16.msra.mxu0 %v4036
  %4208 = vmatpush.bf16.msra.mxu0 %v4032
  %4209 = vmatpush.bf16.msra.mxu0 %v4028
  %4210 = vmatpush.bf16.msra.mxu0 %v4024
  %4211 = vmatpush.bf16.msra.mxu0 %v4020
  %4212 = vmatpush.bf16.msra.mxu0 %v4016
  %4213 = vmatpush.bf16.msra.mxu0 %v4012
  %4214 = vmatpush.bf16.msra.mxu0 %v4008
  %4215 = vmatmul.bf16.gmra.mxu0 %v3523
  %v4216 = vpop.f32.mrf.mxu0
  %v4217 = vadd.f32 %v4204, %v4216
  %v4218 = vpop.f32.mrf.mxu0
  %4219 = vdwg.mxu0
  %4220 = vmatpush.bf16.msra.mxu0 %v3941
  %4221 = vmatpush.bf16.msra.mxu0 %v3937
  %4222 = vmatpush.bf16.msra.mxu0 %v3933
  %4223 = vmatpush.bf16.msra.mxu0 %v3929
  %4224 = vmatpush.bf16.msra.mxu0 %v3925
  %4225 = vmatpush.bf16.msra.mxu0 %v3921
  %4226 = vmatpush.bf16.msra.mxu0 %v3917
  %4227 = vmatpush.bf16.msra.mxu0 %v3913
  %4228 = vmatmul.bf16.gmra.mxu0 %v3520
  %v4229 = vpop.f32.mrf.mxu0
  %v4230 = vadd.f32 0.0, %v4229
  %v4231 = vpop.f32.mrf.mxu0
  %4232 = vdwg.mxu0
  %4233 = vmatpush.bf16.msra.mxu0 %v3973
  %4234 = vmatpush.bf16.msra.mxu0 %v3969
  %4235 = vmatpush.bf16.msra.mxu0 %v3965
  %4236 = vmatpush.bf16.msra.mxu0 %v3961
  %4237 = vmatpush.bf16.msra.mxu0 %v3957
  %4238 = vmatpush.bf16.msra.mxu0 %v3953
  %4239 = vmatpush.bf16.msra.mxu0 %v3949
  %4240 = vmatpush.bf16.msra.mxu0 %v3945
  %4241 = vmatmul.bf16.gmra.mxu0 %v3521
  %v4242 = vpop.f32.mrf.mxu0
  %v4243 = vadd.f32 %v4230, %v4242
  %v4244 = vpop.f32.mrf.mxu0
  %4245 = vdwg.mxu0
  %4246 = vmatpush.bf16.msra.mxu0 %v4005
  %4247 = vmatpush.bf16.msra.mxu0 %v4001
  %4248 = vmatpush.bf16.msra.mxu0 %v3997
  %4249 = vmatpush.bf16.msra.mxu0 %v3993
  %4250 = vmatpush.bf16.msra.mxu0 %v3989
  %4251 = vmatpush.bf16.msra.mxu0 %v3985
  %4252 = vmatpush.bf16.msra.mxu0 %v3981
  %4253 = vmatpush.bf16.msra.mxu0 %v3977
  %4254 = vmatmul.bf16.gmra.mxu0 %v3522
  %v4255 = vpop.f32.mrf.mxu0
  %v4256 = vadd.f32 %v4243, %v4255
  %v4257 = vpop.f32.mrf.mxu0
  %4258 = vdwg.mxu0
  %4259 = vmatpush.bf16.msra.mxu0 %v4037
  %4260 = vmatpush.bf16.msra.mxu0 %v4033
  %4261 = vmatpush.bf16.msra.mxu0 %v4029
  %4262 = vmatpush.bf16.msra.mxu0 %v4025
  %4263 = vmatpush.bf16.msra.mxu0 %v4021
  %4264 = vmatpush.bf16.msra.mxu0 %v4017
  %4265 = vmatpush.bf16.msra.mxu0 %v4013
  %4266 = vmatpush.bf16.msra.mxu0 %v4009
  %4267 = vmatmul.bf16.gmra.mxu0 %v3523
  %v4268 = vpop.f32.mrf.mxu0
  %v4269 = vadd.f32 %v4256, %v4268
  %v4270 = vpop.f32.mrf.mxu0
  %4271 = vdwg.mxu0
  %4272 = vmatpush.bf16.msra.mxu0 %v3942
  %4273 = vmatpush.bf16.msra.mxu0 %v3938
  %4274 = vmatpush.bf16.msra.mxu0 %v3934
  %4275 = vmatpush.bf16.msra.mxu0 %v3930
  %4276 = vmatpush.bf16.msra.mxu0 %v3926
  %4277 = vmatpush.bf16.msra.mxu0 %v3922
  %4278 = vmatpush.bf16.msra.mxu0 %v3918
  %4279 = vmatpush.bf16.msra.mxu0 %v3914
  %4280 = vmatmul.bf16.gmra.mxu0 %v3520
  %v4281 = vpop.f32.mrf.mxu0
  %v4282 = vadd.f32 0.0, %v4281
  %v4283 = vpop.f32.mrf.mxu0
  %4284 = vdwg.mxu0
  %4285 = vmatpush.bf16.msra.mxu0 %v3974
  %4286 = vmatpush.bf16.msra.mxu0 %v3970
  %4287 = vmatpush.bf16.msra.mxu0 %v3966
  %4288 = vmatpush.bf16.msra.mxu0 %v3962
  %4289 = vmatpush.bf16.msra.mxu0 %v3958
  %4290 = vmatpush.bf16.msra.mxu0 %v3954
  %4291 = vmatpush.bf16.msra.mxu0 %v3950
  %4292 = vmatpush.bf16.msra.mxu0 %v3946
  %4293 = vmatmul.bf16.gmra.mxu0 %v3521
  %v4294 = vpop.f32.mrf.mxu0
  %v4295 = vadd.f32 %v4282, %v4294
  %v4296 = vpop.f32.mrf.mxu0
  %4297 = vdwg.mxu0
  %4298 = vmatpush.bf16.msra.mxu0 %v4006
  %4299 = vmatpush.bf16.msra.mxu0 %v4002
  %4300 = vmatpush.bf16.msra.mxu0 %v3998
  %4301 = vmatpush.bf16.msra.mxu0 %v3994
  %4302 = vmatpush.bf16.msra.mxu0 %v3990
  %4303 = vmatpush.bf16.msra.mxu0 %v3986
  %4304 = vmatpush.bf16.msra.mxu0 %v3982
  %4305 = vmatpush.bf16.msra.mxu0 %v3978
  %4306 = vmatmul.bf16.gmra.mxu0 %v3522
  %v4307 = vpop.f32.mrf.mxu0
  %v4308 = vadd.f32 %v4295, %v4307
  %v4309 = vpop.f32.mrf.mxu0
  %4310 = vdwg.mxu0
  %4311 = vmatpush.bf16.msra.mxu0 %v4038
  %4312 = vmatpush.bf16.msra.mxu0 %v4034
  %4313 = vmatpush.bf16.msra.mxu0 %v4030
  %4314 = vmatpush.bf16.msra.mxu0 %v4026
  %4315 = vmatpush.bf16.msra.mxu0 %v4022
  %4316 = vmatpush.bf16.msra.mxu0 %v4018
  %4317 = vmatpush.bf16.msra.mxu0 %v4014
  %4318 = vmatpush.bf16.msra.mxu0 %v4010
  %4319 = vmatmul.bf16.gmra.mxu0 %v3523
  %v4320 = vpop.f32.mrf.mxu0
  %v4321 = vadd.f32 %v4308, %v4320
  %v4322 = vpop.f32.mrf.mxu0
  %4323 = vdwg.mxu0
  %4324 = vmatpush.bf16.msra.mxu0 %v3943
  %4325 = vmatpush.bf16.msra.mxu0 %v3939
  %4326 = vmatpush.bf16.msra.mxu0 %v3935
  %4327 = vmatpush.bf16.msra.mxu0 %v3931
  %4328 = vmatpush.bf16.msra.mxu0 %v3927
  %4329 = vmatpush.bf16.msra.mxu0 %v3923
  %4330 = vmatpush.bf16.msra.mxu0 %v3919
  %4331 = vmatpush.bf16.msra.mxu0 %v3915
  %4332 = vmatmul.bf16.gmra.mxu0 %v3520
  %v4333 = vpop.f32.mrf.mxu0
  %v4334 = vadd.f32 0.0, %v4333
  %v4335 = vpop.f32.mrf.mxu0
  %4336 = vdwg.mxu0
  %4337 = vmatpush.bf16.msra.mxu0 %v3975
  %4338 = vmatpush.bf16.msra.mxu0 %v3971
  %4339 = vmatpush.bf16.msra.mxu0 %v3967
  %4340 = vmatpush.bf16.msra.mxu0 %v3963
  %4341 = vmatpush.bf16.msra.mxu0 %v3959
  %4342 = vmatpush.bf16.msra.mxu0 %v3955
  %4343 = vmatpush.bf16.msra.mxu0 %v3951
  %4344 = vmatpush.bf16.msra.mxu0 %v3947
  %4345 = vmatmul.bf16.gmra.mxu0 %v3521
  %v4346 = vpop.f32.mrf.mxu0
  %v4347 = vadd.f32 %v4334, %v4346
  %v4348 = vpop.f32.mrf.mxu0
  %4349 = vdwg.mxu0
  %4350 = vmatpush.bf16.msra.mxu0 %v4007
  %4351 = vmatpush.bf16.msra.mxu0 %v4003
  %4352 = vmatpush.bf16.msra.mxu0 %v3999
  %4353 = vmatpush.bf16.msra.mxu0 %v3995
  %4354 = vmatpush.bf16.msra.mxu0 %v3991
  %4355 = vmatpush.bf16.msra.mxu0 %v3987
  %4356 = vmatpush.bf16.msra.mxu0 %v3983
  %4357 = vmatpush.bf16.msra.mxu0 %v3979
  %4358 = vmatmul.bf16.gmra.mxu0 %v3522
  %v4359 = vpop.f32.mrf.mxu0
  %v4360 = vadd.f32 %v4347, %v4359
  %v4361 = vpop.f32.mrf.mxu0
  %4362 = vdwg.mxu0
  %4363 = vmatpush.bf16.msra.mxu0 %v4039
  %4364 = vmatpush.bf16.msra.mxu0 %v4035
  %4365 = vmatpush.bf16.msra.mxu0 %v4031
  %4366 = vmatpush.bf16.msra.mxu0 %v4027
  %4367 = vmatpush.bf16.msra.mxu0 %v4023
  %4368 = vmatpush.bf16.msra.mxu0 %v4019
  %4369 = vmatpush.bf16.msra.mxu0 %v4015
  %4370 = vmatpush.bf16.msra.mxu0 %v4011
  %4371 = vmatmul.bf16.gmra.mxu0 %v3523
  %v4372 = vpop.f32.mrf.mxu0
  %v4373 = vadd.f32 %v4360, %v4372
  %v4374 = vpop.f32.mrf.mxu0
  %4375 = vdwg.mxu0
  %v4376 = vadd.f32 %v3388, %v4217
  %v4377 = vadd.f32 %v3389, %v4269
  %v4378 = vadd.f32 %v3390, %v4321
  %v4379 = vadd.f32 %v3391, %v4373
  %v4382 = vunpack.c.l.b16 %v420
  %v4383 = vunpack.c.h.b16 %v420
  %v4384 = vunpack.c.l.b16 %v421
  %v4385 = vunpack.c.h.b16 %v421
  %v4386 = vpack.c.b16 %v4382, %v4382
  %v4387 = vpack.c.b16 %v4383, %v4383
  %v4388 = vpack.c.b16 %v4384, %v4384
  %v4389 = vpack.c.b16 %v4385, %v4385
  %v4391 = vshrl.u32 %v4386, 16
  %v4394 = vshrl.u32 %v4387, 16
  %v4397 = vshrl.u32 %v4388, 16
  %v4400 = vshrl.u32 %v4389, 16
  %4406 = vmatpush.bf16.msra.mxu0 %v1116
  %4407 = vmatpush.bf16.msra.mxu0 %v1112
  %4408 = vmatpush.bf16.msra.mxu0 %v1108
  %4409 = vmatpush.bf16.msra.mxu0 %v1104
  %4410 = vmatpush.bf16.msra.mxu0 %v1100
  %4411 = vmatpush.bf16.msra.mxu0 %v1096
  %4412 = vmatpush.bf16.msra.mxu0 %v1092
  %4413 = vmatpush.bf16.msra.mxu0 %v1088
  %4414 = vmatmul.bf16.gmra.mxu0 %v4391
  %v4415 = vpop.f32.mrf.mxu0
  %v4416 = vadd.f32 0.0, %v4415
  %v4417 = vpop.f32.mrf.mxu0
  %4418 = vdwg.mxu0
  %4419 = vmatpush.bf16.msra.mxu0 %v1148
  %4420 = vmatpush.bf16.msra.mxu0 %v1144
  %4421 = vmatpush.bf16.msra.mxu0 %v1140
  %4422 = vmatpush.bf16.msra.mxu0 %v1136
  %4423 = vmatpush.bf16.msra.mxu0 %v1132
  %4424 = vmatpush.bf16.msra.mxu0 %v1128
  %4425 = vmatpush.bf16.msra.mxu0 %v1124
  %4426 = vmatpush.bf16.msra.mxu0 %v1120
  %4427 = vmatmul.bf16.gmra.mxu0 %v4394
  %v4428 = vpop.f32.mrf.mxu0
  %v4429 = vadd.f32 %v4416, %v4428
  %v4430 = vpop.f32.mrf.mxu0
  %4431 = vdwg.mxu0
  %4432 = vmatpush.bf16.msra.mxu0 %v1180
  %4433 = vmatpush.bf16.msra.mxu0 %v1176
  %4434 = vmatpush.bf16.msra.mxu0 %v1172
  %4435 = vmatpush.bf16.msra.mxu0 %v1168
  %4436 = vmatpush.bf16.msra.mxu0 %v1164
  %4437 = vmatpush.bf16.msra.mxu0 %v1160
  %4438 = vmatpush.bf16.msra.mxu0 %v1156
  %4439 = vmatpush.bf16.msra.mxu0 %v1152
  %4440 = vmatmul.bf16.gmra.mxu0 %v4397
  %v4441 = vpop.f32.mrf.mxu0
  %v4442 = vadd.f32 %v4429, %v4441
  %v4443 = vpop.f32.mrf.mxu0
  %4444 = vdwg.mxu0
  %4445 = vmatpush.bf16.msra.mxu0 %v1212
  %4446 = vmatpush.bf16.msra.mxu0 %v1208
  %4447 = vmatpush.bf16.msra.mxu0 %v1204
  %4448 = vmatpush.bf16.msra.mxu0 %v1200
  %4449 = vmatpush.bf16.msra.mxu0 %v1196
  %4450 = vmatpush.bf16.msra.mxu0 %v1192
  %4451 = vmatpush.bf16.msra.mxu0 %v1188
  %4452 = vmatpush.bf16.msra.mxu0 %v1184
  %4453 = vmatmul.bf16.gmra.mxu0 %v4400
  %v4454 = vpop.f32.mrf.mxu0
  %v4455 = vadd.f32 %v4442, %v4454
  %v4456 = vpop.f32.mrf.mxu0
  %4457 = vdwg.mxu0
  %4458 = vmatpush.bf16.msra.mxu0 %v1117
  %4459 = vmatpush.bf16.msra.mxu0 %v1113
  %4460 = vmatpush.bf16.msra.mxu0 %v1109
  %4461 = vmatpush.bf16.msra.mxu0 %v1105
  %4462 = vmatpush.bf16.msra.mxu0 %v1101
  %4463 = vmatpush.bf16.msra.mxu0 %v1097
  %4464 = vmatpush.bf16.msra.mxu0 %v1093
  %4465 = vmatpush.bf16.msra.mxu0 %v1089
  %4466 = vmatmul.bf16.gmra.mxu0 %v4391
  %v4467 = vpop.f32.mrf.mxu0
  %v4468 = vadd.f32 0.0, %v4467
  %v4469 = vpop.f32.mrf.mxu0
  %4470 = vdwg.mxu0
  %4471 = vmatpush.bf16.msra.mxu0 %v1149
  %4472 = vmatpush.bf16.msra.mxu0 %v1145
  %4473 = vmatpush.bf16.msra.mxu0 %v1141
  %4474 = vmatpush.bf16.msra.mxu0 %v1137
  %4475 = vmatpush.bf16.msra.mxu0 %v1133
  %4476 = vmatpush.bf16.msra.mxu0 %v1129
  %4477 = vmatpush.bf16.msra.mxu0 %v1125
  %4478 = vmatpush.bf16.msra.mxu0 %v1121
  %4479 = vmatmul.bf16.gmra.mxu0 %v4394
  %v4480 = vpop.f32.mrf.mxu0
  %v4481 = vadd.f32 %v4468, %v4480
  %v4482 = vpop.f32.mrf.mxu0
  %4483 = vdwg.mxu0
  %4484 = vmatpush.bf16.msra.mxu0 %v1181
  %4485 = vmatpush.bf16.msra.mxu0 %v1177
  %4486 = vmatpush.bf16.msra.mxu0 %v1173
  %4487 = vmatpush.bf16.msra.mxu0 %v1169
  %4488 = vmatpush.bf16.msra.mxu0 %v1165
  %4489 = vmatpush.bf16.msra.mxu0 %v1161
  %4490 = vmatpush.bf16.msra.mxu0 %v1157
  %4491 = vmatpush.bf16.msra.mxu0 %v1153
  %4492 = vmatmul.bf16.gmra.mxu0 %v4397
  %v4493 = vpop.f32.mrf.mxu0
  %v4494 = vadd.f32 %v4481, %v4493
  %v4495 = vpop.f32.mrf.mxu0
  %4496 = vdwg.mxu0
  %4497 = vmatpush.bf16.msra.mxu0 %v1213
  %4498 = vmatpush.bf16.msra.mxu0 %v1209
  %4499 = vmatpush.bf16.msra.mxu0 %v1205
  %4500 = vmatpush.bf16.msra.mxu0 %v1201
  %4501 = vmatpush.bf16.msra.mxu0 %v1197
  %4502 = vmatpush.bf16.msra.mxu0 %v1193
  %4503 = vmatpush.bf16.msra.mxu0 %v1189
  %4504 = vmatpush.bf16.msra.mxu0 %v1185
  %4505 = vmatmul.bf16.gmra.mxu0 %v4400
  %v4506 = vpop.f32.mrf.mxu0
  %v4507 = vadd.f32 %v4494, %v4506
  %v4508 = vpop.f32.mrf.mxu0
  %4509 = vdwg.mxu0
  %4510 = vmatpush.bf16.msra.mxu0 %v1118
  %4511 = vmatpush.bf16.msra.mxu0 %v1114
  %4512 = vmatpush.bf16.msra.mxu0 %v1110
  %4513 = vmatpush.bf16.msra.mxu0 %v1106
  %4514 = vmatpush.bf16.msra.mxu0 %v1102
  %4515 = vmatpush.bf16.msra.mxu0 %v1098
  %4516 = vmatpush.bf16.msra.mxu0 %v1094
  %4517 = vmatpush.bf16.msra.mxu0 %v1090
  %4518 = vmatmul.bf16.gmra.mxu0 %v4391
  %v4519 = vpop.f32.mrf.mxu0
  %v4520 = vadd.f32 0.0, %v4519
  %v4521 = vpop.f32.mrf.mxu0
  %4522 = vdwg.mxu0
  %4523 = vmatpush.bf16.msra.mxu0 %v1150
  %4524 = vmatpush.bf16.msra.mxu0 %v1146
  %4525 = vmatpush.bf16.msra.mxu0 %v1142
  %4526 = vmatpush.bf16.msra.mxu0 %v1138
  %4527 = vmatpush.bf16.msra.mxu0 %v1134
  %4528 = vmatpush.bf16.msra.mxu0 %v1130
  %4529 = vmatpush.bf16.msra.mxu0 %v1126
  %4530 = vmatpush.bf16.msra.mxu0 %v1122
  %4531 = vmatmul.bf16.gmra.mxu0 %v4394
  %v4532 = vpop.f32.mrf.mxu0
  %v4533 = vadd.f32 %v4520, %v4532
  %v4534 = vpop.f32.mrf.mxu0
  %4535 = vdwg.mxu0
  %4536 = vmatpush.bf16.msra.mxu0 %v1182
  %4537 = vmatpush.bf16.msra.mxu0 %v1178
  %4538 = vmatpush.bf16.msra.mxu0 %v1174
  %4539 = vmatpush.bf16.msra.mxu0 %v1170
  %4540 = vmatpush.bf16.msra.mxu0 %v1166
  %4541 = vmatpush.bf16.msra.mxu0 %v1162
  %4542 = vmatpush.bf16.msra.mxu0 %v1158
  %4543 = vmatpush.bf16.msra.mxu0 %v1154
  %4544 = vmatmul.bf16.gmra.mxu0 %v4397
  %v4545 = vpop.f32.mrf.mxu0
  %v4546 = vadd.f32 %v4533, %v4545
  %v4547 = vpop.f32.mrf.mxu0
  %4548 = vdwg.mxu0
  %4549 = vmatpush.bf16.msra.mxu0 %v1214
  %4550 = vmatpush.bf16.msra.mxu0 %v1210
  %4551 = vmatpush.bf16.msra.mxu0 %v1206
  %4552 = vmatpush.bf16.msra.mxu0 %v1202
  %4553 = vmatpush.bf16.msra.mxu0 %v1198
  %4554 = vmatpush.bf16.msra.mxu0 %v1194
  %4555 = vmatpush.bf16.msra.mxu0 %v1190
  %4556 = vmatpush.bf16.msra.mxu0 %v1186
  %4557 = vmatmul.bf16.gmra.mxu0 %v4400
  %v4558 = vpop.f32.mrf.mxu0
  %v4559 = vadd.f32 %v4546, %v4558
  %v4560 = vpop.f32.mrf.mxu0
  %4561 = vdwg.mxu0
  %4562 = vmatpush.bf16.msra.mxu0 %v1119
  %4563 = vmatpush.bf16.msra.mxu0 %v1115
  %4564 = vmatpush.bf16.msra.mxu0 %v1111
  %4565 = vmatpush.bf16.msra.mxu0 %v1107
  %4566 = vmatpush.bf16.msra.mxu0 %v1103
  %4567 = vmatpush.bf16.msra.mxu0 %v1099
  %4568 = vmatpush.bf16.msra.mxu0 %v1095
  %4569 = vmatpush.bf16.msra.mxu0 %v1091
  %4570 = vmatmul.bf16.gmra.mxu0 %v4391
  %v4571 = vpop.f32.mrf.mxu0
  %v4572 = vadd.f32 0.0, %v4571
  %v4573 = vpop.f32.mrf.mxu0
  %4574 = vdwg.mxu0
  %4575 = vmatpush.bf16.msra.mxu0 %v1151
  %4576 = vmatpush.bf16.msra.mxu0 %v1147
  %4577 = vmatpush.bf16.msra.mxu0 %v1143
  %4578 = vmatpush.bf16.msra.mxu0 %v1139
  %4579 = vmatpush.bf16.msra.mxu0 %v1135
  %4580 = vmatpush.bf16.msra.mxu0 %v1131
  %4581 = vmatpush.bf16.msra.mxu0 %v1127
  %4582 = vmatpush.bf16.msra.mxu0 %v1123
  %4583 = vmatmul.bf16.gmra.mxu0 %v4394
  %v4584 = vpop.f32.mrf.mxu0
  %v4585 = vadd.f32 %v4572, %v4584
  %v4586 = vpop.f32.mrf.mxu0
  %4587 = vdwg.mxu0
  %4588 = vmatpush.bf16.msra.mxu0 %v1183
  %4589 = vmatpush.bf16.msra.mxu0 %v1179
  %4590 = vmatpush.bf16.msra.mxu0 %v1175
  %4591 = vmatpush.bf16.msra.mxu0 %v1171
  %4592 = vmatpush.bf16.msra.mxu0 %v1167
  %4593 = vmatpush.bf16.msra.mxu0 %v1163
  %4594 = vmatpush.bf16.msra.mxu0 %v1159
  %4595 = vmatpush.bf16.msra.mxu0 %v1155
  %4596 = vmatmul.bf16.gmra.mxu0 %v4397
  %v4597 = vpop.f32.mrf.mxu0
  %v4598 = vadd.f32 %v4585, %v4597
  %v4599 = vpop.f32.mrf.mxu0
  %4600 = vdwg.mxu0
  %4601 = vmatpush.bf16.msra.mxu0 %v1215
  %4602 = vmatpush.bf16.msra.mxu0 %v1211
  %4603 = vmatpush.bf16.msra.mxu0 %v1207
  %4604 = vmatpush.bf16.msra.mxu0 %v1203
  %4605 = vmatpush.bf16.msra.mxu0 %v1199
  %4606 = vmatpush.bf16.msra.mxu0 %v1195
  %4607 = vmatpush.bf16.msra.mxu0 %v1191
  %4608 = vmatpush.bf16.msra.mxu0 %v1187
  %4609 = vmatmul.bf16.gmra.mxu0 %v4400
  %v4610 = vpop.f32.mrf.mxu0
  %v4611 = vadd.f32 %v4598, %v4610
  %v4612 = vpop.f32.mrf.mxu0
  %4613 = vdwg.mxu0
  %4618 = vmatpush.bf16.msra.mxu0 %v1968
  %4619 = vmatpush.bf16.msra.mxu0 %v1964
  %4620 = vmatpush.bf16.msra.mxu0 %v1960
  %4621 = vmatpush.bf16.msra.mxu0 %v1956
  %4622 = vmatpush.bf16.msra.mxu0 %v1952
  %4623 = vmatpush.bf16.msra.mxu0 %v1948
  %4624 = vmatpush.bf16.msra.mxu0 %v1944
  %4625 = vmatpush.bf16.msra.mxu0 %v1940
  %4626 = vmatmul.bf16.gmra.mxu0 %v4386
  %v4627 = vpop.f32.mrf.mxu0
  %v4628 = vadd.f32 %v4455, %v4627
  %v4629 = vpop.f32.mrf.mxu0
  %4630 = vdwg.mxu0
  %4631 = vmatpush.bf16.msra.mxu0 %v2000
  %4632 = vmatpush.bf16.msra.mxu0 %v1996
  %4633 = vmatpush.bf16.msra.mxu0 %v1992
  %4634 = vmatpush.bf16.msra.mxu0 %v1988
  %4635 = vmatpush.bf16.msra.mxu0 %v1984
  %4636 = vmatpush.bf16.msra.mxu0 %v1980
  %4637 = vmatpush.bf16.msra.mxu0 %v1976
  %4638 = vmatpush.bf16.msra.mxu0 %v1972
  %4639 = vmatmul.bf16.gmra.mxu0 %v4387
  %v4640 = vpop.f32.mrf.mxu0
  %v4641 = vadd.f32 %v4628, %v4640
  %v4642 = vpop.f32.mrf.mxu0
  %4643 = vdwg.mxu0
  %4644 = vmatpush.bf16.msra.mxu0 %v2032
  %4645 = vmatpush.bf16.msra.mxu0 %v2028
  %4646 = vmatpush.bf16.msra.mxu0 %v2024
  %4647 = vmatpush.bf16.msra.mxu0 %v2020
  %4648 = vmatpush.bf16.msra.mxu0 %v2016
  %4649 = vmatpush.bf16.msra.mxu0 %v2012
  %4650 = vmatpush.bf16.msra.mxu0 %v2008
  %4651 = vmatpush.bf16.msra.mxu0 %v2004
  %4652 = vmatmul.bf16.gmra.mxu0 %v4388
  %v4653 = vpop.f32.mrf.mxu0
  %v4654 = vadd.f32 %v4641, %v4653
  %v4655 = vpop.f32.mrf.mxu0
  %4656 = vdwg.mxu0
  %4657 = vmatpush.bf16.msra.mxu0 %v2064
  %4658 = vmatpush.bf16.msra.mxu0 %v2060
  %4659 = vmatpush.bf16.msra.mxu0 %v2056
  %4660 = vmatpush.bf16.msra.mxu0 %v2052
  %4661 = vmatpush.bf16.msra.mxu0 %v2048
  %4662 = vmatpush.bf16.msra.mxu0 %v2044
  %4663 = vmatpush.bf16.msra.mxu0 %v2040
  %4664 = vmatpush.bf16.msra.mxu0 %v2036
  %4665 = vmatmul.bf16.gmra.mxu0 %v4389
  %v4666 = vpop.f32.mrf.mxu0
  %v4667 = vadd.f32 %v4654, %v4666
  %v4668 = vpop.f32.mrf.mxu0
  %4669 = vdwg.mxu0
  %4670 = vmatpush.bf16.msra.mxu0 %v1969
  %4671 = vmatpush.bf16.msra.mxu0 %v1965
  %4672 = vmatpush.bf16.msra.mxu0 %v1961
  %4673 = vmatpush.bf16.msra.mxu0 %v1957
  %4674 = vmatpush.bf16.msra.mxu0 %v1953
  %4675 = vmatpush.bf16.msra.mxu0 %v1949
  %4676 = vmatpush.bf16.msra.mxu0 %v1945
  %4677 = vmatpush.bf16.msra.mxu0 %v1941
  %4678 = vmatmul.bf16.gmra.mxu0 %v4386
  %v4679 = vpop.f32.mrf.mxu0
  %v4680 = vadd.f32 %v4507, %v4679
  %v4681 = vpop.f32.mrf.mxu0
  %4682 = vdwg.mxu0
  %4683 = vmatpush.bf16.msra.mxu0 %v2001
  %4684 = vmatpush.bf16.msra.mxu0 %v1997
  %4685 = vmatpush.bf16.msra.mxu0 %v1993
  %4686 = vmatpush.bf16.msra.mxu0 %v1989
  %4687 = vmatpush.bf16.msra.mxu0 %v1985
  %4688 = vmatpush.bf16.msra.mxu0 %v1981
  %4689 = vmatpush.bf16.msra.mxu0 %v1977
  %4690 = vmatpush.bf16.msra.mxu0 %v1973
  %4691 = vmatmul.bf16.gmra.mxu0 %v4387
  %v4692 = vpop.f32.mrf.mxu0
  %v4693 = vadd.f32 %v4680, %v4692
  %v4694 = vpop.f32.mrf.mxu0
  %4695 = vdwg.mxu0
  %4696 = vmatpush.bf16.msra.mxu0 %v2033
  %4697 = vmatpush.bf16.msra.mxu0 %v2029
  %4698 = vmatpush.bf16.msra.mxu0 %v2025
  %4699 = vmatpush.bf16.msra.mxu0 %v2021
  %4700 = vmatpush.bf16.msra.mxu0 %v2017
  %4701 = vmatpush.bf16.msra.mxu0 %v2013
  %4702 = vmatpush.bf16.msra.mxu0 %v2009
  %4703 = vmatpush.bf16.msra.mxu0 %v2005
  %4704 = vmatmul.bf16.gmra.mxu0 %v4388
  %v4705 = vpop.f32.mrf.mxu0
  %v4706 = vadd.f32 %v4693, %v4705
  %v4707 = vpop.f32.mrf.mxu0
  %4708 = vdwg.mxu0
  %4709 = vmatpush.bf16.msra.mxu0 %v2065
  %4710 = vmatpush.bf16.msra.mxu0 %v2061
  %4711 = vmatpush.bf16.msra.mxu0 %v2057
  %4712 = vmatpush.bf16.msra.mxu0 %v2053
  %4713 = vmatpush.bf16.msra.mxu0 %v2049
  %4714 = vmatpush.bf16.msra.mxu0 %v2045
  %4715 = vmatpush.bf16.msra.mxu0 %v2041
  %4716 = vmatpush.bf16.msra.mxu0 %v2037
  %4717 = vmatmul.bf16.gmra.mxu0 %v4389
  %v4718 = vpop.f32.mrf.mxu0
  %v4719 = vadd.f32 %v4706, %v4718
  %v4720 = vpop.f32.mrf.mxu0
  %4721 = vdwg.mxu0
  %4722 = vmatpush.bf16.msra.mxu0 %v1970
  %4723 = vmatpush.bf16.msra.mxu0 %v1966
  %4724 = vmatpush.bf16.msra.mxu0 %v1962
  %4725 = vmatpush.bf16.msra.mxu0 %v1958
  %4726 = vmatpush.bf16.msra.mxu0 %v1954
  %4727 = vmatpush.bf16.msra.mxu0 %v1950
  %4728 = vmatpush.bf16.msra.mxu0 %v1946
  %4729 = vmatpush.bf16.msra.mxu0 %v1942
  %4730 = vmatmul.bf16.gmra.mxu0 %v4386
  %v4731 = vpop.f32.mrf.mxu0
  %v4732 = vadd.f32 %v4559, %v4731
  %v4733 = vpop.f32.mrf.mxu0
  %4734 = vdwg.mxu0
  %4735 = vmatpush.bf16.msra.mxu0 %v2002
  %4736 = vmatpush.bf16.msra.mxu0 %v1998
  %4737 = vmatpush.bf16.msra.mxu0 %v1994
  %4738 = vmatpush.bf16.msra.mxu0 %v1990
  %4739 = vmatpush.bf16.msra.mxu0 %v1986
  %4740 = vmatpush.bf16.msra.mxu0 %v1982
  %4741 = vmatpush.bf16.msra.mxu0 %v1978
  %4742 = vmatpush.bf16.msra.mxu0 %v1974
  %4743 = vmatmul.bf16.gmra.mxu0 %v4387
  %v4744 = vpop.f32.mrf.mxu0
  %v4745 = vadd.f32 %v4732, %v4744
  %v4746 = vpop.f32.mrf.mxu0
  %4747 = vdwg.mxu0
  %4748 = vmatpush.bf16.msra.mxu0 %v2034
  %4749 = vmatpush.bf16.msra.mxu0 %v2030
  %4750 = vmatpush.bf16.msra.mxu0 %v2026
  %4751 = vmatpush.bf16.msra.mxu0 %v2022
  %4752 = vmatpush.bf16.msra.mxu0 %v2018
  %4753 = vmatpush.bf16.msra.mxu0 %v2014
  %4754 = vmatpush.bf16.msra.mxu0 %v2010
  %4755 = vmatpush.bf16.msra.mxu0 %v2006
  %4756 = vmatmul.bf16.gmra.mxu0 %v4388
  %v4757 = vpop.f32.mrf.mxu0
  %v4758 = vadd.f32 %v4745, %v4757
  %v4759 = vpop.f32.mrf.mxu0
  %4760 = vdwg.mxu0
  %4761 = vmatpush.bf16.msra.mxu0 %v2066
  %4762 = vmatpush.bf16.msra.mxu0 %v2062
  %4763 = vmatpush.bf16.msra.mxu0 %v2058
  %4764 = vmatpush.bf16.msra.mxu0 %v2054
  %4765 = vmatpush.bf16.msra.mxu0 %v2050
  %4766 = vmatpush.bf16.msra.mxu0 %v2046
  %4767 = vmatpush.bf16.msra.mxu0 %v2042
  %4768 = vmatpush.bf16.msra.mxu0 %v2038
  %4769 = vmatmul.bf16.gmra.mxu0 %v4389
  %v4770 = vpop.f32.mrf.mxu0
  %v4771 = vadd.f32 %v4758, %v4770
  %v4772 = vpop.f32.mrf.mxu0
  %4773 = vdwg.mxu0
  %4774 = vmatpush.bf16.msra.mxu0 %v1971
  %4775 = vmatpush.bf16.msra.mxu0 %v1967
  %4776 = vmatpush.bf16.msra.mxu0 %v1963
  %4777 = vmatpush.bf16.msra.mxu0 %v1959
  %4778 = vmatpush.bf16.msra.mxu0 %v1955
  %4779 = vmatpush.bf16.msra.mxu0 %v1951
  %4780 = vmatpush.bf16.msra.mxu0 %v1947
  %4781 = vmatpush.bf16.msra.mxu0 %v1943
  %4782 = vmatmul.bf16.gmra.mxu0 %v4386
  %v4783 = vpop.f32.mrf.mxu0
  %v4784 = vadd.f32 %v4611, %v4783
  %v4785 = vpop.f32.mrf.mxu0
  %4786 = vdwg.mxu0
  %4787 = vmatpush.bf16.msra.mxu0 %v2003
  %4788 = vmatpush.bf16.msra.mxu0 %v1999
  %4789 = vmatpush.bf16.msra.mxu0 %v1995
  %4790 = vmatpush.bf16.msra.mxu0 %v1991
  %4791 = vmatpush.bf16.msra.mxu0 %v1987
  %4792 = vmatpush.bf16.msra.mxu0 %v1983
  %4793 = vmatpush.bf16.msra.mxu0 %v1979
  %4794 = vmatpush.bf16.msra.mxu0 %v1975
  %4795 = vmatmul.bf16.gmra.mxu0 %v4387
  %v4796 = vpop.f32.mrf.mxu0
  %v4797 = vadd.f32 %v4784, %v4796
  %v4798 = vpop.f32.mrf.mxu0
  %4799 = vdwg.mxu0
  %4800 = vmatpush.bf16.msra.mxu0 %v2035
  %4801 = vmatpush.bf16.msra.mxu0 %v2031
  %4802 = vmatpush.bf16.msra.mxu0 %v2027
  %4803 = vmatpush.bf16.msra.mxu0 %v2023
  %4804 = vmatpush.bf16.msra.mxu0 %v2019
  %4805 = vmatpush.bf16.msra.mxu0 %v2015
  %4806 = vmatpush.bf16.msra.mxu0 %v2011
  %4807 = vmatpush.bf16.msra.mxu0 %v2007
  %4808 = vmatmul.bf16.gmra.mxu0 %v4388
  %v4809 = vpop.f32.mrf.mxu0
  %v4810 = vadd.f32 %v4797, %v4809
  %v4811 = vpop.f32.mrf.mxu0
  %4812 = vdwg.mxu0
  %4813 = vmatpush.bf16.msra.mxu0 %v2067
  %4814 = vmatpush.bf16.msra.mxu0 %v2063
  %4815 = vmatpush.bf16.msra.mxu0 %v2059
  %4816 = vmatpush.bf16.msra.mxu0 %v2055
  %4817 = vmatpush.bf16.msra.mxu0 %v2051
  %4818 = vmatpush.bf16.msra.mxu0 %v2047
  %4819 = vmatpush.bf16.msra.mxu0 %v2043
  %4820 = vmatpush.bf16.msra.mxu0 %v2039
  %4821 = vmatmul.bf16.gmra.mxu0 %v4389
  %v4822 = vpop.f32.mrf.mxu0
  %v4823 = vadd.f32 %v4810, %v4822
  %v4824 = vpop.f32.mrf.mxu0
  %4825 = vdwg.mxu0
  %v4826 = vrot.slane %v4386, 1
  %v4827 = vrot.slane %v4387, 1
  %v4828 = vrot.slane %v4388, 1
  %v4829 = vrot.slane %v4389, 1
  %4834 = vmatpush.bf16.msra.mxu0 %v2952
  %4835 = vmatpush.bf16.msra.mxu0 %v2948
  %4836 = vmatpush.bf16.msra.mxu0 %v2944
  %4837 = vmatpush.bf16.msra.mxu0 %v2940
  %4838 = vmatpush.bf16.msra.mxu0 %v2936
  %4839 = vmatpush.bf16.msra.mxu0 %v2932
  %4840 = vmatpush.bf16.msra.mxu0 %v2928
  %4841 = vmatpush.bf16.msra.mxu0 %v2924
  %4842 = vmatmul.bf16.gmra.mxu0 %v4826
  %v4843 = vpop.f32.mrf.mxu0
  %v4844 = vadd.f32 0.0, %v4843
  %v4845 = vpop.f32.mrf.mxu0
  %4846 = vdwg.mxu0
  %4847 = vmatpush.bf16.msra.mxu0 %v2984
  %4848 = vmatpush.bf16.msra.mxu0 %v2980
  %4849 = vmatpush.bf16.msra.mxu0 %v2976
  %4850 = vmatpush.bf16.msra.mxu0 %v2972
  %4851 = vmatpush.bf16.msra.mxu0 %v2968
  %4852 = vmatpush.bf16.msra.mxu0 %v2964
  %4853 = vmatpush.bf16.msra.mxu0 %v2960
  %4854 = vmatpush.bf16.msra.mxu0 %v2956
  %4855 = vmatmul.bf16.gmra.mxu0 %v4827
  %v4856 = vpop.f32.mrf.mxu0
  %v4857 = vadd.f32 %v4844, %v4856
  %v4858 = vpop.f32.mrf.mxu0
  %4859 = vdwg.mxu0
  %4860 = vmatpush.bf16.msra.mxu0 %v3016
  %4861 = vmatpush.bf16.msra.mxu0 %v3012
  %4862 = vmatpush.bf16.msra.mxu0 %v3008
  %4863 = vmatpush.bf16.msra.mxu0 %v3004
  %4864 = vmatpush.bf16.msra.mxu0 %v3000
  %4865 = vmatpush.bf16.msra.mxu0 %v2996
  %4866 = vmatpush.bf16.msra.mxu0 %v2992
  %4867 = vmatpush.bf16.msra.mxu0 %v2988
  %4868 = vmatmul.bf16.gmra.mxu0 %v4828
  %v4869 = vpop.f32.mrf.mxu0
  %v4870 = vadd.f32 %v4857, %v4869
  %v4871 = vpop.f32.mrf.mxu0
  %4872 = vdwg.mxu0
  %4873 = vmatpush.bf16.msra.mxu0 %v3048
  %4874 = vmatpush.bf16.msra.mxu0 %v3044
  %4875 = vmatpush.bf16.msra.mxu0 %v3040
  %4876 = vmatpush.bf16.msra.mxu0 %v3036
  %4877 = vmatpush.bf16.msra.mxu0 %v3032
  %4878 = vmatpush.bf16.msra.mxu0 %v3028
  %4879 = vmatpush.bf16.msra.mxu0 %v3024
  %4880 = vmatpush.bf16.msra.mxu0 %v3020
  %4881 = vmatmul.bf16.gmra.mxu0 %v4829
  %v4882 = vpop.f32.mrf.mxu0
  %v4883 = vadd.f32 %v4870, %v4882
  %v4884 = vpop.f32.mrf.mxu0
  %4885 = vdwg.mxu0
  %4886 = vmatpush.bf16.msra.mxu0 %v2953
  %4887 = vmatpush.bf16.msra.mxu0 %v2949
  %4888 = vmatpush.bf16.msra.mxu0 %v2945
  %4889 = vmatpush.bf16.msra.mxu0 %v2941
  %4890 = vmatpush.bf16.msra.mxu0 %v2937
  %4891 = vmatpush.bf16.msra.mxu0 %v2933
  %4892 = vmatpush.bf16.msra.mxu0 %v2929
  %4893 = vmatpush.bf16.msra.mxu0 %v2925
  %4894 = vmatmul.bf16.gmra.mxu0 %v4826
  %v4895 = vpop.f32.mrf.mxu0
  %v4896 = vadd.f32 0.0, %v4895
  %v4897 = vpop.f32.mrf.mxu0
  %4898 = vdwg.mxu0
  %4899 = vmatpush.bf16.msra.mxu0 %v2985
  %4900 = vmatpush.bf16.msra.mxu0 %v2981
  %4901 = vmatpush.bf16.msra.mxu0 %v2977
  %4902 = vmatpush.bf16.msra.mxu0 %v2973
  %4903 = vmatpush.bf16.msra.mxu0 %v2969
  %4904 = vmatpush.bf16.msra.mxu0 %v2965
  %4905 = vmatpush.bf16.msra.mxu0 %v2961
  %4906 = vmatpush.bf16.msra.mxu0 %v2957
  %4907 = vmatmul.bf16.gmra.mxu0 %v4827
  %v4908 = vpop.f32.mrf.mxu0
  %v4909 = vadd.f32 %v4896, %v4908
  %v4910 = vpop.f32.mrf.mxu0
  %4911 = vdwg.mxu0
  %4912 = vmatpush.bf16.msra.mxu0 %v3017
  %4913 = vmatpush.bf16.msra.mxu0 %v3013
  %4914 = vmatpush.bf16.msra.mxu0 %v3009
  %4915 = vmatpush.bf16.msra.mxu0 %v3005
  %4916 = vmatpush.bf16.msra.mxu0 %v3001
  %4917 = vmatpush.bf16.msra.mxu0 %v2997
  %4918 = vmatpush.bf16.msra.mxu0 %v2993
  %4919 = vmatpush.bf16.msra.mxu0 %v2989
  %4920 = vmatmul.bf16.gmra.mxu0 %v4828
  %v4921 = vpop.f32.mrf.mxu0
  %v4922 = vadd.f32 %v4909, %v4921
  %v4923 = vpop.f32.mrf.mxu0
  %4924 = vdwg.mxu0
  %4925 = vmatpush.bf16.msra.mxu0 %v3049
  %4926 = vmatpush.bf16.msra.mxu0 %v3045
  %4927 = vmatpush.bf16.msra.mxu0 %v3041
  %4928 = vmatpush.bf16.msra.mxu0 %v3037
  %4929 = vmatpush.bf16.msra.mxu0 %v3033
  %4930 = vmatpush.bf16.msra.mxu0 %v3029
  %4931 = vmatpush.bf16.msra.mxu0 %v3025
  %4932 = vmatpush.bf16.msra.mxu0 %v3021
  %4933 = vmatmul.bf16.gmra.mxu0 %v4829
  %v4934 = vpop.f32.mrf.mxu0
  %v4935 = vadd.f32 %v4922, %v4934
  %v4936 = vpop.f32.mrf.mxu0
  %4937 = vdwg.mxu0
  %4938 = vmatpush.bf16.msra.mxu0 %v2954
  %4939 = vmatpush.bf16.msra.mxu0 %v2950
  %4940 = vmatpush.bf16.msra.mxu0 %v2946
  %4941 = vmatpush.bf16.msra.mxu0 %v2942
  %4942 = vmatpush.bf16.msra.mxu0 %v2938
  %4943 = vmatpush.bf16.msra.mxu0 %v2934
  %4944 = vmatpush.bf16.msra.mxu0 %v2930
  %4945 = vmatpush.bf16.msra.mxu0 %v2926
  %4946 = vmatmul.bf16.gmra.mxu0 %v4826
  %v4947 = vpop.f32.mrf.mxu0
  %v4948 = vadd.f32 0.0, %v4947
  %v4949 = vpop.f32.mrf.mxu0
  %4950 = vdwg.mxu0
  %4951 = vmatpush.bf16.msra.mxu0 %v2986
  %4952 = vmatpush.bf16.msra.mxu0 %v2982
  %4953 = vmatpush.bf16.msra.mxu0 %v2978
  %4954 = vmatpush.bf16.msra.mxu0 %v2974
  %4955 = vmatpush.bf16.msra.mxu0 %v2970
  %4956 = vmatpush.bf16.msra.mxu0 %v2966
  %4957 = vmatpush.bf16.msra.mxu0 %v2962
  %4958 = vmatpush.bf16.msra.mxu0 %v2958
  %4959 = vmatmul.bf16.gmra.mxu0 %v4827
  %v4960 = vpop.f32.mrf.mxu0
  %v4961 = vadd.f32 %v4948, %v4960
  %v4962 = vpop.f32.mrf.mxu0
  %4963 = vdwg.mxu0
  %4964 = vmatpush.bf16.msra.mxu0 %v3018
  %4965 = vmatpush.bf16.msra.mxu0 %v3014
  %4966 = vmatpush.bf16.msra.mxu0 %v3010
  %4967 = vmatpush.bf16.msra.mxu0 %v3006
  %4968 = vmatpush.bf16.msra.mxu0 %v3002
  %4969 = vmatpush.bf16.msra.mxu0 %v2998
  %4970 = vmatpush.bf16.msra.mxu0 %v2994
  %4971 = vmatpush.bf16.msra.mxu0 %v2990
  %4972 = vmatmul.bf16.gmra.mxu0 %v4828
  %v4973 = vpop.f32.mrf.mxu0
  %v4974 = vadd.f32 %v4961, %v4973
  %v4975 = vpop.f32.mrf.mxu0
  %4976 = vdwg.mxu0
  %4977 = vmatpush.bf16.msra.mxu0 %v3050
  %4978 = vmatpush.bf16.msra.mxu0 %v3046
  %4979 = vmatpush.bf16.msra.mxu0 %v3042
  %4980 = vmatpush.bf16.msra.mxu0 %v3038
  %4981 = vmatpush.bf16.msra.mxu0 %v3034
  %4982 = vmatpush.bf16.msra.mxu0 %v3030
  %4983 = vmatpush.bf16.msra.mxu0 %v3026
  %4984 = vmatpush.bf16.msra.mxu0 %v3022
  %4985 = vmatmul.bf16.gmra.mxu0 %v4829
  %v4986 = vpop.f32.mrf.mxu0
  %v4987 = vadd.f32 %v4974, %v4986
  %v4988 = vpop.f32.mrf.mxu0
  %4989 = vdwg.mxu0
  %4990 = vmatpush.bf16.msra.mxu0 %v2955
  %4991 = vmatpush.bf16.msra.mxu0 %v2951
  %4992 = vmatpush.bf16.msra.mxu0 %v2947
  %4993 = vmatpush.bf16.msra.mxu0 %v2943
  %4994 = vmatpush.bf16.msra.mxu0 %v2939
  %4995 = vmatpush.bf16.msra.mxu0 %v2935
  %4996 = vmatpush.bf16.msra.mxu0 %v2931
  %4997 = vmatpush.bf16.msra.mxu0 %v2927
  %4998 = vmatmul.bf16.gmra.mxu0 %v4826
  %v4999 = vpop.f32.mrf.mxu0
  %v5000 = vadd.f32 0.0, %v4999
  %v5001 = vpop.f32.mrf.mxu0
  %5002 = vdwg.mxu0
  %5003 = vmatpush.bf16.msra.mxu0 %v2987
  %5004 = vmatpush.bf16.msra.mxu0 %v2983
  %5005 = vmatpush.bf16.msra.mxu0 %v2979
  %5006 = vmatpush.bf16.msra.mxu0 %v2975
  %5007 = vmatpush.bf16.msra.mxu0 %v2971
  %5008 = vmatpush.bf16.msra.mxu0 %v2967
  %5009 = vmatpush.bf16.msra.mxu0 %v2963
  %5010 = vmatpush.bf16.msra.mxu0 %v2959
  %5011 = vmatmul.bf16.gmra.mxu0 %v4827
  %v5012 = vpop.f32.mrf.mxu0
  %v5013 = vadd.f32 %v5000, %v5012
  %v5014 = vpop.f32.mrf.mxu0
  %5015 = vdwg.mxu0
  %5016 = vmatpush.bf16.msra.mxu0 %v3019
  %5017 = vmatpush.bf16.msra.mxu0 %v3015
  %5018 = vmatpush.bf16.msra.mxu0 %v3011
  %5019 = vmatpush.bf16.msra.mxu0 %v3007
  %5020 = vmatpush.bf16.msra.mxu0 %v3003
  %5021 = vmatpush.bf16.msra.mxu0 %v2999
  %5022 = vmatpush.bf16.msra.mxu0 %v2995
  %5023 = vmatpush.bf16.msra.mxu0 %v2991
  %5024 = vmatmul.bf16.gmra.mxu0 %v4828
  %v5025 = vpop.f32.mrf.mxu0
  %v5026 = vadd.f32 %v5013, %v5025
  %v5027 = vpop.f32.mrf.mxu0
  %5028 = vdwg.mxu0
  %5029 = vmatpush.bf16.msra.mxu0 %v3051
  %5030 = vmatpush.bf16.msra.mxu0 %v3047
  %5031 = vmatpush.bf16.msra.mxu0 %v3043
  %5032 = vmatpush.bf16.msra.mxu0 %v3039
  %5033 = vmatpush.bf16.msra.mxu0 %v3035
  %5034 = vmatpush.bf16.msra.mxu0 %v3031
  %5035 = vmatpush.bf16.msra.mxu0 %v3027
  %5036 = vmatpush.bf16.msra.mxu0 %v3023
  %5037 = vmatmul.bf16.gmra.mxu0 %v4829
  %v5038 = vpop.f32.mrf.mxu0
  %v5039 = vadd.f32 %v5026, %v5038
  %v5040 = vpop.f32.mrf.mxu0
  %5041 = vdwg.mxu0
  %v5042 = vadd.f32 %v4667, %v4883
  %v5043 = vadd.f32 %v4719, %v4935
  %v5044 = vadd.f32 %v4771, %v4987
  %v5045 = vadd.f32 %v4823, %v5039
  %v5046 = vrot.slane %v4391, 1
  %v5047 = vrot.slane %v4394, 1
  %v5048 = vrot.slane %v4397, 1
  %v5049 = vrot.slane %v4400, 1
  %5054 = vmatpush.bf16.msra.mxu0 %v3940
  %5055 = vmatpush.bf16.msra.mxu0 %v3936
  %5056 = vmatpush.bf16.msra.mxu0 %v3932
  %5057 = vmatpush.bf16.msra.mxu0 %v3928
  %5058 = vmatpush.bf16.msra.mxu0 %v3924
  %5059 = vmatpush.bf16.msra.mxu0 %v3920
  %5060 = vmatpush.bf16.msra.mxu0 %v3916
  %5061 = vmatpush.bf16.msra.mxu0 %v3912
  %5062 = vmatmul.bf16.gmra.mxu0 %v5046
  %v5063 = vpop.f32.mrf.mxu0
  %v5064 = vadd.f32 0.0, %v5063
  %v5065 = vpop.f32.mrf.mxu0
  %5066 = vdwg.mxu0
  %5067 = vmatpush.bf16.msra.mxu0 %v3972
  %5068 = vmatpush.bf16.msra.mxu0 %v3968
  %5069 = vmatpush.bf16.msra.mxu0 %v3964
  %5070 = vmatpush.bf16.msra.mxu0 %v3960
  %5071 = vmatpush.bf16.msra.mxu0 %v3956
  %5072 = vmatpush.bf16.msra.mxu0 %v3952
  %5073 = vmatpush.bf16.msra.mxu0 %v3948
  %5074 = vmatpush.bf16.msra.mxu0 %v3944
  %5075 = vmatmul.bf16.gmra.mxu0 %v5047
  %v5076 = vpop.f32.mrf.mxu0
  %v5077 = vadd.f32 %v5064, %v5076
  %v5078 = vpop.f32.mrf.mxu0
  %5079 = vdwg.mxu0
  %5080 = vmatpush.bf16.msra.mxu0 %v4004
  %5081 = vmatpush.bf16.msra.mxu0 %v4000
  %5082 = vmatpush.bf16.msra.mxu0 %v3996
  %5083 = vmatpush.bf16.msra.mxu0 %v3992
  %5084 = vmatpush.bf16.msra.mxu0 %v3988
  %5085 = vmatpush.bf16.msra.mxu0 %v3984
  %5086 = vmatpush.bf16.msra.mxu0 %v3980
  %5087 = vmatpush.bf16.msra.mxu0 %v3976
  %5088 = vmatmul.bf16.gmra.mxu0 %v5048
  %v5089 = vpop.f32.mrf.mxu0
  %v5090 = vadd.f32 %v5077, %v5089
  %v5091 = vpop.f32.mrf.mxu0
  %5092 = vdwg.mxu0
  %5093 = vmatpush.bf16.msra.mxu0 %v4036
  %5094 = vmatpush.bf16.msra.mxu0 %v4032
  %5095 = vmatpush.bf16.msra.mxu0 %v4028
  %5096 = vmatpush.bf16.msra.mxu0 %v4024
  %5097 = vmatpush.bf16.msra.mxu0 %v4020
  %5098 = vmatpush.bf16.msra.mxu0 %v4016
  %5099 = vmatpush.bf16.msra.mxu0 %v4012
  %5100 = vmatpush.bf16.msra.mxu0 %v4008
  %5101 = vmatmul.bf16.gmra.mxu0 %v5049
  %v5102 = vpop.f32.mrf.mxu0
  %v5103 = vadd.f32 %v5090, %v5102
  %v5104 = vpop.f32.mrf.mxu0
  %5105 = vdwg.mxu0
  %5106 = vmatpush.bf16.msra.mxu0 %v3941
  %5107 = vmatpush.bf16.msra.mxu0 %v3937
  %5108 = vmatpush.bf16.msra.mxu0 %v3933
  %5109 = vmatpush.bf16.msra.mxu0 %v3929
  %5110 = vmatpush.bf16.msra.mxu0 %v3925
  %5111 = vmatpush.bf16.msra.mxu0 %v3921
  %5112 = vmatpush.bf16.msra.mxu0 %v3917
  %5113 = vmatpush.bf16.msra.mxu0 %v3913
  %5114 = vmatmul.bf16.gmra.mxu0 %v5046
  %v5115 = vpop.f32.mrf.mxu0
  %v5116 = vadd.f32 0.0, %v5115
  %v5117 = vpop.f32.mrf.mxu0
  %5118 = vdwg.mxu0
  %5119 = vmatpush.bf16.msra.mxu0 %v3973
  %5120 = vmatpush.bf16.msra.mxu0 %v3969
  %5121 = vmatpush.bf16.msra.mxu0 %v3965
  %5122 = vmatpush.bf16.msra.mxu0 %v3961
  %5123 = vmatpush.bf16.msra.mxu0 %v3957
  %5124 = vmatpush.bf16.msra.mxu0 %v3953
  %5125 = vmatpush.bf16.msra.mxu0 %v3949
  %5126 = vmatpush.bf16.msra.mxu0 %v3945
  %5127 = vmatmul.bf16.gmra.mxu0 %v5047
  %v5128 = vpop.f32.mrf.mxu0
  %v5129 = vadd.f32 %v5116, %v5128
  %v5130 = vpop.f32.mrf.mxu0
  %5131 = vdwg.mxu0
  %5132 = vmatpush.bf16.msra.mxu0 %v4005
  %5133 = vmatpush.bf16.msra.mxu0 %v4001
  %5134 = vmatpush.bf16.msra.mxu0 %v3997
  %5135 = vmatpush.bf16.msra.mxu0 %v3993
  %5136 = vmatpush.bf16.msra.mxu0 %v3989
  %5137 = vmatpush.bf16.msra.mxu0 %v3985
  %5138 = vmatpush.bf16.msra.mxu0 %v3981
  %5139 = vmatpush.bf16.msra.mxu0 %v3977
  %5140 = vmatmul.bf16.gmra.mxu0 %v5048
  %v5141 = vpop.f32.mrf.mxu0
  %v5142 = vadd.f32 %v5129, %v5141
  %v5143 = vpop.f32.mrf.mxu0
  %5144 = vdwg.mxu0
  %5145 = vmatpush.bf16.msra.mxu0 %v4037
  %5146 = vmatpush.bf16.msra.mxu0 %v4033
  %5147 = vmatpush.bf16.msra.mxu0 %v4029
  %5148 = vmatpush.bf16.msra.mxu0 %v4025
  %5149 = vmatpush.bf16.msra.mxu0 %v4021
  %5150 = vmatpush.bf16.msra.mxu0 %v4017
  %5151 = vmatpush.bf16.msra.mxu0 %v4013
  %5152 = vmatpush.bf16.msra.mxu0 %v4009
  %5153 = vmatmul.bf16.gmra.mxu0 %v5049
  %v5154 = vpop.f32.mrf.mxu0
  %v5155 = vadd.f32 %v5142, %v5154
  %v5156 = vpop.f32.mrf.mxu0
  %5157 = vdwg.mxu0
  %5158 = vmatpush.bf16.msra.mxu0 %v3942
  %5159 = vmatpush.bf16.msra.mxu0 %v3938
  %5160 = vmatpush.bf16.msra.mxu0 %v3934
  %5161 = vmatpush.bf16.msra.mxu0 %v3930
  %5162 = vmatpush.bf16.msra.mxu0 %v3926
  %5163 = vmatpush.bf16.msra.mxu0 %v3922
  %5164 = vmatpush.bf16.msra.mxu0 %v3918
  %5165 = vmatpush.bf16.msra.mxu0 %v3914
  %5166 = vmatmul.bf16.gmra.mxu0 %v5046
  %v5167 = vpop.f32.mrf.mxu0
  %v5168 = vadd.f32 0.0, %v5167
  %v5169 = vpop.f32.mrf.mxu0
  %5170 = vdwg.mxu0
  %5171 = vmatpush.bf16.msra.mxu0 %v3974
  %5172 = vmatpush.bf16.msra.mxu0 %v3970
  %5173 = vmatpush.bf16.msra.mxu0 %v3966
  %5174 = vmatpush.bf16.msra.mxu0 %v3962
  %5175 = vmatpush.bf16.msra.mxu0 %v3958
  %5176 = vmatpush.bf16.msra.mxu0 %v3954
  %5177 = vmatpush.bf16.msra.mxu0 %v3950
  %5178 = vmatpush.bf16.msra.mxu0 %v3946
  %5179 = vmatmul.bf16.gmra.mxu0 %v5047
  %v5180 = vpop.f32.mrf.mxu0
  %v5181 = vadd.f32 %v5168, %v5180
  %v5182 = vpop.f32.mrf.mxu0
  %5183 = vdwg.mxu0
  %5184 = vmatpush.bf16.msra.mxu0 %v4006
  %5185 = vmatpush.bf16.msra.mxu0 %v4002
  %5186 = vmatpush.bf16.msra.mxu0 %v3998
  %5187 = vmatpush.bf16.msra.mxu0 %v3994
  %5188 = vmatpush.bf16.msra.mxu0 %v3990
  %5189 = vmatpush.bf16.msra.mxu0 %v3986
  %5190 = vmatpush.bf16.msra.mxu0 %v3982
  %5191 = vmatpush.bf16.msra.mxu0 %v3978
  %5192 = vmatmul.bf16.gmra.mxu0 %v5048
  %v5193 = vpop.f32.mrf.mxu0
  %v5194 = vadd.f32 %v5181, %v5193
  %v5195 = vpop.f32.mrf.mxu0
  %5196 = vdwg.mxu0
  %5197 = vmatpush.bf16.msra.mxu0 %v4038
  %5198 = vmatpush.bf16.msra.mxu0 %v4034
  %5199 = vmatpush.bf16.msra.mxu0 %v4030
  %5200 = vmatpush.bf16.msra.mxu0 %v4026
  %5201 = vmatpush.bf16.msra.mxu0 %v4022
  %5202 = vmatpush.bf16.msra.mxu0 %v4018
  %5203 = vmatpush.bf16.msra.mxu0 %v4014
  %5204 = vmatpush.bf16.msra.mxu0 %v4010
  %5205 = vmatmul.bf16.gmra.mxu0 %v5049
  %v5206 = vpop.f32.mrf.mxu0
  %v5207 = vadd.f32 %v5194, %v5206
  %v5208 = vpop.f32.mrf.mxu0
  %5209 = vdwg.mxu0
  %5210 = vmatpush.bf16.msra.mxu0 %v3943
  %5211 = vmatpush.bf16.msra.mxu0 %v3939
  %5212 = vmatpush.bf16.msra.mxu0 %v3935
  %5213 = vmatpush.bf16.msra.mxu0 %v3931
  %5214 = vmatpush.bf16.msra.mxu0 %v3927
  %5215 = vmatpush.bf16.msra.mxu0 %v3923
  %5216 = vmatpush.bf16.msra.mxu0 %v3919
  %5217 = vmatpush.bf16.msra.mxu0 %v3915
  %5218 = vmatmul.bf16.gmra.mxu0 %v5046
  %v5219 = vpop.f32.mrf.mxu0
  %v5220 = vadd.f32 0.0, %v5219
  %v5221 = vpop.f32.mrf.mxu0
  %5222 = vdwg.mxu0
  %5223 = vmatpush.bf16.msra.mxu0 %v3975
  %5224 = vmatpush.bf16.msra.mxu0 %v3971
  %5225 = vmatpush.bf16.msra.mxu0 %v3967
  %5226 = vmatpush.bf16.msra.mxu0 %v3963
  %5227 = vmatpush.bf16.msra.mxu0 %v3959
  %5228 = vmatpush.bf16.msra.mxu0 %v3955
  %5229 = vmatpush.bf16.msra.mxu0 %v3951
  %5230 = vmatpush.bf16.msra.mxu0 %v3947
  %5231 = vmatmul.bf16.gmra.mxu0 %v5047
  %v5232 = vpop.f32.mrf.mxu0
  %v5233 = vadd.f32 %v5220, %v5232
  %v5234 = vpop.f32.mrf.mxu0
  %5235 = vdwg.mxu0
  %5236 = vmatpush.bf16.msra.mxu0 %v4007
  %5237 = vmatpush.bf16.msra.mxu0 %v4003
  %5238 = vmatpush.bf16.msra.mxu0 %v3999
  %5239 = vmatpush.bf16.msra.mxu0 %v3995
  %5240 = vmatpush.bf16.msra.mxu0 %v3991
  %5241 = vmatpush.bf16.msra.mxu0 %v3987
  %5242 = vmatpush.bf16.msra.mxu0 %v3983
  %5243 = vmatpush.bf16.msra.mxu0 %v3979
  %5244 = vmatmul.bf16.gmra.mxu0 %v5048
  %v5245 = vpop.f32.mrf.mxu0
  %v5246 = vadd.f32 %v5233, %v5245
  %v5247 = vpop.f32.mrf.mxu0
  %5248 = vdwg.mxu0
  %5249 = vmatpush.bf16.msra.mxu0 %v4039
  %5250 = vmatpush.bf16.msra.mxu0 %v4035
  %5251 = vmatpush.bf16.msra.mxu0 %v4031
  %5252 = vmatpush.bf16.msra.mxu0 %v4027
  %5253 = vmatpush.bf16.msra.mxu0 %v4023
  %5254 = vmatpush.bf16.msra.mxu0 %v4019
  %5255 = vmatpush.bf16.msra.mxu0 %v4015
  %5256 = vmatpush.bf16.msra.mxu0 %v4011
  %5257 = vmatmul.bf16.gmra.mxu0 %v5049
  %v5258 = vpop.f32.mrf.mxu0
  %v5259 = vadd.f32 %v5246, %v5258
  %v5260 = vpop.f32.mrf.mxu0
  %5261 = vdwg.mxu0
  %v5262 = vadd.f32 %v5042, %v5103
  %v5263 = vadd.f32 %v5043, %v5155
  %v5264 = vadd.f32 %v5044, %v5207
  %v5265 = vadd.f32 %v5045, %v5259
  %v5270 = vrot.slane %v5262, 7
  %v5271 = vrot.slane %v5263, 7
  %v5272 = vrot.slane %v5264, 7
  %v5273 = vrot.slane %v5265, 7
  %vm5278 = vcmask 1040384
  %v5279 = vsel %vm5278, %v4376, %v5270
  %v5280 = vsel %vm5278, %v4377, %v5271
  %v5281 = vsel %vm5278, %v4378, %v5272
  %v5282 = vsel %vm5278, %v4379, %v5273
  %v5283 = vld [vmem:[%s5] sm:$0xf]
  %v5284 = vld [vmem:[%s6] sm:$0xf]
  %v5286 = vperm.slane %v5283, 0
  %v5287 = vperm.slane %v5283, 1
  %v5288 = vperm.slane %v5283, 2
  %v5289 = vperm.slane %v5283, 3
  %v5294 = vmul.f32 %v5279, %v5286
  %v5295 = vmul.f32 %v5280, %v5287
  %v5296 = vmul.f32 %v5281, %v5288
  %v5297 = vmul.f32 %v5282, %v5289
  %v5299 = vperm.slane %v5284, 0
  %v5300 = vperm.slane %v5284, 1
  %v5301 = vperm.slane %v5284, 2
  %v5302 = vperm.slane %v5284, 3
  %v5307 = vadd.f32 %v5294, %v5299
  %v5308 = vadd.f32 %v5295, %v5300
  %v5309 = vadd.f32 %v5296, %v5301
  %v5310 = vadd.f32 %v5297, %v5302
  %vm5311 = vcmp.gt.f32.partialorder %v5307, 0.0
  %vm5312 = vcmp.gt.f32.partialorder %v5308, 0.0
  %vm5313 = vcmp.gt.f32.partialorder %v5309, 0.0
  %vm5314 = vcmp.gt.f32.partialorder %v5310, 0.0
  %v5315 = vmul.f32 %v5307, 0.03
  %v5316 = vmul.f32 %v5308, 0.03
  %v5317 = vmul.f32 %v5309, 0.03
  %v5318 = vmul.f32 %v5310, 0.03
  %v5319 = vsel %vm5311, %v5307, %v5315
  %v5320 = vsel %vm5312, %v5308, %v5316
  %v5321 = vsel %vm5313, %v5309, %v5317
  %v5322 = vsel %vm5314, %v5310, %v5318
  %v5323 = vpack.c.bf16 %v5319, %v5319
  %v5324 = vpack.c.bf16 %v5320, %v5320
  %v5325 = vpack.c.bf16 %v5321, %v5321
  %v5326 = vpack.c.bf16 %v5322, %v5322
  %v5327 = vld [vmem:[%s7] sm:$0xf]
  %v5328 = vld [vmem:[%s7 + $0x4] sm:$0xf]
  %v5329 = vld [vmem:[%s7 + $0x8] sm:$0xf]
  %v5330 = vld [vmem:[%s7 + $0xc] sm:$0xf]
  %v5331 = vld [vmem:[%s7 + $0x10] sm:$0xf]
  %v5332 = vld [vmem:[%s7 + $0x14] sm:$0xf]
  %v5333 = vld [vmem:[%s7 + $0x18] sm:$0xf]
  %v5334 = vld [vmem:[%s7 + $0x1c] sm:$0xf]
  %v5335 = vld [vmem:[%s7 + $0x20] sm:$0xf]
  %v5336 = vld [vmem:[%s7 + $0x24] sm:$0xf]
  %v5337 = vld [vmem:[%s7 + $0x28] sm:$0xf]
  %v5338 = vld [vmem:[%s7 + $0x2c] sm:$0xf]
  %v5339 = vld [vmem:[%s7 + $0x30] sm:$0xf]
  %v5340 = vld [vmem:[%s7 + $0x34] sm:$0xf]
  %v5341 = vld [vmem:[%s7 + $0x38] sm:$0xf]
  %v5342 = vld [vmem:[%s7 + $0x3c] sm:$0xf]
  %v5343 = vld [vmem:[%s7 + $0x40] sm:$0xf]
  %v5344 = vld [vmem:[%s7 + $0x44] sm:$0xf]
  %v5345 = vld [vmem:[%s7 + $0x48] sm:$0xf]
  %v5346 = vld [vmem:[%s7 + $0x4c] sm:$0xf]
  %v5347 = vld [vmem:[%s7 + $0x50] sm:$0xf]
  %v5348 = vld [vmem:[%s7 + $0x54] sm:$0xf]
  %v5349 = vld [vmem:[%s7 + $0x58] sm:$0xf]
  %v5350 = vld [vmem:[%s7 + $0x5c] sm:$0xf]
  %v5351 = vld [vmem:[%s7 + $0x60] sm:$0xf]
  %v5352 = vld [vmem:[%s7 + $0x64] sm:$0xf]
  %v5353 = vld [vmem:[%s7 + $0x68] sm:$0xf]
  %v5354 = vld [vmem:[%s7 + $0x6c] sm:$0xf]
  %v5355 = vld [vmem:[%s7 + $0x70] sm:$0xf]
  %v5356 = vld [vmem:[%s7 + $0x74] sm:$0xf]
  %v5357 = vld [vmem:[%s7 + $0x78] sm:$0xf]
  %v5358 = vld [vmem:[%s7 + $0x7c] sm:$0xf]
  %v5359 = vld [vmem:[%s7 + $0x80] sm:$0xf]
  %v5360 = vld [vmem:[%s7 + $0x84] sm:$0xf]
  %v5361 = vld [vmem:[%s7 + $0x88] sm:$0xf]
  %v5362 = vld [vmem:[%s7 + $0x8c] sm:$0xf]
  %v5363 = vld [vmem:[%s7 + $0x90] sm:$0xf]
  %v5364 = vld [vmem:[%s7 + $0x94] sm:$0xf]
  %v5365 = vld [vmem:[%s7 + $0x98] sm:$0xf]
  %v5366 = vld [vmem:[%s7 + $0x9c] sm:$0xf]
  %v5367 = vld [vmem:[%s7 + $0xa0] sm:$0xf]
  %v5368 = vld [vmem:[%s7 + $0xa4] sm:$0xf]
  %v5369 = vld [vmem:[%s7 + $0xa8] sm:$0xf]
  %v5370 = vld [vmem:[%s7 + $0xac] sm:$0xf]
  %v5371 = vld [vmem:[%s7 + $0xb0] sm:$0xf]
  %v5372 = vld [vmem:[%s7 + $0xb4] sm:$0xf]
  %v5373 = vld [vmem:[%s7 + $0xb8] sm:$0xf]
  %v5374 = vld [vmem:[%s7 + $0xbc] sm:$0xf]
  %v5375 = vld [vmem:[%s7 + $0xc0] sm:$0xf]
  %v5376 = vld [vmem:[%s7 + $0xc4] sm:$0xf]
  %v5377 = vld [vmem:[%s7 + $0xc8] sm:$0xf]
  %v5378 = vld [vmem:[%s7 + $0xcc] sm:$0xf]
  %v5379 = vld [vmem:[%s7 + $0xd0] sm:$0xf]
  %v5380 = vld [vmem:[%s7 + $0xd4] sm:$0xf]
  %v5381 = vld [vmem:[%s7 + $0xd8] sm:$0xf]
  %v5382 = vld [vmem:[%s7 + $0xdc] sm:$0xf]
  %v5383 = vld [vmem:[%s7 + $0xe0] sm:$0xf]
  %v5384 = vld [vmem:[%s7 + $0xe4] sm:$0xf]
  %v5385 = vld [vmem:[%s7 + $0xe8] sm:$0xf]
  %v5386 = vld [vmem:[%s7 + $0xec] sm:$0xf]
  %v5387 = vld [vmem:[%s7 + $0xf0] sm:$0xf]
  %v5388 = vld [vmem:[%s7 + $0xf4] sm:$0xf]
  %v5389 = vld [vmem:[%s7 + $0xf8] sm:$0xf]
  %v5390 = vld [vmem:[%s7 + $0xfc] sm:$0xf]
  %v5455 = vunpack.c.l.b16 %v5327
  %v5456 = vunpack.c.l.b16 %v5328
  %v5457 = vunpack.c.l.b16 %v5329
  %v5458 = vunpack.c.l.b16 %v5330
  %v5459 = vunpack.c.l.b16 %v5331
  %v5460 = vunpack.c.l.b16 %v5332
  %v5461 = vunpack.c.l.b16 %v5333
  %v5462 = vunpack.c.l.b16 %v5334
  %v5463 = vunpack.c.l.b16 %v5335
  %v5464 = vunpack.c.l.b16 %v5336
  %v5465 = vunpack.c.l.b16 %v5337
  %v5466 = vunpack.c.l.b16 %v5338
  %v5467 = vunpack.c.l.b16 %v5339
  %v5468 = vunpack.c.l.b16 %v5340
  %v5469 = vunpack.c.l.b16 %v5341
  %v5470 = vunpack.c.l.b16 %v5342
  %v5471 = vunpack.c.l.b16 %v5343
  %v5472 = vunpack.c.l.b16 %v5344
  %v5473 = vunpack.c.l.b16 %v5345
  %v5474 = vunpack.c.l.b16 %v5346
  %v5475 = vunpack.c.l.b16 %v5347
  %v5476 = vunpack.c.l.b16 %v5348
  %v5477 = vunpack.c.l.b16 %v5349
  %v5478 = vunpack.c.l.b16 %v5350
  %v5479 = vunpack.c.l.b16 %v5351
  %v5480 = vunpack.c.l.b16 %v5352
  %v5481 = vunpack.c.l.b16 %v5353
  %v5482 = vunpack.c.l.b16 %v5354
  %v5483 = vunpack.c.l.b16 %v5355
  %v5484 = vunpack.c.l.b16 %v5356
  %v5485 = vunpack.c.l.b16 %v5357
  %v5486 = vunpack.c.l.b16 %v5358
  %v5487 = vunpack.c.l.b16 %v5359
  %v5488 = vunpack.c.l.b16 %v5360
  %v5489 = vunpack.c.l.b16 %v5361
  %v5490 = vunpack.c.l.b16 %v5362
  %v5491 = vunpack.c.l.b16 %v5363
  %v5492 = vunpack.c.l.b16 %v5364
  %v5493 = vunpack.c.l.b16 %v5365
  %v5494 = vunpack.c.l.b16 %v5366
  %v5495 = vunpack.c.l.b16 %v5367
  %v5496 = vunpack.c.l.b16 %v5368
  %v5497 = vunpack.c.l.b16 %v5369
  %v5498 = vunpack.c.l.b16 %v5370
  %v5499 = vunpack.c.l.b16 %v5371
  %v5500 = vunpack.c.l.b16 %v5372
  %v5501 = vunpack.c.l.b16 %v5373
  %v5502 = vunpack.c.l.b16 %v5374
  %v5503 = vunpack.c.l.b16 %v5375
  %v5504 = vunpack.c.l.b16 %v5376
  %v5505 = vunpack.c.l.b16 %v5377
  %v5506 = vunpack.c.l.b16 %v5378
  %v5507 = vunpack.c.l.b16 %v5379
  %v5508 = vunpack.c.l.b16 %v5380
  %v5509 = vunpack.c.l.b16 %v5381
  %v5510 = vunpack.c.l.b16 %v5382
  %v5511 = vunpack.c.l.b16 %v5383
  %v5512 = vunpack.c.l.b16 %v5384
  %v5513 = vunpack.c.l.b16 %v5385
  %v5514 = vunpack.c.l.b16 %v5386
  %v5515 = vunpack.c.l.b16 %v5387
  %v5516 = vunpack.c.l.b16 %v5388
  %v5517 = vunpack.c.l.b16 %v5389
  %v5518 = vunpack.c.l.b16 %v5390
  %v5519 = vpack.c.b16 %v5456, %v5455
  %v5520 = vpack.c.b16 %v5458, %v5457
  %v5521 = vpack.c.b16 %v5460, %v5459
  %v5522 = vpack.c.b16 %v5462, %v5461
  %v5523 = vpack.c.b16 %v5464, %v5463
  %v5524 = vpack.c.b16 %v5466, %v5465
  %v5525 = vpack.c.b16 %v5468, %v5467
  %v5526 = vpack.c.b16 %v5470, %v5469
  %v5527 = vpack.c.b16 %v5472, %v5471
  %v5528 = vpack.c.b16 %v5474, %v5473
  %v5529 = vpack.c.b16 %v5476, %v5475
  %v5530 = vpack.c.b16 %v5478, %v5477
  %v5531 = vpack.c.b16 %v5480, %v5479
  %v5532 = vpack.c.b16 %v5482, %v5481
  %v5533 = vpack.c.b16 %v5484, %v5483
  %v5534 = vpack.c.b16 %v5486, %v5485
  %v5535 = vpack.c.b16 %v5488, %v5487
  %v5536 = vpack.c.b16 %v5490, %v5489
  %v5537 = vpack.c.b16 %v5492, %v5491
  %v5538 = vpack.c.b16 %v5494, %v5493
  %v5539 = vpack.c.b16 %v5496, %v5495
  %v5540 = vpack.c.b16 %v5498, %v5497
  %v5541 = vpack.c.b16 %v5500, %v5499
  %v5542 = vpack.c.b16 %v5502, %v5501
  %v5543 = vpack.c.b16 %v5504, %v5503
  %v5544 = vpack.c.b16 %v5506, %v5505
  %v5545 = vpack.c.b16 %v5508, %v5507
  %v5546 = vpack.c.b16 %v5510, %v5509
  %v5547 = vpack.c.b16 %v5512, %v5511
  %v5548 = vpack.c.b16 %v5514, %v5513
  %v5549 = vpack.c.b16 %v5516, %v5515
  %v5550 = vpack.c.b16 %v5518, %v5517
  %5583 = vmatpush.bf16.msra.mxu0 %v5526
  %5584 = vmatpush.bf16.msra.mxu0 %v5525
  %5585 = vmatpush.bf16.msra.mxu0 %v5524
  %5586 = vmatpush.bf16.msra.mxu0 %v5523
  %5587 = vmatpush.bf16.msra.mxu0 %v5522
  %5588 = vmatpush.bf16.msra.mxu0 %v5521
  %5589 = vmatpush.bf16.msra.mxu0 %v5520
  %5590 = vmatpush.bf16.msra.mxu0 %v5519
  %5591 = vmatmul.bf16.gmra.mxu0 %v5323
  %v5592 = vpop.f32.mrf.mxu0
  %v5593 = vadd.f32 0.0, %v5592
  %v5594 = vpop.f32.mrf.mxu0
  %5595 = vdwg.mxu0
  %5596 = vmatpush.bf16.msra.mxu0 %v5534
  %5597 = vmatpush.bf16.msra.mxu0 %v5533
  %5598 = vmatpush.bf16.msra.mxu0 %v5532
  %5599 = vmatpush.bf16.msra.mxu0 %v5531
  %5600 = vmatpush.bf16.msra.mxu0 %v5530
  %5601 = vmatpush.bf16.msra.mxu0 %v5529
  %5602 = vmatpush.bf16.msra.mxu0 %v5528
  %5603 = vmatpush.bf16.msra.mxu0 %v5527
  %5604 = vmatmul.bf16.gmra.mxu0 %v5324
  %v5605 = vpop.f32.mrf.mxu0
  %v5606 = vadd.f32 %v5593, %v5605
  %v5607 = vpop.f32.mrf.mxu0
  %5608 = vdwg.mxu0
  %5609 = vmatpush.bf16.msra.mxu0 %v5542
  %5610 = vmatpush.bf16.msra.mxu0 %v5541
  %5611 = vmatpush.bf16.msra.mxu0 %v5540
  %5612 = vmatpush.bf16.msra.mxu0 %v5539
  %5613 = vmatpush.bf16.msra.mxu0 %v5538
  %5614 = vmatpush.bf16.msra.mxu0 %v5537
  %5615 = vmatpush.bf16.msra.mxu0 %v5536
  %5616 = vmatpush.bf16.msra.mxu0 %v5535
  %5617 = vmatmul.bf16.gmra.mxu0 %v5325
  %v5618 = vpop.f32.mrf.mxu0
  %v5619 = vadd.f32 %v5606, %v5618
  %v5620 = vpop.f32.mrf.mxu0
  %5621 = vdwg.mxu0
  %5622 = vmatpush.bf16.msra.mxu0 %v5550
  %5623 = vmatpush.bf16.msra.mxu0 %v5549
  %5624 = vmatpush.bf16.msra.mxu0 %v5548
  %5625 = vmatpush.bf16.msra.mxu0 %v5547
  %5626 = vmatpush.bf16.msra.mxu0 %v5546
  %5627 = vmatpush.bf16.msra.mxu0 %v5545
  %5628 = vmatpush.bf16.msra.mxu0 %v5544
  %5629 = vmatpush.bf16.msra.mxu0 %v5543
  %5630 = vmatmul.bf16.gmra.mxu0 %v5326
  %v5631 = vpop.f32.mrf.mxu0
  %v5632 = vadd.f32 %v5619, %v5631
  %v5633 = vpop.f32.mrf.mxu0
  %5634 = vdwg.mxu0
  %v5635 = vld [vmem:[%s8] sm:$0x1]
  %v5636 = vld [vmem:[%s9] sm:$0x1]
  %v5638 = vperm.slane %v5635, 0
  %v5640 = vmul.f32 %v5632, %v5638
  %v5642 = vperm.slane %v5636, 0
  %v5644 = vadd.f32 %v5640, %v5642
  %vm5645 = vcmp.gt.f32.partialorder %v5644, 0.0
  %v5646 = vmul.f32 %v5644, 0.03
  %v5647 = vsel %vm5645, %v5644, %v5646
  %v5648 = vpack.c.bf16 %v5647, %v5647
  %v5649 = vld [vmem:[%s10] sm:$0xf]
  %v5650 = vld [vmem:[%s10 + $0x4] sm:$0xf]
  %v5651 = vld [vmem:[%s10 + $0x8] sm:$0xf]
  %v5652 = vld [vmem:[%s10 + $0xc] sm:$0xf]
  %v5653 = vld [vmem:[%s10 + $0x10] sm:$0xf]
  %v5654 = vld [vmem:[%s10 + $0x14] sm:$0xf]
  %v5655 = vld [vmem:[%s10 + $0x18] sm:$0xf]
  %v5656 = vld [vmem:[%s10 + $0x1c] sm:$0xf]
  %v5657 = vld [vmem:[%s10 + $0x20] sm:$0xf]
  %v5658 = vld [vmem:[%s10 + $0x24] sm:$0xf]
  %v5659 = vld [vmem:[%s10 + $0x28] sm:$0xf]
  %v5660 = vld [vmem:[%s10 + $0x2c] sm:$0xf]
  %v5661 = vld [vmem:[%s10 + $0x30] sm:$0xf]
  %v5662 = vld [vmem:[%s10 + $0x34] sm:$0xf]
  %v5663 = vld [vmem:[%s10 + $0x38] sm:$0xf]
  %v5664 = vld [vmem:[%s10 + $0x3c] sm:$0xf]
  %v5681 = vunpack.c.l.b16 %v5649
  %v5682 = vunpack.c.l.b16 %v5650
  %v5683 = vunpack.c.l.b16 %v5651
  %v5684 = vunpack.c.l.b16 %v5652
  %v5685 = vunpack.c.l.b16 %v5653
  %v5686 = vunpack.c.l.b16 %v5654
  %v5687 = vunpack.c.l.b16 %v5655
  %v5688 = vunpack.c.l.b16 %v5656
  %v5689 = vunpack.c.l.b16 %v5657
  %v5690 = vunpack.c.l.b16 %v5658
  %v5691 = vunpack.c.l.b16 %v5659
  %v5692 = vunpack.c.l.b16 %v5660
  %v5693 = vunpack.c.l.b16 %v5661
  %v5694 = vunpack.c.l.b16 %v5662
  %v5695 = vunpack.c.l.b16 %v5663
  %v5696 = vunpack.c.l.b16 %v5664
  %v5697 = vpack.c.b16 %v5682, %v5681
  %v5698 = vpack.c.b16 %v5684, %v5683
  %v5699 = vpack.c.b16 %v5686, %v5685
  %v5700 = vpack.c.b16 %v5688, %v5687
  %v5701 = vpack.c.b16 %v5690, %v5689
  %v5702 = vpack.c.b16 %v5692, %v5691
  %v5703 = vpack.c.b16 %v5694, %v5693
  %v5704 = vpack.c.b16 %v5696, %v5695
  %5713 = vmatpush.bf16.msra.mxu0 %v5704
  %5714 = vmatpush.bf16.msra.mxu0 %v5703
  %5715 = vmatpush.bf16.msra.mxu0 %v5702
  %5716 = vmatpush.bf16.msra.mxu0 %v5701
  %5717 = vmatpush.bf16.msra.mxu0 %v5700
  %5718 = vmatpush.bf16.msra.mxu0 %v5699
  %5719 = vmatpush.bf16.msra.mxu0 %v5698
  %5720 = vmatpush.bf16.msra.mxu0 %v5697
  %5721 = vmatmul.bf16.gmra.mxu0 %v5648
  %v5722 = vpop.f32.mrf.mxu0
  %v5723 = vadd.f32 0.0, %v5722
  %v5724 = vpop.f32.mrf.mxu0
  %5725 = vdwg.mxu0
  %v5726 = vld [vmem:[%s11] sm:$0x1]
  %v5727 = vld [vmem:[%s12] sm:$0x1]
  %v5729 = vperm.slane %v5726, 0
  %v5731 = vmul.f32 %v5723, %v5729
  %v5733 = vperm.slane %v5727, 0
  %v5735 = vadd.f32 %v5731, %v5733
  %vm5736 = vcmp.gt.f32.partialorder %v5735, 0.0
  %v5737 = vmul.f32 %v5735, 0.03
  %v5738 = vsel %vm5736, %v5735, %v5737
  %v5739 = vpack.c.bf16 %v5738, %v5738
  %v5740 = vld [vmem:[%s13] sm:$0xff]
  %v5741 = vld [vmem:[%s13 + $0x8] sm:$0xff]
  %v5742 = vld [vmem:[%s13 + $0x10] sm:$0xff]
  %v5743 = vld [vmem:[%s13 + $0x18] sm:$0xff]
  %v5744 = vld [vmem:[%s14] sm:$0x3]
  %v5746 = vperm.slane %v5744, 0
  %v5747 = vperm.slane %v5744, 1
  %v5754 = vunpack.c.l.b16 %v5740
  %v5755 = vunpack.c.h.b16 %v5740
  %v5756 = vunpack.c.l.b16 %v5741
  %v5757 = vunpack.c.h.b16 %v5741
  %v5758 = vunpack.c.l.b16 %v5742
  %v5759 = vunpack.c.h.b16 %v5742
  %v5760 = vunpack.c.l.b16 %v5743
  %v5761 = vunpack.c.h.b16 %v5743
  %v5762 = vpack.c.b16 %v5756, %v5754
  %v5763 = vpack.c.b16 %v5757, %v5755
  %v5764 = vpack.c.b16 %v5760, %v5758
  %v5765 = vpack.c.b16 %v5761, %v5759
  %vm5770 = vcmask 261120
  %v5772 = vsel %vm5770, %v5739, 0
  %5774 = vmatpush.bf16.msra.mxu0 0
  %5775 = vmatpush.bf16.msra.mxu0 0
  %5776 = vmatpush.bf16.msra.mxu0 0
  %5777 = vmatpush.bf16.msra.mxu0 0
  %5778 = vmatpush.bf16.msra.mxu0 0
  %5779 = vmatpush.bf16.msra.mxu0 0
  %5780 = vmatpush.bf16.msra.mxu0 %v5764
  %5781 = vmatpush.bf16.msra.mxu0 %v5762
  %5782 = vmatmul.bf16.gmra.mxu0 %v5772
  %v5783 = vpop.f32.mrf.mxu0
  %v5784 = vadd.f32 %v5746, %v5783
  %v5785 = vpop.f32.mrf.mxu0
  %5786 = vdwg.mxu0
  %5787 = vmatpush.bf16.msra.mxu0 0
  %5788 = vmatpush.bf16.msra.mxu0 0
  %5789 = vmatpush.bf16.msra.mxu0 0
  %5790 = vmatpush.bf16.msra.mxu0 0
  %5791 = vmatpush.bf16.msra.mxu0 0
  %5792 = vmatpush.bf16.msra.mxu0 0
  %5793 = vmatpush.bf16.msra.mxu0 %v5765
  %5794 = vmatpush.bf16.msra.mxu0 %v5763
  %5795 = vmatmul.bf16.gmra.mxu0 %v5772
  %v5796 = vpop.f32.mrf.mxu0
  %v5797 = vadd.f32 %v5747, %v5796
  %v5798 = vpop.f32.mrf.mxu0
  %5799 = vdwg.mxu0
  %v5800 = vpack.c.bf16 %v5784, %v5784
  %v5801 = vpack.c.bf16 %v5797, %v5797
  %v5802 = vld [vmem:[%s15] sm:$0xf]
  %v5803 = vld [vmem:[%s15 + $0x4] sm:$0xf]
  %v5804 = vld [vmem:[%s15 + $0x8] sm:$0xf]
  %v5805 = vld [vmem:[%s15 + $0xc] sm:$0xf]
  %v5806 = vld [vmem:[%s15 + $0x10] sm:$0xf]
  %v5807 = vld [vmem:[%s15 + $0x14] sm:$0xf]
  %v5808 = vld [vmem:[%s15 + $0x18] sm:$0xf]
  %v5809 = vld [vmem:[%s15 + $0x1c] sm:$0xf]
  %v5810 = vld [vmem:[%s15 + $0x20] sm:$0xf]
  %v5811 = vld [vmem:[%s15 + $0x24] sm:$0xf]
  %v5812 = vld [vmem:[%s15 + $0x28] sm:$0xf]
  %v5813 = vld [vmem:[%s15 + $0x2c] sm:$0xf]
  %v5814 = vld [vmem:[%s15 + $0x30] sm:$0xf]
  %v5815 = vld [vmem:[%s15 + $0x34] sm:$0xf]
  %v5816 = vld [vmem:[%s15 + $0x38] sm:$0xf]
  %v5817 = vld [vmem:[%s15 + $0x3c] sm:$0xf]
  %v5818 = vld [vmem:[%s15 + $0x40] sm:$0xf]
  %v5819 = vld [vmem:[%s15 + $0x44] sm:$0xf]
  %v5820 = vld [vmem:[%s15 + $0x48] sm:$0xf]
  %v5821 = vld [vmem:[%s15 + $0x4c] sm:$0xf]
  %v5822 = vld [vmem:[%s15 + $0x50] sm:$0xf]
  %v5823 = vld [vmem:[%s15 + $0x54] sm:$0xf]
  %v5824 = vld [vmem:[%s15 + $0x58] sm:$0xf]
  %v5825 = vld [vmem:[%s15 + $0x5c] sm:$0xf]
  %v5826 = vld [vmem:[%s15 + $0x60] sm:$0xf]
  %v5827 = vld [vmem:[%s15 + $0x64] sm:$0xf]
  %v5828 = vld [vmem:[%s15 + $0x68] sm:$0xf]
  %v5829 = vld [vmem:[%s15 + $0x6c] sm:$0xf]
  %v5830 = vld [vmem:[%s15 + $0x70] sm:$0xf]
  %v5831 = vld [vmem:[%s15 + $0x74] sm:$0xf]
  %v5832 = vld [vmem:[%s15 + $0x78] sm:$0xf]
  %v5833 = vld [vmem:[%s15 + $0x7c] sm:$0xf]
  %v5834 = vld [vmem:[%s16] sm:$0x1]
  %v5836 = vperm.slane %v5834, 0
  %v5870 = vunpack.c.l.b16 %v5802
  %v5871 = vunpack.c.l.b16 %v5803
  %v5872 = vunpack.c.l.b16 %v5804
  %v5873 = vunpack.c.l.b16 %v5805
  %v5874 = vunpack.c.l.b16 %v5806
  %v5875 = vunpack.c.l.b16 %v5807
  %v5876 = vunpack.c.l.b16 %v5808
  %v5877 = vunpack.c.l.b16 %v5809
  %v5878 = vunpack.c.l.b16 %v5810
  %v5879 = vunpack.c.l.b16 %v5811
  %v5880 = vunpack.c.l.b16 %v5812
  %v5881 = vunpack.c.l.b16 %v5813
  %v5882 = vunpack.c.l.b16 %v5814
  %v5883 = vunpack.c.l.b16 %v5815
  %v5884 = vunpack.c.l.b16 %v5816
  %v5885 = vunpack.c.l.b16 %v5817
  %v5886 = vunpack.c.l.b16 %v5818
  %v5887 = vunpack.c.l.b16 %v5819
  %v5888 = vunpack.c.l.b16 %v5820
  %v5889 = vunpack.c.l.b16 %v5821
  %v5890 = vunpack.c.l.b16 %v5822
  %v5891 = vunpack.c.l.b16 %v5823
  %v5892 = vunpack.c.l.b16 %v5824
  %v5893 = vunpack.c.l.b16 %v5825
  %v5894 = vunpack.c.l.b16 %v5826
  %v5895 = vunpack.c.l.b16 %v5827
  %v5896 = vunpack.c.l.b16 %v5828
  %v5897 = vunpack.c.l.b16 %v5829
  %v5898 = vunpack.c.l.b16 %v5830
  %v5899 = vunpack.c.l.b16 %v5831
  %v5900 = vunpack.c.l.b16 %v5832
  %v5901 = vunpack.c.l.b16 %v5833
  %v5902 = vpack.c.b16 %v5871, %v5870
  %v5903 = vpack.c.b16 %v5873, %v5872
  %v5904 = vpack.c.b16 %v5875, %v5874
  %v5905 = vpack.c.b16 %v5877, %v5876
  %v5906 = vpack.c.b16 %v5879, %v5878
  %v5907 = vpack.c.b16 %v5881, %v5880
  %v5908 = vpack.c.b16 %v5883, %v5882
  %v5909 = vpack.c.b16 %v5885, %v5884
  %v5910 = vpack.c.b16 %v5887, %v5886
  %v5911 = vpack.c.b16 %v5889, %v5888
  %v5912 = vpack.c.b16 %v5891, %v5890
  %v5913 = vpack.c.b16 %v5893, %v5892
  %v5914 = vpack.c.b16 %v5895, %v5894
  %v5915 = vpack.c.b16 %v5897, %v5896
  %v5916 = vpack.c.b16 %v5899, %v5898
  %v5917 = vpack.c.b16 %v5901, %v5900
  %5934 = vmatpush.bf16.msra.mxu0 %v5909
  %5935 = vmatpush.bf16.msra.mxu0 %v5908
  %5936 = vmatpush.bf16.msra.mxu0 %v5907
  %5937 = vmatpush.bf16.msra.mxu0 %v5906
  %5938 = vmatpush.bf16.msra.mxu0 %v5905
  %5939 = vmatpush.bf16.msra.mxu0 %v5904
  %5940 = vmatpush.bf16.msra.mxu0 %v5903
  %5941 = vmatpush.bf16.msra.mxu0 %v5902
  %5942 = vmatmul.bf16.gmra.mxu0 %v5800
  %v5943 = vpop.f32.mrf.mxu0
  %v5944 = vadd.f32 %v5836, %v5943
  %v5945 = vpop.f32.mrf.mxu0
  %5946 = vdwg.mxu0
  %5947 = vmatpush.bf16.msra.mxu0 %v5917
  %5948 = vmatpush.bf16.msra.mxu0 %v5916
  %5949 = vmatpush.bf16.msra.mxu0 %v5915
  %5950 = vmatpush.bf16.msra.mxu0 %v5914
  %5951 = vmatpush.bf16.msra.mxu0 %v5913
  %5952 = vmatpush.bf16.msra.mxu0 %v5912
  %5953 = vmatpush.bf16.msra.mxu0 %v5911
  %5954 = vmatpush.bf16.msra.mxu0 %v5910
  %5955 = vmatmul.bf16.gmra.mxu0 %v5801
  %v5956 = vpop.f32.mrf.mxu0
  %v5957 = vadd.f32 %v5944, %v5956
  %v5958 = vpop.f32.mrf.mxu0
  %5959 = vdwg.mxu0
  %v5960 = vpack.c.bf16 %v5957, %v5957
  %v5961 = vld [vmem:[%s17] sm:$0xf]
  %v5962 = vld [vmem:[%s17 + $0x4] sm:$0xf]
  %v5963 = vld [vmem:[%s17 + $0x8] sm:$0xf]
  %v5964 = vld [vmem:[%s17 + $0xc] sm:$0xf]
  %v5965 = vld [vmem:[%s17 + $0x10] sm:$0xf]
  %v5966 = vld [vmem:[%s17 + $0x14] sm:$0xf]
  %v5967 = vld [vmem:[%s17 + $0x18] sm:$0xf]
  %v5968 = vld [vmem:[%s17 + $0x1c] sm:$0xf]
  %v5969 = vld [vmem:[%s17 + $0x20] sm:$0xf]
  %v5970 = vld [vmem:[%s17 + $0x24] sm:$0xf]
  %v5971 = vld [vmem:[%s17 + $0x28] sm:$0xf]
  %v5972 = vld [vmem:[%s17 + $0x2c] sm:$0xf]
  %v5973 = vld [vmem:[%s17 + $0x30] sm:$0xf]
  %v5974 = vld [vmem:[%s17 + $0x34] sm:$0xf]
  %v5975 = vld [vmem:[%s17 + $0x38] sm:$0xf]
  %v5976 = vld [vmem:[%s17 + $0x3c] sm:$0xf]
  %v5977 = vld [vmem:[#allocation2] sm:$0x1]
  %v5979 = vperm.slane %v5977, 0
  %v5997 = vunpack.c.l.b16 %v5961
  %v5998 = vunpack.c.l.b16 %v5962
  %v5999 = vunpack.c.l.b16 %v5963
  %v6000 = vunpack.c.l.b16 %v5964
  %v6001 = vunpack.c.l.b16 %v5965
  %v6002 = vunpack.c.l.b16 %v5966
  %v6003 = vunpack.c.l.b16 %v5967
  %v6004 = vunpack.c.l.b16 %v5968
  %v6005 = vunpack.c.l.b16 %v5969
  %v6006 = vunpack.c.l.b16 %v5970
  %v6007 = vunpack.c.l.b16 %v5971
  %v6008 = vunpack.c.l.b16 %v5972
  %v6009 = vunpack.c.l.b16 %v5973
  %v6010 = vunpack.c.l.b16 %v5974
  %v6011 = vunpack.c.l.b16 %v5975
  %v6012 = vunpack.c.l.b16 %v5976
  %v6013 = vpack.c.b16 %v5998, %v5997
  %v6014 = vpack.c.b16 %v6000, %v5999
  %v6015 = vpack.c.b16 %v6002, %v6001
  %v6016 = vpack.c.b16 %v6004, %v6003
  %v6017 = vpack.c.b16 %v6006, %v6005
  %v6018 = vpack.c.b16 %v6008, %v6007
  %v6019 = vpack.c.b16 %v6010, %v6009
  %v6020 = vpack.c.b16 %v6012, %v6011
  %6029 = vmatpush.bf16.msra.mxu0 %v6020
  %6030 = vmatpush.bf16.msra.mxu0 %v6019
  %6031 = vmatpush.bf16.msra.mxu0 %v6018
  %6032 = vmatpush.bf16.msra.mxu0 %v6017
  %6033 = vmatpush.bf16.msra.mxu0 %v6016
  %6034 = vmatpush.bf16.msra.mxu0 %v6015
  %6035 = vmatpush.bf16.msra.mxu0 %v6014
  %6036 = vmatpush.bf16.msra.mxu0 %v6013
  %6037 = vmatmul.bf16.gmra.mxu0 %v5960
  %v6038 = vpop.f32.mrf.mxu0
  %v6039 = vadd.f32 %v5979, %v6038
  %v6040 = vpop.f32.mrf.mxu0
  %6041 = vdwg.mxu0
  %v6042 = vsub.f32 %v6039, %v6039
  %v6043 = vmul.f32 %v6042, 1.442695
  %v6044 = vpow.pop %v6043
  %v6045 = vadd.f32 %v6044, 0.0
  %v6046 = vrcp.pop %v6045
  %v6047 = vmul.f32 %v6045, %v6046
  %v6048 = vsub.f32 1.0, %v6047
  %v6049 = vmul.f32 %v6046, %v6048
  %v6050 = vadd.f32 %v6046, %v6049
  %vm6051 = vweird.f32 %v6045
  %vm6052 = vweird.f32 %v6046
  %vm6053 = vmor %vm6051, %vm6052
  %v6054 = vsel %vm6053, %v6046, %v6050
  %v6055 = vand.u32 2147483647, %v6045
  %vm6056 = vcmp.eq.f32.partialorder %v6055, 8.507059e+37
  %v6057 = vand.u32 %v6045, 2147483648
  %v6058 = vor.u32 1.1754944e-38, %v6057
  %v6059 = vsel %vm6056, %v6058, %v6054
  %v6060 = vmul.f32 %v6044, %v6059
  %vm6061 = vcmask 1024
  %6062 = vst.msk [vmem:[%s19] sm:$0x3] %vm6061, %v6060
  // Predicated region
  $region78: #{discriminator_forward.1} parent=0 // pred_check
    _
  $region79: #{discriminator_forward.1} parent=0 // pred_check_branch
    %6064 = sbr.rel (0) target = $region81
  $region80: #{discriminator_forward.1} parent=0 // pred_region
    _
  $region81: #{discriminator_forward.1} parent=0 // pred_fallthru
    _
  // Predicated region
  $region82: #{discriminator_forward.1} parent=0 // pred_check
    _
  $region83: #{discriminator_forward.1} parent=0 // pred_check_branch
    %6066 = sbr.rel (0) target = $region85
  $region84: #{discriminator_forward.1} parent=0 // pred_region
    _
  $region85: #{discriminator_forward.1} parent=0 // pred_fallthru
    _

</llo_original>
